<compile_context>
chip_gen: v7x
topology: tpu7x:2x2x1
jax: 0.10.0
libtpu: 0.0.40
codegen_flags: <defaults>
</compile_context>

<pallas_src>
import functools

import jax
import jax.numpy as jnp
from jax.experimental import pallas as pl
from jax.experimental.pallas import tpu as pltpu


def _round_up(x, m):
    return (x + m - 1) // m * m


KERNEL_SIZES = (1, 2, 3, 5, 10)                 # feature_kernel keys
FEAT_PER_KERNEL = 64                            # feature_kernel values
FEATURE_DIM = FEAT_PER_KERNEL * len(KERNEL_SIZES)            # 320
GROUP_WIDTHS = tuple(_round_up(k * FEAT_PER_KERNEL, 128) for k in KERNEL_SIZES)  # 128,128,256,384,640
GROUP_OFFSETS = tuple(sum(GROUP_WIDTHS[:i]) for i in range(len(KERNEL_SIZES)))   # 0,128,256,512,896
PACKED_COLS = sum(GROUP_WIDTHS)                 # 1536 = 6 * 256  (aligned MXU N)
MAX_GROUP = max(GROUP_WIDTHS)                   # 640
HALO = 16                                       # max_k - 1 = 9, padded to bf16 sublane tile
OUT_PAD = 128                                   # merged (sigmoid, domain) output, lane-dense
BN_EPS = 1e-5


# ---------------------------------------------------------------------------
# Fused kernel: conv bank (per L-tile) + running global max-pool + both heads.
# Grid = (batch tiles [parallel], L tiles [arbitrary]).
# ---------------------------------------------------------------------------
def _eann_fused_kernel(L_valid, LT, n_extra, *refs):
    x_ref, halo_ref, w_all_ref, conv_b_ref, w1_ref, b1_ref = refs[:6]
    layer_refs = refs[6:6 + 2 * n_extra]                      # block-diag (w, b) per extra layer
    w_out_ref, b_out_ref, out_ref, feat_ref = refs[6 + 2 * n_extra:]

    l = pl.program_id(1)
    n_l = pl.num_programs(1)
    BT, _, D = x_ref.shape
    LW = LT + HALO

    @pl.when(l == 0)
    def _init():
        feat_ref[...] = jnp.full(feat_ref.shape, -jnp.inf, feat_ref.dtype)

    # Current L-tile plus a 16-row halo from the next tile; LT and HALO are multiples of
    # 16 and D is a multiple of 128, so the reshape below is a free view.
    xw = jnp.concatenate([x_ref[...], halo_ref[...]], axis=1)          # [BT, LW, D] bf16
    x2d = xw.reshape(BT * LW, D)

    # Global window-start index of each local row (for masking the valid conv range).
    t_global = jax.lax.broadcasted_iota(jnp.int32, (1, LT, 1), 1) + l * LT

    pooled = []
    for k, goff, gw in zip(KERNEL_SIZES, GROUP_OFFSETS, GROUP_WIDTHS):
        # One 128-aligned MXU matmul per kernel group (bf16 in, f32 accumulate).
        z = jnp.dot(x2d, w_all_ref[:, goff:goff + gw],
                    preferred_element_type=jnp.float32).reshape(BT, LW, gw)
        # conv_k[b, t, c] = sum_j z[b, t + j, j*64 + c]   (valid conv, bias added later)
        acc = z[:, 0:LT, 0:FEAT_PER_KERNEL]
        for j in range(1, k):
            c0 = j * FEAT_PER_KERNEL
            acc = acc + z[:, j:j + LT, c0:c0 + FEAT_PER_KERNEL]
        # Window start must lie inside the real (unpadded) sequence: t <= L - k.
        valid = t_global <= (L_valid - k)
        acc = jnp.where(valid, acc, -jnp.inf)
        pooled.append(jnp.max(acc, axis=1))                            # [BT, 64]
    step_feat = jnp.concatenate(pooled, axis=-1)                       # [BT, 320]
    feat_ref[...] = jnp.maximum(feat_ref[...], step_feat)              # running max over L-tiles

    @pl.when(l == n_l - 1)
    def _heads():
        # Conv bias is per-channel, so it commutes with the global max-pool over time.
        feat = feat_ref[...] + conv_b_ref[...]                         # [BT, 320] f32
        # First layers of both heads fused side-by-side (same input feature); remaining
        # hidden layers and the two output Linears are block-diagonal.  BN folded,
        # Dropout = id (eval), GRL = id in forward, extra domain ReLU is a no-op (h >= 0).
        h = jnp.maximum(
            jnp.dot(feat, w1_ref[...], preferred_element_type=jnp.float32) + b1_ref[...], 0.0)
        for i in range(n_extra):
            w, b = layer_refs[2 * i], layer_refs[2 * i + 1]
            h = jnp.maximum(
                jnp.dot(h, w[...], preferred_element_type=jnp.float32) + b[...], 0.0)
        y = jnp.dot(h, w_out_ref[...], preferred_element_type=jnp.float32) + b_out_ref[...]
        col = jax.lax.broadcasted_iota(jnp.int32, y.shape, 1)
        sig = 1.0 / (1.0 + jnp.exp(-y))
        out_ref[...] = jnp.where(col == 0, sig, y)                     # col0=sigmoid, 1..=domain


# ---------------------------------------------------------------------------
# Parameter preparation (run ONCE, hoisted out of the forward): pack conv weights
# column-wise with 128-aligned groups, fold BatchNorm into the Linears, fuse the
# two heads (concat first layer, block-diagonal afterwards, padded merged output).
# ---------------------------------------------------------------------------
def prepare_params(params, mlp_dims, emb_dim, domain_num):
    d_pad = _round_up(emb_dim, 128)

    w_all = jnp.zeros((d_pad, PACKED_COLS), jnp.float32)
    conv_b_parts = []
    for (w, b), goff in zip(params['conv'], GROUP_OFFSETS):            # w: [k, D, 64], b: [1, 64]
        k = w.shape[0]
        for j in range(k):
            w_all = w_all.at[:emb_dim,
                             goff + j * FEAT_PER_KERNEL:
                             goff + (j + 1) * FEAT_PER_KERNEL].set(w[j])
        conv_b_parts.append(b)
    w_all = w_all.astype(jnp.bfloat16)                                 # [D_pad, 1536]
    conv_b = jnp.concatenate(conv_b_parts, axis=1)                     # [1, 320]

    def fold(flat):
        out = []
        for i in range(0, len(flat), 6):
            w, b, gamma, beta, mean, var = flat[i:i + 6]
            s = gamma * jax.lax.rsqrt(var + BN_EPS)
            out.append((w * s, (b - mean) * s + beta))
        return out

    cls = fold(params['cls_layers'])
    dom = fold(params['dom_layers'])

    # Both heads consume the same 320-d feature: fuse their first layers side by side.
    w1 = jnp.concatenate([cls[0][0], dom[0][0]], axis=1)
    b1 = jnp.concatenate([cls[0][1], dom[0][1]], axis=1)

    def block_diag(wc, wd):
        ic, oc = wc.shape
        idd, od = wd.shape
        out = jnp.zeros((ic + idd, oc + od), jnp.float32)
        out = out.at[:ic, :oc].set(wc)
        out = out.at[ic:, oc:].set(wd)
        return out

    hidden = []
    for (wc, bc), (wd, bd) in zip(cls[1:], dom[1:]):
        hidden.append(block_diag(wc, wd))
        hidden.append(jnp.concatenate([bc, bd], axis=1))

    (wc_o, bc_o), (wd_o, bd_o) = params['cls_out'], params['dom_out']
    assert 1 + domain_num <= OUT_PAD
    h_c = wc_o.shape[0]
    h_d = wd_o.shape[0]
    w_out = jnp.zeros((h_c + h_d, OUT_PAD), jnp.float32)
    w_out = w_out.at[:h_c, 0:1].set(wc_o)
    w_out = w_out.at[h_c:, 1:1 + domain_num].set(wd_o)
    b_out = jnp.zeros((1, OUT_PAD), jnp.float32)
    b_out = b_out.at[:, 0:1].set(bc_o)
    b_out = b_out.at[:, 1:1 + domain_num].set(bd_o)

    return dict(w_all=w_all, conv_b=conv_b, w1=w1, b1=b1, hidden=tuple(hidden),
                w_out=w_out, b_out=b_out, n_extra=len(mlp_dims) - 1,
                domain_num=domain_num, emb_dim=emb_dim)


# ---------------------------------------------------------------------------
# Per-generation tile / VMEM-budget selection.
# ---------------------------------------------------------------------------
def _pick_vmem_limit_bytes():
    cap = None
    try:
        cap = getattr(pltpu.get_tpu_info(), "vmem_capacity_bytes", None)
    except Exception:
        cap = None
    if not cap or cap <= 0:
        cap = 64 * 1024 * 1024          # conservative: v7x physical VMEM per TC
    # headroom for Mosaic-internal scratch; never request more than ~110 MiB (v5e/v6e)
    return int(min(cap - 10 * 1024 * 1024, 110 * 1024 * 1024))


def _vmem_estimate(bt, lt, d_pad):
    lw = lt + HALO
    est = 0
    est += 2 * bt * lt * d_pad * 2                 # x tile, double-buffered (bf16)
    est += 2 * bt * HALO * d_pad * 2               # halo tile, double-buffered (bf16)
    est += bt * lw * d_pad * 2                     # in-kernel concatenated x (bf16)
    est += bt * lw * MAX_GROUP * 4                 # largest per-group conv result (f32)
    est += 4 * bt * lt * FEAT_PER_KERNEL * 4       # tap-shift / accumulator temporaries
    est += 2 * d_pad * PACKED_COLS * 2             # packed conv weights (bf16)
    est += bt * FEATURE_DIM * 4 + 2 * bt * OUT_PAD * 4   # running-max scratch + out block
    est += 4 * 1024 * 1024                         # head weights + misc slack
    return int(est * 1.25)


def _choose_tiles(B, L, d_pad, vmem_budget):
    lt = min(128, _round_up(L, 16))
    bt = min(64, _round_up(B, 8))
    if B >= 16 and bt == _round_up(B, 8) and bt > 8:
        bt = max(8, _round_up(bt // 2, 8))         # keep >= 2 batch tiles (v7x megacore)
    while _vmem_estimate(bt, lt, d_pad) > vmem_budget:
        if lt >= 64:
            lt //= 2
        elif bt > 8:
            bt = max(8, _round_up(bt // 2, 8))
        else:
            break
    return bt, lt


# ---------------------------------------------------------------------------
# Deterministic synthetic parameter init (no checkpoint load).
# ---------------------------------------------------------------------------
def _init_linear(key, fan_in, fan_out):
    kw, kb = jax.random.split(key)
    w = 0.05 * jax.random.normal(kw, (fan_in, fan_out), jnp.float32)
    b = 0.05 * jax.random.normal(kb, (1, fan_out), jnp.float32)
    return w, b


def _init_bn(key, dim):
    k1, k2, k3, k4 = jax.random.split(key, 4)
    gamma = 1.0 + 0.1 * jax.random.normal(k1, (1, dim), jnp.float32)
    beta = 0.1 * jax.random.normal(k2, (1, dim), jnp.float32)
    mean = 0.1 * jax.random.normal(k3, (1, dim), jnp.float32)
    var = 1.0 + 0.1 * jnp.abs(jax.random.normal(k4, (1, dim), jnp.float32))
    return gamma, beta, mean, var


def _init_mlp_hidden(key, in_dim, dims):
    flat = []
    d_in = in_dim
    for d_out in dims:
        key, k1, k2 = jax.random.split(key, 3)
        w, b = _init_linear(k1, d_in, d_out)
        flat.extend([w, b, *_init_bn(k2, d_out)])
        d_in = d_out
    return flat


def init_params(key, emb_dim, mlp_dims, domain_num):
    k_conv, k_cls, k_clso, k_dom, k_domo = jax.random.split(key, 5)
    conv = []
    for kk, ksz in zip(jax.random.split(k_conv, len(KERNEL_SIZES)), KERNEL_SIZES):
        kw, kb = jax.random.split(kk)
        w = 0.05 * jax.random.normal(kw, (ksz, emb_dim, FEAT_PER_KERNEL), jnp.float32)
        b = 0.05 * jax.random.normal(kb, (1, FEAT_PER_KERNEL), jnp.float32)
        conv.append((w, b))
    return dict(
        conv=conv,
        cls_layers=_init_mlp_hidden(k_cls, FEATURE_DIM, mlp_dims),
        cls_out=_init_linear(k_clso, mlp_dims[-1], 1),
        dom_layers=_init_mlp_hidden(k_dom, FEATURE_DIM, mlp_dims),
        dom_out=_init_linear(k_domo, mlp_dims[-1], domain_num),
    )


# ---------------------------------------------------------------------------
# Forward: (sigmoid(classifier(feature).squeeze(1)), domain_classifier(GRL(feature)))
# ---------------------------------------------------------------------------
def eann_forward(alpha, content, content_masks, prepped):
    # TODO(synk): the frozen pretrained BERT encoder ('hfl/chinese-bert-wwm-ext') has no
    # in-script Pallas equivalent; `content` is taken to be its precomputed
    # last_hidden_state [B, L, emb_dim].  `content_masks` only feeds BERT attention and
    # is therefore unused downstream; ReverseLayerF is identity in the forward pass.
    del content_masks, alpha

    B, L, D = content.shape
    assert D == prepped['emb_dim']
    assert L >= max(KERNEL_SIZES), "sequence must cover the largest conv kernel"
    domain_num = prepped['domain_num']
    n_extra = prepped['n_extra']

    d_pad = _round_up(D, 128)
    vmem_limit = _pick_vmem_limit_bytes()
    bt, lt = _choose_tiles(B, L, d_pad, vmem_limit - 8 * 1024 * 1024)

    l_pad = _round_up(L, lt)
    n_l = l_pad // lt
    b_pad = _round_up(B, bt)
    n_b = b_pad // bt

    x = content.astype(jnp.bfloat16)               # bf16 activations; f32 MXU accumulate
    x = jnp.pad(x, ((0, b_pad - B), (0, l_pad - L), (0, d_pad - D)))

    # Compact halo array: halo[b, l*HALO + r, :] = x[b, (l+1)*lt + r, :] (zeros past end),
    # so each L-tile reads only LT + 16 rows instead of re-fetching the next full tile.
    x_ext = jnp.pad(x, ((0, 0), (0, lt), (0, 0)))
    halo = (x_ext[:, lt:, :]
            .reshape(b_pad, n_l, lt, d_pad)[:, :, :HALO, :]
            .reshape(b_pad, n_l * HALO, d_pad))

    weights = [prepped['w_all'], prepped['conv_b'], prepped['w1'], prepped['b1'],
               *prepped['hidden'], prepped['w_out'], prepped['b_out']]

    in_specs = [
        pl.BlockSpec((bt, lt, d_pad), lambda b, l: (b, l, 0)),
        pl.BlockSpec((bt, HALO, d_pad), lambda b, l: (b, l, 0)),
    ]
    # Weights are small 2-D arrays: full-array blocks with a constant index map so they
    # are fetched once and stay VMEM-resident across all grid steps.
    in_specs += [pl.BlockSpec(w.shape, lambda b, l: (0, 0)) for w in weights]

    out = pl.pallas_call(
        functools.partial(_eann_fused_kernel, L, lt, n_extra),
        grid=(n_b, n_l),
        out_shape=jax.ShapeDtypeStruct((b_pad, OUT_PAD), jnp.float32),
        in_specs=in_specs,
        out_specs=pl.BlockSpec((bt, OUT_PAD), lambda b, l: (b, 0)),
        scratch_shapes=[pltpu.VMEM((bt, FEATURE_DIM), jnp.float32)],
        compiler_params=pltpu.CompilerParams(
            dimension_semantics=("parallel", "arbitrary"),
            vmem_limit_bytes=vmem_limit),
    )(x, halo, *weights)

    return out[:B, 0], out[:B, 1:1 + domain_num]    # ([B], [B, domain_num])


if __name__ == "__main__":
    B, L, emb_dim = 2, 16, 32
    mlp_dims = (64, 32)
    domain_num = 3

    key = jax.random.PRNGKey(0)
    k_x, k_p = jax.random.split(key)
    bert_feature = jax.random.normal(k_x, (B, L, emb_dim), dtype=jnp.float32)
    content_masks = jnp.ones((B, L), dtype=jnp.int32)

    params = init_params(k_p, emb_dim, mlp_dims, domain_num)
    # Hoisted parameter prep: runs once, not on every forward call.
    prepped = prepare_params(params, mlp_dims, emb_dim, domain_num)

    out, domain_pred = eann_forward(1.0, bert_feature, content_masks, prepped)
    jax.block_until_ready((out, domain_pred))
    assert out.shape == (B,)
    assert domain_pred.shape == (B, domain_num)
    assert bool(jnp.all(jnp.isfinite(out))) and bool(jnp.all(jnp.isfinite(domain_pred)))
    assert bool(jnp.all((out >= 0.0) & (out <= 1.0)))
    print("KERNEL_OK")
</pallas_src>

<mosaic_0001>
module attributes {stable_mosaic.version = 11 : i64} {
  func.func @_eann_fused_kernel(%arg0: i32, %arg1: i32, %arg2: memref<8x16x128xbf16, #tpu.memory_space<vmem>>, %arg3: memref<8x16x128xbf16, #tpu.memory_space<vmem>>, %arg4: memref<128x1536xbf16, #tpu.memory_space<vmem>>, %arg5: memref<1x320xf32, #tpu.memory_space<vmem>>, %arg6: memref<320x128xf32, #tpu.memory_space<vmem>>, %arg7: memref<1x128xf32, #tpu.memory_space<vmem>>, %arg8: memref<128x64xf32, #tpu.memory_space<vmem>>, %arg9: memref<1x64xf32, #tpu.memory_space<vmem>>, %arg10: memref<64x128xf32, #tpu.memory_space<vmem>>, %arg11: memref<1x128xf32, #tpu.memory_space<vmem>>, %arg12: memref<8x128xf32, #tpu.memory_space<vmem>>, %arg13: memref<8x320xf32, #tpu.memory_space<vmem>>) attributes {dimension_semantics = [#tpu.dimension_semantics<parallel>, #tpu.dimension_semantics<arbitrary>], iteration_bounds = array<i64: 1, 1>, scalar_prefetch = 0 : i64, scratch_operands = 1 : i64, tpu.core_type = #tpu.core_type<tc>, window_params = [{transform_indices = @transform_0, window_bounds = array<i64: 8, 16, 128>}, {transform_indices = @transform_1, window_bounds = array<i64: 8, 16, 128>}, {pipeline_mode = #tpu.pipeline_mode<synchronous>, transform_indices = @transform_2, window_bounds = array<i64: 128, 1536>}, {pipeline_mode = #tpu.pipeline_mode<synchronous>, transform_indices = @transform_3, window_bounds = array<i64: 1, 320>}, {pipeline_mode = #tpu.pipeline_mode<synchronous>, transform_indices = @transform_4, window_bounds = array<i64: 320, 128>}, {pipeline_mode = #tpu.pipeline_mode<synchronous>, transform_indices = @transform_5, window_bounds = array<i64: 1, 128>}, {pipeline_mode = #tpu.pipeline_mode<synchronous>, transform_indices = @transform_6, window_bounds = array<i64: 128, 64>}, {pipeline_mode = #tpu.pipeline_mode<synchronous>, transform_indices = @transform_7, window_bounds = array<i64: 1, 64>}, {pipeline_mode = #tpu.pipeline_mode<synchronous>, transform_indices = @transform_8, window_bounds = array<i64: 64, 128>}, {pipeline_mode = #tpu.pipeline_mode<synchronous>, transform_indices = @transform_9, window_bounds = array<i64: 1, 128>}, {transform_indices = @transform_10, window_bounds = array<i64: 8, 128>}]} {
    %c0_i32 = arith.constant 0 : i32
    %0 = arith.cmpi eq, %arg1, %c0_i32 : i32
    %1 = arith.extui %0 : i1 to i32
    %c0_i32_0 = arith.constant 0 : i32
    %2 = arith.cmpi ne, %1, %c0_i32_0 : i32
    scf.if %2 {
      %cst_32 = arith.constant 0xFF800000 : f32
      %105 = vector.broadcast %cst_32 : f32 to vector<8x320xf32>
      %c0_33 = arith.constant 0 : index
      %c0_34 = arith.constant 0 : index
      %106 = vector.load %arg13[%c0_33, %c0_34] : memref<8x320xf32, #tpu.memory_space<vmem>>, vector<8x320xf32>
      tpu.vector_store %arg13[%c0_33, %c0_34], %105 {strides = array<i32>} : memref<8x320xf32, #tpu.memory_space<vmem>>, vector<8x320xf32>,
    } else {
    }
    %c0 = arith.constant 0 : index
    %c0_1 = arith.constant 0 : index
    %c0_2 = arith.constant 0 : index
    %3 = vector.load %arg2[%c0, %c0_1, %c0_2] : memref<8x16x128xbf16, #tpu.memory_space<vmem>>, vector<8x16x128xbf16>
    %c0_3 = arith.constant 0 : index
    %c0_4 = arith.constant 0 : index
    %c0_5 = arith.constant 0 : index
    %4 = vector.load %arg3[%c0_3, %c0_4, %c0_5] : memref<8x16x128xbf16, #tpu.memory_space<vmem>>, vector<8x16x128xbf16>
    %5 = tpu.concatenate %3, %4 in 1 : vector<8x16x128xbf16>, vector<8x16x128xbf16> -> vector<8x32x128xbf16>
    %6 = vector.shape_cast %5 : vector<8x32x128xbf16> to vector<256x128xbf16>
    %7 = tpu.iota {dimensions = array<i32: 1>} : vector<1x16x1xi32>
    %c16_i32 = arith.constant 16 : i32
    %8 = arith.muli %arg1, %c16_i32 : i32
    %9 = vector.broadcast %8 : i32 to vector<1x16x1xi32>
    %10 = arith.addi %7, %9 : vector<1x16x1xi32>
    %c0_6 = arith.constant 0 : index
    %c0_7 = arith.constant 0 : index
    %11 = vector.load %arg4[%c0_6, %c0_7] : memref<128x1536xbf16, #tpu.memory_space<vmem>>, vector<128x128xbf16>
    %cst = arith.constant dense<0.000000e+00> : vector<256x128xf32>
    %12 = tpu.matmul %6, %11, %cst {dimension_numbers = #tpu.dot_dimension_numbers<[1], [0], [0], [1], [0, 0, 1, 1], [], []>} : vector<256x128xbf16>, vector<128x128xbf16>, vector<256x128xf32> -> vector<256x128xf32>
    %13 = vector.shape_cast %12 : vector<256x128xf32> to vector<8x32x128xf32>
    %14 = vector.extract_strided_slice %13 {offsets = [0, 0, 0], sizes = [8, 16, 64], strides = [1, 1, 1]} : vector<8x32x128xf32> to vector<8x16x64xf32>
    %c15_i32 = arith.constant 15 : i32
    %15 = vector.broadcast %c15_i32 : i32 to vector<1x16x1xi32>
    %16 = arith.cmpi sle, %10, %15 : vector<1x16x1xi32>
    %cst_8 = arith.constant 0xFF800000 : f32
    %17 = vector.shape_cast %16 : vector<1x16x1xi1> to vector<1x16x1xi1>
    %18 = vector.broadcast %17 : vector<1x16x1xi1> to vector<8x16x64xi1>
    %19 = vector.broadcast %cst_8 : f32 to vector<8x16x64xf32>
    %20 = arith.select %18, %14, %19 : vector<8x16x64xi1>, vector<8x16x64xf32>
    %cst_9 = arith.constant dense<0xFF800000> : vector<8x64xf32>
    %21 = vector.multi_reduction <maximumf>, %20, %cst_9 [1] : vector<8x16x64xf32> to vector<8x64xf32>
    %c0_10 = arith.constant 0 : index
    %c128 = arith.constant 128 : index
    %22 = vector.load %arg4[%c0_10, %c128] : memref<128x1536xbf16, #tpu.memory_space<vmem>>, vector<128x128xbf16>
    %cst_11 = arith.constant dense<0.000000e+00> : vector<256x128xf32>
    %23 = tpu.matmul %6, %22, %cst_11 {dimension_numbers = #tpu.dot_dimension_numbers<[1], [0], [0], [1], [0, 0, 1, 1], [], []>} : vector<256x128xbf16>, vector<128x128xbf16>, vector<256x128xf32> -> vector<256x128xf32>
    %24 = vector.shape_cast %23 : vector<256x128xf32> to vector<8x32x128xf32>
    %25 = vector.extract_strided_slice %24 {offsets = [0, 0, 0], sizes = [8, 16, 64], strides = [1, 1, 1]} : vector<8x32x128xf32> to vector<8x16x64xf32>
    %26 = vector.extract_strided_slice %24 {offsets = [0, 1, 64], sizes = [8, 16, 64], strides = [1, 1, 1]} : vector<8x32x128xf32> to vector<8x16x64xf32>
    %27 = arith.addf %25, %26 : vector<8x16x64xf32>
    %c14_i32 = arith.constant 14 : i32
    %28 = vector.broadcast %c14_i32 : i32 to vector<1x16x1xi32>
    %29 = arith.cmpi sle, %10, %28 : vector<1x16x1xi32>
    %cst_12 = arith.constant 0xFF800000 : f32
    %30 = vector.shape_cast %29 : vector<1x16x1xi1> to vector<1x16x1xi1>
    %31 = vector.broadcast %30 : vector<1x16x1xi1> to vector<8x16x64xi1>
    %32 = vector.broadcast %cst_12 : f32 to vector<8x16x64xf32>
    %33 = arith.select %31, %27, %32 : vector<8x16x64xi1>, vector<8x16x64xf32>
    %cst_13 = arith.constant dense<0xFF800000> : vector<8x64xf32>
    %34 = vector.multi_reduction <maximumf>, %33, %cst_13 [1] : vector<8x16x64xf32> to vector<8x64xf32>
    %c0_14 = arith.constant 0 : index
    %c256 = arith.constant 256 : index
    %35 = vector.load %arg4[%c0_14, %c256] : memref<128x1536xbf16, #tpu.memory_space<vmem>>, vector<128x256xbf16>
    %cst_15 = arith.constant dense<0.000000e+00> : vector<256x256xf32>
    %36 = tpu.matmul %6, %35, %cst_15 {dimension_numbers = #tpu.dot_dimension_numbers<[1], [0], [0], [1], [0, 0, 1, 1], [], []>} : vector<256x128xbf16>, vector<128x256xbf16>, vector<256x256xf32> -> vector<256x256xf32>
    %37 = vector.shape_cast %36 : vector<256x256xf32> to vector<8x32x256xf32>
    %38 = vector.extract_strided_slice %37 {offsets = [0, 0, 0], sizes = [8, 16, 64], strides = [1, 1, 1]} : vector<8x32x256xf32> to vector<8x16x64xf32>
    %39 = vector.extract_strided_slice %37 {offsets = [0, 1, 64], sizes = [8, 16, 64], strides = [1, 1, 1]} : vector<8x32x256xf32> to vector<8x16x64xf32>
    %40 = arith.addf %38, %39 : vector<8x16x64xf32>
    %41 = vector.extract_strided_slice %37 {offsets = [0, 2, 128], sizes = [8, 16, 64], strides = [1, 1, 1]} : vector<8x32x256xf32> to vector<8x16x64xf32>
    %42 = arith.addf %40, %41 : vector<8x16x64xf32>
    %c13_i32 = arith.constant 13 : i32
    %43 = vector.broadcast %c13_i32 : i32 to vector<1x16x1xi32>
    %44 = arith.cmpi sle, %10, %43 : vector<1x16x1xi32>
    %cst_16 = arith.constant 0xFF800000 : f32
    %45 = vector.shape_cast %44 : vector<1x16x1xi1> to vector<1x16x1xi1>
    %46 = vector.broadcast %45 : vector<1x16x1xi1> to vector<8x16x64xi1>
    %47 = vector.broadcast %cst_16 : f32 to vector<8x16x64xf32>
    %48 = arith.select %46, %42, %47 : vector<8x16x64xi1>, vector<8x16x64xf32>
    %cst_17 = arith.constant dense<0xFF800000> : vector<8x64xf32>
    %49 = vector.multi_reduction <maximumf>, %48, %cst_17 [1] : vector<8x16x64xf32> to vector<8x64xf32>
    %c0_18 = arith.constant 0 : index
    %c512 = arith.constant 512 : index
    %50 = vector.load %arg4[%c0_18, %c512] : memref<128x1536xbf16, #tpu.memory_space<vmem>>, vector<128x384xbf16>
    %cst_19 = arith.constant dense<0.000000e+00> : vector<256x384xf32>
    %51 = tpu.matmul %6, %50, %cst_19 {dimension_numbers = #tpu.dot_dimension_numbers<[1], [0], [0], [1], [0, 0, 1, 1], [], []>} : vector<256x128xbf16>, vector<128x384xbf16>, vector<256x384xf32> -> vector<256x384xf32>
    %52 = vector.shape_cast %51 : vector<256x384xf32> to vector<8x32x384xf32>
    %53 = vector.extract_strided_slice %52 {offsets = [0, 0, 0], sizes = [8, 16, 64], strides = [1, 1, 1]} : vector<8x32x384xf32> to vector<8x16x64xf32>
    %54 = vector.extract_strided_slice %52 {offsets = [0, 1, 64], sizes = [8, 16, 64], strides = [1, 1, 1]} : vector<8x32x384xf32> to vector<8x16x64xf32>
    %55 = arith.addf %53, %54 : vector<8x16x64xf32>
    %56 = vector.extract_strided_slice %52 {offsets = [0, 2, 128], sizes = [8, 16, 64], strides = [1, 1, 1]} : vector<8x32x384xf32> to vector<8x16x64xf32>
    %57 = arith.addf %55, %56 : vector<8x16x64xf32>
    %58 = vector.extract_strided_slice %52 {offsets = [0, 3, 192], sizes = [8, 16, 64], strides = [1, 1, 1]} : vector<8x32x384xf32> to vector<8x16x64xf32>
    %59 = arith.addf %57, %58 : vector<8x16x64xf32>
    %60 = vector.extract_strided_slice %52 {offsets = [0, 4, 256], sizes = [8, 16, 64], strides = [1, 1, 1]} : vector<8x32x384xf32> to vector<8x16x64xf32>
    %61 = arith.addf %59, %60 : vector<8x16x64xf32>
    %c11_i32 = arith.constant 11 : i32
    %62 = vector.broadcast %c11_i32 : i32 to vector<1x16x1xi32>
    %63 = arith.cmpi sle, %10, %62 : vector<1x16x1xi32>
    %cst_20 = arith.constant 0xFF800000 : f32
    %64 = vector.shape_cast %63 : vector<1x16x1xi1> to vector<1x16x1xi1>
    %65 = vector.broadcast %64 : vector<1x16x1xi1> to vector<8x16x64xi1>
    %66 = vector.broadcast %cst_20 : f32 to vector<8x16x64xf32>
    %67 = arith.select %65, %61, %66 : vector<8x16x64xi1>, vector<8x16x64xf32>
    %cst_21 = arith.constant dense<0xFF800000> : vector<8x64xf32>
    %68 = vector.multi_reduction <maximumf>, %67, %cst_21 [1] : vector<8x16x64xf32> to vector<8x64xf32>
    %c0_22 = arith.constant 0 : index
    %c896 = arith.constant 896 : index
    %69 = vector.load %arg4[%c0_22, %c896] : memref<128x1536xbf16, #tpu.memory_space<vmem>>, vector<128x640xbf16>
    %cst_23 = arith.constant dense<0.000000e+00> : vector<256x640xf32>
    %70 = tpu.matmul %6, %69, %cst_23 {dimension_numbers = #tpu.dot_dimension_numbers<[1], [0], [0], [1], [0, 0, 1, 1], [], []>} : vector<256x128xbf16>, vector<128x640xbf16>, vector<256x640xf32> -> vector<256x640xf32>
    %71 = vector.shape_cast %70 : vector<256x640xf32> to vector<8x32x640xf32>
    %72 = vector.extract_strided_slice %71 {offsets = [0, 0, 0], sizes = [8, 16, 64], strides = [1, 1, 1]} : vector<8x32x640xf32> to vector<8x16x64xf32>
    %73 = vector.extract_strided_slice %71 {offsets = [0, 1, 64], sizes = [8, 16, 64], strides = [1, 1, 1]} : vector<8x32x640xf32> to vector<8x16x64xf32>
    %74 = arith.addf %72, %73 : vector<8x16x64xf32>
    %75 = vector.extract_strided_slice %71 {offsets = [0, 2, 128], sizes = [8, 16, 64], strides = [1, 1, 1]} : vector<8x32x640xf32> to vector<8x16x64xf32>
    %76 = arith.addf %74, %75 : vector<8x16x64xf32>
    %77 = vector.extract_strided_slice %71 {offsets = [0, 3, 192], sizes = [8, 16, 64], strides = [1, 1, 1]} : vector<8x32x640xf32> to vector<8x16x64xf32>
    %78 = arith.addf %76, %77 : vector<8x16x64xf32>
    %79 = vector.extract_strided_slice %71 {offsets = [0, 4, 256], sizes = [8, 16, 64], strides = [1, 1, 1]} : vector<8x32x640xf32> to vector<8x16x64xf32>
    %80 = arith.addf %78, %79 : vector<8x16x64xf32>
    %81 = vector.extract_strided_slice %71 {offsets = [0, 5, 320], sizes = [8, 16, 64], strides = [1, 1, 1]} : vector<8x32x640xf32> to vector<8x16x64xf32>
    %82 = arith.addf %80, %81 : vector<8x16x64xf32>
    %83 = vector.extract_strided_slice %71 {offsets = [0, 6, 384], sizes = [8, 16, 64], strides = [1, 1, 1]} : vector<8x32x640xf32> to vector<8x16x64xf32>
    %84 = arith.addf %82, %83 : vector<8x16x64xf32>
    %85 = vector.extract_strided_slice %71 {offsets = [0, 7, 448], sizes = [8, 16, 64], strides = [1, 1, 1]} : vector<8x32x640xf32> to vector<8x16x64xf32>
    %86 = arith.addf %84, %85 : vector<8x16x64xf32>
    %87 = vector.extract_strided_slice %71 {offsets = [0, 8, 512], sizes = [8, 16, 64], strides = [1, 1, 1]} : vector<8x32x640xf32> to vector<8x16x64xf32>
    %88 = arith.addf %86, %87 : vector<8x16x64xf32>
    %89 = vector.extract_strided_slice %71 {offsets = [0, 9, 576], sizes = [8, 16, 64], strides = [1, 1, 1]} : vector<8x32x640xf32> to vector<8x16x64xf32>
    %90 = arith.addf %88, %89 : vector<8x16x64xf32>
    %c6_i32 = arith.constant 6 : i32
    %91 = vector.broadcast %c6_i32 : i32 to vector<1x16x1xi32>
    %92 = arith.cmpi sle, %10, %91 : vector<1x16x1xi32>
    %cst_24 = arith.constant 0xFF800000 : f32
    %93 = vector.shape_cast %92 : vector<1x16x1xi1> to vector<1x16x1xi1>
    %94 = vector.broadcast %93 : vector<1x16x1xi1> to vector<8x16x64xi1>
    %95 = vector.broadcast %cst_24 : f32 to vector<8x16x64xf32>
    %96 = arith.select %94, %90, %95 : vector<8x16x64xi1>, vector<8x16x64xf32>
    %cst_25 = arith.constant dense<0xFF800000> : vector<8x64xf32>
    %97 = vector.multi_reduction <maximumf>, %96, %cst_25 [1] : vector<8x16x64xf32> to vector<8x64xf32>
    %98 = tpu.concatenate %21, %34, %49, %68, %97 in 1 : vector<8x64xf32>, vector<8x64xf32>, vector<8x64xf32>, vector<8x64xf32>, vector<8x64xf32> -> vector<8x320xf32>
    %c0_26 = arith.constant 0 : index
    %c0_27 = arith.constant 0 : index
    %99 = vector.load %arg13[%c0_26, %c0_27] : memref<8x320xf32, #tpu.memory_space<vmem>>, vector<8x320xf32>
    %100 = arith.maximumf %99, %98 : vector<8x320xf32>
    %c0_28 = arith.constant 0 : index
    %c0_29 = arith.constant 0 : index
    %101 = vector.load %arg13[%c0_28, %c0_29] : memref<8x320xf32, #tpu.memory_space<vmem>>, vector<8x320xf32>
    tpu.vector_store %arg13[%c0_28, %c0_29], %100 {strides = array<i32>} : memref<8x320xf32, #tpu.memory_space<vmem>>, vector<8x320xf32>,
    %c0_i32_30 = arith.constant 0 : i32
    %102 = arith.cmpi eq, %arg1, %c0_i32_30 : i32
    %103 = arith.extui %102 : i1 to i32
    %c0_i32_31 = arith.constant 0 : i32
    %104 = arith.cmpi ne, %103, %c0_i32_31 : i32
    scf.if %104 {
      %c0_32 = arith.constant 0 : index
      %c0_33 = arith.constant 0 : index
      %105 = vector.load %arg13[%c0_32, %c0_33] : memref<8x320xf32, #tpu.memory_space<vmem>>, vector<8x320xf32>
      %c0_34 = arith.constant 0 : index
      %c0_35 = arith.constant 0 : index
      %106 = vector.load %arg5[%c0_34, %c0_35] : memref<1x320xf32, #tpu.memory_space<vmem>>, vector<1x320xf32>
      %107 = vector.broadcast %106 : vector<1x320xf32> to vector<8x320xf32>
      %108 = arith.addf %105, %107 : vector<8x320xf32>
      %c0_36 = arith.constant 0 : index
      %c0_37 = arith.constant 0 : index
      %109 = vector.load %arg6[%c0_36, %c0_37] : memref<320x128xf32, #tpu.memory_space<vmem>>, vector<320x128xf32>
      %cst_38 = arith.constant dense<0.000000e+00> : vector<8x128xf32>
      %110 = tpu.matmul %108, %109, %cst_38 {dimension_numbers = #tpu.dot_dimension_numbers<[1], [0], [0], [1], [0, 0, 1, 1], [], []>} : vector<8x320xf32>, vector<320x128xf32>, vector<8x128xf32> -> vector<8x128xf32>
      %c0_39 = arith.constant 0 : index
      %c0_40 = arith.constant 0 : index
      %111 = vector.load %arg7[%c0_39, %c0_40] : memref<1x128xf32, #tpu.memory_space<vmem>>, vector<1x128xf32>
      %112 = vector.broadcast %111 : vector<1x128xf32> to vector<8x128xf32>
      %113 = arith.addf %110, %112 : vector<8x128xf32>
      %cst_41 = arith.constant 0.000000e+00 : f32
      %114 = vector.broadcast %cst_41 : f32 to vector<8x128xf32>
      %115 = arith.maximumf %113, %114 : vector<8x128xf32>
      %c0_42 = arith.constant 0 : index
      %c0_43 = arith.constant 0 : index
      %116 = vector.load %arg8[%c0_42, %c0_43] : memref<128x64xf32, #tpu.memory_space<vmem>>, vector<128x64xf32>
      %cst_44 = arith.constant dense<0.000000e+00> : vector<8x64xf32>
      %117 = tpu.matmul %115, %116, %cst_44 {dimension_numbers = #tpu.dot_dimension_numbers<[1], [0], [0], [1], [0, 0, 1, 1], [], []>} : vector<8x128xf32>, vector<128x64xf32>, vector<8x64xf32> -> vector<8x64xf32>
      %c0_45 = arith.constant 0 : index
      %c0_46 = arith.constant 0 : index
      %118 = vector.load %arg9[%c0_45, %c0_46] : memref<1x64xf32, #tpu.memory_space<vmem>>, vector<1x64xf32>
      %119 = vector.broadcast %118 : vector<1x64xf32> to vector<8x64xf32>
      %120 = arith.addf %117, %119 : vector<8x64xf32>
      %cst_47 = arith.constant 0.000000e+00 : f32
      %121 = vector.broadcast %cst_47 : f32 to vector<8x64xf32>
      %122 = arith.maximumf %120, %121 : vector<8x64xf32>
      %c0_48 = arith.constant 0 : index
      %c0_49 = arith.constant 0 : index
      %123 = vector.load %arg10[%c0_48, %c0_49] : memref<64x128xf32, #tpu.memory_space<vmem>>, vector<64x128xf32>
      %cst_50 = arith.constant dense<0.000000e+00> : vector<8x128xf32>
      %124 = tpu.matmul %122, %123, %cst_50 {dimension_numbers = #tpu.dot_dimension_numbers<[1], [0], [0], [1], [0, 0, 1, 1], [], []>} : vector<8x64xf32>, vector<64x128xf32>, vector<8x128xf32> -> vector<8x128xf32>
      %c0_51 = arith.constant 0 : index
      %c0_52 = arith.constant 0 : index
      %125 = vector.load %arg11[%c0_51, %c0_52] : memref<1x128xf32, #tpu.memory_space<vmem>>, vector<1x128xf32>
      %126 = vector.broadcast %125 : vector<1x128xf32> to vector<8x128xf32>
      %127 = arith.addf %124, %126 : vector<8x128xf32>
      %128 = tpu.iota {dimensions = array<i32: 1>} : vector<8x128xi32>
      %cst_53 = arith.constant 0.000000e+00 : f32
      %129 = vector.broadcast %cst_53 : f32 to vector<8x128xf32>
      %130 = arith.subf %129, %127 : vector<8x128xf32>
      %131 = math.exp %130 : vector<8x128xf32>
      %cst_54 = arith.constant 1.000000e+00 : f32
      %132 = vector.broadcast %cst_54 : f32 to vector<8x128xf32>
      %133 = arith.addf %132, %131 : vector<8x128xf32>
      %cst_55 = arith.constant 1.000000e+00 : f32
      %134 = vector.broadcast %cst_55 : f32 to vector<8x128xf32>
      %135 = arith.divf %134, %133 : vector<8x128xf32>
      %c0_i32_56 = arith.constant 0 : i32
      %136 = vector.broadcast %c0_i32_56 : i32 to vector<8x128xi32>
      %137 = arith.cmpi eq, %128, %136 : vector<8x128xi32>
      %138 = arith.select %137, %135, %127 : vector<8x128xi1>, vector<8x128xf32>
      %c0_57 = arith.constant 0 : index
      %c0_58 = arith.constant 0 : index
      %139 = vector.load %arg12[%c0_57, %c0_58] : memref<8x128xf32, #tpu.memory_space<vmem>>, vector<8x128xf32>
      tpu.vector_store %arg12[%c0_57, %c0_58], %138 {strides = array<i32>} : memref<8x128xf32, #tpu.memory_space<vmem>>, vector<8x128xf32>,
    } else {
    }
    return
  }
  func.func @transform_0(%arg0: i32, %arg1: i32) -> (i32, i32, i32) {
    %c0_i32 = arith.constant 0 : i32
    %c0_i32_0 = arith.constant 0 : i32
    return %arg0, %arg1, %c0_i32 : i32, i32, i32
  }
  func.func @transform_1(%arg0: i32, %arg1: i32) -> (i32, i32, i32) {
    %c0_i32 = arith.constant 0 : i32
    %c0_i32_0 = arith.constant 0 : i32
    return %arg0, %arg1, %c0_i32 : i32, i32, i32
  }
  func.func @transform_2(%arg0: i32, %arg1: i32) -> (i32, i32) {
    %c0_i32 = arith.constant 0 : i32
    %c0_i32_0 = arith.constant 0 : i32
    %c0_i32_1 = arith.constant 0 : i32
    return %c0_i32, %c0_i32_0 : i32, i32
  }
  func.func @transform_3(%arg0: i32, %arg1: i32) -> (i32, i32) {
    %c0_i32 = arith.constant 0 : i32
    %c0_i32_0 = arith.constant 0 : i32
    %c0_i32_1 = arith.constant 0 : i32
    return %c0_i32, %c0_i32_0 : i32, i32
  }
  func.func @transform_4(%arg0: i32, %arg1: i32) -> (i32, i32) {
    %c0_i32 = arith.constant 0 : i32
    %c0_i32_0 = arith.constant 0 : i32
    %c0_i32_1 = arith.constant 0 : i32
    return %c0_i32, %c0_i32_0 : i32, i32
  }
  func.func @transform_5(%arg0: i32, %arg1: i32) -> (i32, i32) {
    %c0_i32 = arith.constant 0 : i32
    %c0_i32_0 = arith.constant 0 : i32
    %c0_i32_1 = arith.constant 0 : i32
    return %c0_i32, %c0_i32_0 : i32, i32
  }
  func.func @transform_6(%arg0: i32, %arg1: i32) -> (i32, i32) {
    %c0_i32 = arith.constant 0 : i32
    %c0_i32_0 = arith.constant 0 : i32
    %c0_i32_1 = arith.constant 0 : i32
    return %c0_i32, %c0_i32_0 : i32, i32
  }
  func.func @transform_7(%arg0: i32, %arg1: i32) -> (i32, i32) {
    %c0_i32 = arith.constant 0 : i32
    %c0_i32_0 = arith.constant 0 : i32
    %c0_i32_1 = arith.constant 0 : i32
    return %c0_i32, %c0_i32_0 : i32, i32
  }
  func.func @transform_8(%arg0: i32, %arg1: i32) -> (i32, i32) {
    %c0_i32 = arith.constant 0 : i32
    %c0_i32_0 = arith.constant 0 : i32
    %c0_i32_1 = arith.constant 0 : i32
    return %c0_i32, %c0_i32_0 : i32, i32
  }
  func.func @transform_9(%arg0: i32, %arg1: i32) -> (i32, i32) {
    %c0_i32 = arith.constant 0 : i32
    %c0_i32_0 = arith.constant 0 : i32
    %c0_i32_1 = arith.constant 0 : i32
    return %c0_i32, %c0_i32_0 : i32, i32
  }
  func.func @transform_10(%arg0: i32, %arg1: i32) -> (i32, i32) {
    %c0_i32 = arith.constant 0 : i32
    %c0_i32_0 = arith.constant 0 : i32
    return %arg0, %c0_i32 : i32, i32
  }
}

</mosaic_0001>

<llo_original>
// kernel: tpu_custom_call.1
$region0: #{tpu_custom_call.1}
  #allocation0 [shape = 'u32[]', space=smem, size = 0x4, offset = 0x4, fixed_abs, tag = 'smem constant byte address 0x4 - core index']
  #allocation1 [shape = 'u32[144,128]{1,0:T(1,128)}', space=vmem, size = 0x12000, scoped, tag = 'internal scratch']
  #allocation2 [shape = 'f32[8,320]{1,0:T(8,128)}', space=vmem, size = 0x3000, scoped, tag = 'scratch operand']
  %s0 = inlined_call_operand.vmem [shape: bf16[8,16,128], index: 0, kind: input, shape index: {}]
  %s1 = inlined_call_operand.vmem [shape: bf16[8,16,128], index: 1, kind: input, shape index: {}]
  %s2 = inlined_call_operand.hbm [shape: bf16[128,1536], index: 2, kind: input, shape index: {}]
  %s3 = inlined_call_operand.vmem [shape: f32[1,320], index: 3, kind: input, shape index: {}]
  %s4 = inlined_call_operand.hbm [shape: f32[320,128], index: 4, kind: input, shape index: {}]
  %s5 = inlined_call_operand.vmem [shape: f32[1,128], index: 5, kind: input, shape index: {}]
  %s6 = inlined_call_operand.vmem [shape: f32[128,64], index: 6, kind: input, shape index: {}]
  %s7 = inlined_call_operand.vmem [shape: f32[1,64], index: 7, kind: input, shape index: {}]
  %s8 = inlined_call_operand.vmem [shape: f32[64,128], index: 8, kind: input, shape index: {}]
  %s9 = inlined_call_operand.vmem [shape: f32[1,128], index: 9, kind: input, shape index: {}]
  %s10 = inlined_call_operand.hbm [shape: f32[8,128], index: 10, kind: output, shape index: {}]
  %s11 = sld [smem:[#allocation0]]
  $region66: #{tpu_custom_call.1} parent=0
    _
  %s13 = ssub.s32 1, %s11
  %s14 = scalar_select 0, %s13, %s11
  $region1: #{tpu_custom_call.1} parent=0
    #allocation3 [shape = 'u8[393216]{0}', space=vmem, size = 0x60000, scoped, tag = 'input window, operand 2, single buffered']
    #allocation4 [shape = 's32[1]{0}', space=sflag, size = 0x4, scoped, tag = 'scoped memory for tpu_custom_call.1']
    #allocation5 [shape = 's32[1]{0}', space=sflag, size = 0x4, scoped, tag = 'scoped memory for tpu_custom_call.1']
    #allocation6 [shape = 'u8[163840]{0}', space=vmem, size = 0x28000, scoped, tag = 'input window, operand 4, single buffered']
    #allocation7 [shape = 's32[1]{0}', space=sflag, size = 0x4, scoped, tag = 'scoped memory for tpu_custom_call.1']
    #allocation8 [shape = 'u8[4096]{0}', space=vmem, size = 0x1000, scoped, tag = 'output window, operand 0, single buffered']
    %15 = vsyncpa [#allocation4], 0
    %16 = vsyncpa [#allocation7], 0
    %17 = vsyncpa [#allocation5], 0
    // Predicated region
    $region2: #{tpu_custom_call.1} parent=1 // pred_check
      _
    $region3: #{tpu_custom_call.1} parent=1 // pred_check_branch
      %19 = sbr.rel (0) target = $region5
    $region4: #{tpu_custom_call.1} parent=1 // pred_region
      _
    $region5: #{tpu_custom_call.1} parent=1 // pred_fallthru
      _
    // Predicated region
    $region6: #{tpu_custom_call.1} parent=1 // pred_check
      _
    $region7: #{tpu_custom_call.1} parent=1 // pred_check_branch
      %21 = sbr.rel (0) target = $region9
    $region8: #{tpu_custom_call.1} parent=1 // pred_region
      _
    $region9: #{tpu_custom_call.1} parent=1 // pred_fallthru
      _
    // Predicated region
    $region10: #{tpu_custom_call.1} parent=1 // pred_check
      _
    $region11: #{tpu_custom_call.1} parent=1 // pred_check_branch
      %23 = sbr.rel (0) target = $region13
    $region12: #{tpu_custom_call.1} parent=1 // pred_region
      %s25 = ssub.s32 12288, 12288
      %26 = vsyncadd [#allocation4], %s25
      %s27 = sshll.u32 [#allocation3], 4
      %s28 = int_to_ptr.vmem [resolvable:$true] %s27
      %33 = dma.hbm_to_vmem [thread:$0]  %s2, 12288, %s28, [#allocation4], 768, 768, 48
    $region13: #{tpu_custom_call.1} parent=1 // pred_fallthru
      _
    // Predicated region
    $region14: #{tpu_custom_call.1} parent=1 // pred_check
      _
    $region15: #{tpu_custom_call.1} parent=1 // pred_check_branch
      %35 = sbr.rel (0) target = $region17
    $region16: #{tpu_custom_call.1} parent=1 // pred_region
      _
    $region17: #{tpu_custom_call.1} parent=1 // pred_fallthru
      _
    // Predicated region
    $region18: #{tpu_custom_call.1} parent=1 // pred_check
      _
    $region19: #{tpu_custom_call.1} parent=1 // pred_check_branch
      %37 = sbr.rel (0) target = $region21
    $region20: #{tpu_custom_call.1} parent=1 // pred_region
      %s39 = ssub.s32 5120, 5120
      %40 = vsyncadd [#allocation7], %s39
      %s41 = sshll.u32 [#allocation6], 4
      %s42 = int_to_ptr.vmem [resolvable:$true] %s41
      %47 = dma.hbm_to_vmem [thread:$0]  %s4, 5120, %s42, [#allocation7], 128, 128, 8
    $region21: #{tpu_custom_call.1} parent=1 // pred_fallthru
      _
    // Predicated region
    $region22: #{tpu_custom_call.1} parent=1 // pred_check
      _
    $region23: #{tpu_custom_call.1} parent=1 // pred_check_branch
      %49 = sbr.rel (0) target = $region25
    $region24: #{tpu_custom_call.1} parent=1 // pred_region
      _
    $region25: #{tpu_custom_call.1} parent=1 // pred_fallthru
      _
    // Predicated region
    $region26: #{tpu_custom_call.1} parent=1 // pred_check
      _
    $region27: #{tpu_custom_call.1} parent=1 // pred_check_branch
      %51 = sbr.rel (0) target = $region29
    $region28: #{tpu_custom_call.1} parent=1 // pred_region
      _
    $region29: #{tpu_custom_call.1} parent=1 // pred_fallthru
      _
    // Predicated region
    $region30: #{tpu_custom_call.1} parent=1 // pred_check
      _
    $region31: #{tpu_custom_call.1} parent=1 // pred_check_branch
      %53 = sbr.rel (0) target = $region33
    $region32: #{tpu_custom_call.1} parent=1 // pred_region
      _
    $region33: #{tpu_custom_call.1} parent=1 // pred_fallthru
      _
    // Predicated region
    $region34: #{tpu_custom_call.1} parent=1 // pred_check
      _
    $region35: #{tpu_custom_call.1} parent=1 // pred_check_branch
      %55 = sbr.rel (0) target = $region37
    $region36: #{tpu_custom_call.1} parent=1 // pred_region
      _
    $region37: #{tpu_custom_call.1} parent=1 // pred_fallthru
      _
    // Predicated region
    $region38: #{tpu_custom_call.1} parent=1 // pred_check
      _
    $region39: #{tpu_custom_call.1} parent=1 // pred_check_branch
      %57 = sbr.rel (0) target = $region41
    $region40: #{tpu_custom_call.1} parent=1 // pred_region
      _
    $region41: #{tpu_custom_call.1} parent=1 // pred_fallthru
      _
    // Predicated region
    $region42: #{tpu_custom_call.1} parent=1 // pred_check
      _
    $region43: #{tpu_custom_call.1} parent=1 // pred_check_branch
      %59 = sbr.rel (0) target = $region45
    $region44: #{tpu_custom_call.1} parent=1 // pred_region
      %60 = dma.done [#allocation4], 12288
    $region45: #{tpu_custom_call.1} parent=1 // pred_fallthru
      _
    // Predicated region
    $region46: #{tpu_custom_call.1} parent=1 // pred_check
      _
    $region47: #{tpu_custom_call.1} parent=1 // pred_check_branch
      %62 = sbr.rel (0) target = $region49
    $region48: #{tpu_custom_call.1} parent=1 // pred_region
      %63 = dma.done [#allocation7], 5120
    $region49: #{tpu_custom_call.1} parent=1 // pred_fallthru
      _
    %p65 = scmp.eq.s32.totalorder 0, 0
    // Predicated region
    $region50: #{tpu_custom_call.1} parent=1 // pred_check
      %p66 = pneg %p65
    $region51: #{tpu_custom_call.1} parent=1 // pred_check_branch
      %68 = sbr.rel (%p66) target = $region53
    $region52: #{tpu_custom_call.1} parent=1 // pred_region
      %69 = vst [vmem:[#allocation2] sm:$0xff] -inf
      %70 = vst [vmem:[#allocation2 + $0x8] sm:$0xff] -inf
      %vm71 = vcmask 523264
      %72 = vst.msk [vmem:[#allocation2 + $0x10] sm:$0xff] %vm71, -inf
    $region53: #{tpu_custom_call.1} parent=1 // pred_fallthru
      _
    %v73 = vld [vmem:[%s0] sm:$0xf]
    %v74 = vld [vmem:[%s0 + $0x4] sm:$0xf]
    %v75 = vld [vmem:[%s0 + $0x8] sm:$0xf]
    %v76 = vld [vmem:[%s0 + $0xc] sm:$0xf]
    %v77 = vld [vmem:[%s0 + $0x10] sm:$0xf]
    %v78 = vld [vmem:[%s0 + $0x14] sm:$0xf]
    %v79 = vld [vmem:[%s0 + $0x18] sm:$0xf]
    %v80 = vld [vmem:[%s0 + $0x1c] sm:$0xf]
    %v81 = vld [vmem:[%s0 + $0x20] sm:$0xf]
    %v82 = vld [vmem:[%s0 + $0x24] sm:$0xf]
    %v83 = vld [vmem:[%s0 + $0x28] sm:$0xf]
    %v84 = vld [vmem:[%s0 + $0x2c] sm:$0xf]
    %v85 = vld [vmem:[%s0 + $0x30] sm:$0xf]
    %v86 = vld [vmem:[%s0 + $0x34] sm:$0xf]
    %v87 = vld [vmem:[%s0 + $0x38] sm:$0xf]
    %v88 = vld [vmem:[%s0 + $0x3c] sm:$0xf]
    %v89 = vld [vmem:[%s1] sm:$0xf]
    %v90 = vld [vmem:[%s1 + $0x4] sm:$0xf]
    %v91 = vld [vmem:[%s1 + $0x8] sm:$0xf]
    %v92 = vld [vmem:[%s1 + $0xc] sm:$0xf]
    %v93 = vld [vmem:[%s1 + $0x10] sm:$0xf]
    %v94 = vld [vmem:[%s1 + $0x14] sm:$0xf]
    %v95 = vld [vmem:[%s1 + $0x18] sm:$0xf]
    %v96 = vld [vmem:[%s1 + $0x1c] sm:$0xf]
    %v97 = vld [vmem:[%s1 + $0x20] sm:$0xf]
    %v98 = vld [vmem:[%s1 + $0x24] sm:$0xf]
    %v99 = vld [vmem:[%s1 + $0x28] sm:$0xf]
    %v100 = vld [vmem:[%s1 + $0x2c] sm:$0xf]
    %v101 = vld [vmem:[%s1 + $0x30] sm:$0xf]
    %v102 = vld [vmem:[%s1 + $0x34] sm:$0xf]
    %v103 = vld [vmem:[%s1 + $0x38] sm:$0xf]
    %v104 = vld [vmem:[%s1 + $0x3c] sm:$0xf]
    %v121 = vunpack.c.l.b16 %v73
    %v122 = vunpack.c.l.b16 %v74
    %v123 = vunpack.c.l.b16 %v75
    %v124 = vunpack.c.l.b16 %v76
    %v125 = vunpack.c.l.b16 %v77
    %v126 = vunpack.c.l.b16 %v78
    %v127 = vunpack.c.l.b16 %v79
    %v128 = vunpack.c.l.b16 %v80
    %v129 = vunpack.c.l.b16 %v81
    %v130 = vunpack.c.l.b16 %v82
    %v131 = vunpack.c.l.b16 %v83
    %v132 = vunpack.c.l.b16 %v84
    %v133 = vunpack.c.l.b16 %v85
    %v134 = vunpack.c.l.b16 %v86
    %v135 = vunpack.c.l.b16 %v87
    %v136 = vunpack.c.l.b16 %v88
    %v137 = vpack.c.b16 %v122, %v121
    %v138 = vpack.c.b16 %v124, %v123
    %v139 = vpack.c.b16 %v126, %v125
    %v140 = vpack.c.b16 %v128, %v127
    %v141 = vpack.c.b16 %v130, %v129
    %v142 = vpack.c.b16 %v132, %v131
    %v143 = vpack.c.b16 %v134, %v133
    %v144 = vpack.c.b16 %v136, %v135
    %v169 = vunpack.c.l.b16 %v89
    %v170 = vunpack.c.l.b16 %v90
    %v171 = vunpack.c.l.b16 %v91
    %v172 = vunpack.c.l.b16 %v92
    %v173 = vunpack.c.l.b16 %v93
    %v174 = vunpack.c.l.b16 %v94
    %v175 = vunpack.c.l.b16 %v95
    %v176 = vunpack.c.l.b16 %v96
    %v177 = vunpack.c.l.b16 %v97
    %v178 = vunpack.c.l.b16 %v98
    %v179 = vunpack.c.l.b16 %v99
    %v180 = vunpack.c.l.b16 %v100
    %v181 = vunpack.c.l.b16 %v101
    %v182 = vunpack.c.l.b16 %v102
    %v183 = vunpack.c.l.b16 %v103
    %v184 = vunpack.c.l.b16 %v104
    %v185 = vpack.c.b16 %v170, %v169
    %v186 = vpack.c.b16 %v172, %v171
    %v187 = vpack.c.b16 %v174, %v173
    %v188 = vpack.c.b16 %v176, %v175
    %v189 = vpack.c.b16 %v178, %v177
    %v190 = vpack.c.b16 %v180, %v179
    %v191 = vpack.c.b16 %v182, %v181
    %v192 = vpack.c.b16 %v184, %v183
    %v201 = vlaneseq
    %v202 = vshrl.u32 %v201, 7
    %v203 = vadd.s32 %v202, 8
    %s204 = smul.u32 0, 16
    %v205 = vstv %s204
    %v206 = vadd.s32 %v202, %v205
    %v207 = vadd.s32 %v203, %v205
    %v208 = vld [vmem:[#allocation3] sm:$0xf]
    %v209 = vld [vmem:[#allocation3 + $0x30] sm:$0xf]
    %v210 = vld [vmem:[#allocation3 + $0x60] sm:$0xf]
    %v211 = vld [vmem:[#allocation3 + $0x90] sm:$0xf]
    %v212 = vld [vmem:[#allocation3 + $0xc0] sm:$0xf]
    %v213 = vld [vmem:[#allocation3 + $0xf0] sm:$0xf]
    %v214 = vld [vmem:[#allocation3 + $0x120] sm:$0xf]
    %v215 = vld [vmem:[#allocation3 + $0x150] sm:$0xf]
    %v216 = vld [vmem:[#allocation3 + $0x180] sm:$0xf]
    %v217 = vld [vmem:[#allocation3 + $0x1b0] sm:$0xf]
    %v218 = vld [vmem:[#allocation3 + $0x1e0] sm:$0xf]
    %v219 = vld [vmem:[#allocation3 + $0x210] sm:$0xf]
    %v220 = vld [vmem:[#allocation3 + $0x240] sm:$0xf]
    %v221 = vld [vmem:[#allocation3 + $0x270] sm:$0xf]
    %v222 = vld [vmem:[#allocation3 + $0x2a0] sm:$0xf]
    %v223 = vld [vmem:[#allocation3 + $0x2d0] sm:$0xf]
    %v240 = vunpack.c.l.b16 %v208
    %v241 = vunpack.c.l.b16 %v209
    %v242 = vunpack.c.l.b16 %v210
    %v243 = vunpack.c.l.b16 %v211
    %v244 = vunpack.c.l.b16 %v212
    %v245 = vunpack.c.l.b16 %v213
    %v246 = vunpack.c.l.b16 %v214
    %v247 = vunpack.c.l.b16 %v215
    %v248 = vunpack.c.l.b16 %v216
    %v249 = vunpack.c.l.b16 %v217
    %v250 = vunpack.c.l.b16 %v218
    %v251 = vunpack.c.l.b16 %v219
    %v252 = vunpack.c.l.b16 %v220
    %v253 = vunpack.c.l.b16 %v221
    %v254 = vunpack.c.l.b16 %v222
    %v255 = vunpack.c.l.b16 %v223
    %v256 = vpack.c.b16 %v241, %v240
    %v257 = vpack.c.b16 %v243, %v242
    %v258 = vpack.c.b16 %v245, %v244
    %v259 = vpack.c.b16 %v247, %v246
    %v260 = vpack.c.b16 %v249, %v248
    %v261 = vpack.c.b16 %v251, %v250
    %v262 = vpack.c.b16 %v253, %v252
    %v263 = vpack.c.b16 %v255, %v254
    %272 = vmatprep.subr.bf16.mxu0 0
    %273 = vmatpush1.bf16.msra.mxu0 %v256
    %274 = vmatprep.subr.bf16.mxu0 0
    %275 = vmatpush1.bf16.msra.mxu0 %v257
    %276 = vmatprep.subr.bf16.mxu0 0
    %277 = vmatpush1.bf16.msra.mxu0 %v258
    %278 = vmatprep.subr.bf16.mxu0 0
    %279 = vmatpush1.bf16.msra.mxu0 %v259
    %280 = vmatprep.subr.bf16.mxu0 0
    %281 = vmatpush1.bf16.msra.mxu0 %v260
    %282 = vmatprep.subr.bf16.mxu0 0
    %283 = vmatpush1.bf16.msra.mxu0 %v261
    %284 = vmatprep.subr.bf16.mxu0 0
    %285 = vmatpush1.bf16.msra.mxu0 %v262
    %286 = vmatprep.subr.bf16.mxu0 0
    %287 = vmatpush1.bf16.msra.mxu0 %v263
    %288 = vmatprep.subr.bf16.mxu0 0
    %289 = vmatpush1.bf16.msra.mxu0 0
    %290 = vmatprep.subr.bf16.mxu0 0
    %291 = vmatpush1.bf16.msra.mxu0 0
    %292 = vmatprep.subr.bf16.mxu0 0
    %293 = vmatpush1.bf16.msra.mxu0 0
    %294 = vmatprep.subr.bf16.mxu0 0
    %295 = vmatpush1.bf16.msra.mxu0 0
    %296 = vmatprep.subr.bf16.mxu0 0
    %297 = vmatpush1.bf16.msra.mxu0 0
    %298 = vmatprep.subr.bf16.mxu0 0
    %299 = vmatpush1.bf16.msra.mxu0 0
    %300 = vmatprep.subr.bf16.mxu0 0
    %301 = vmatpush1.bf16.msra.mxu0 0
    %302 = vmatprep.subr.bf16.mxu0 0
    %303 = vmatpush1.bf16.msra.mxu0 0
    %304 = vmatprep.mubr.bf16.mxu0 0
    %305 = vmatmul.mubr.bf16.gmra.mrb[0].mxu0 %v137
    %v306 = vpop.f32.mrb[0].mxu0
    %v307 = vadd.f32 0.0, %v306
    %v308 = vpop.f32.mrb[0].mxu0
    %v309 = vpop.f32.mrb[0].mxu0
    %v310 = vadd.f32 0.0, %v309
    %v311 = vpop.f32.mrb[0].mxu0
    %312 = vmatprep.mubr.bf16.mxu0 0
    %313 = vmatmul.mubr.bf16.gmra.mrb[0].mxu0 %v185
    %v314 = vpop.f32.mrb[0].mxu0
    %v315 = vpop.f32.mrb[0].mxu0
    %v316 = vpop.f32.mrb[0].mxu0
    %v317 = vpop.f32.mrb[0].mxu0
    %318 = vmatprep.mubr.bf16.mxu0 0
    %319 = vmatmul.mubr.bf16.gmra.mrb[0].mxu0 %v138
    %v320 = vpop.f32.mrb[0].mxu0
    %v321 = vadd.f32 0.0, %v320
    %v322 = vpop.f32.mrb[0].mxu0
    %v323 = vpop.f32.mrb[0].mxu0
    %v324 = vadd.f32 0.0, %v323
    %v325 = vpop.f32.mrb[0].mxu0
    %326 = vmatprep.mubr.bf16.mxu0 0
    %327 = vmatmul.mubr.bf16.gmra.mrb[0].mxu0 %v186
    %v328 = vpop.f32.mrb[0].mxu0
    %v329 = vpop.f32.mrb[0].mxu0
    %v330 = vpop.f32.mrb[0].mxu0
    %v331 = vpop.f32.mrb[0].mxu0
    %332 = vmatprep.mubr.bf16.mxu0 0
    %333 = vmatmul.mubr.bf16.gmra.mrb[0].mxu0 %v139
    %v334 = vpop.f32.mrb[0].mxu0
    %v335 = vadd.f32 0.0, %v334
    %v336 = vpop.f32.mrb[0].mxu0
    %v337 = vpop.f32.mrb[0].mxu0
    %v338 = vadd.f32 0.0, %v337
    %v339 = vpop.f32.mrb[0].mxu0
    %340 = vmatprep.mubr.bf16.mxu0 0
    %341 = vmatmul.mubr.bf16.gmra.mrb[0].mxu0 %v187
    %v342 = vpop.f32.mrb[0].mxu0
    %v343 = vpop.f32.mrb[0].mxu0
    %v344 = vpop.f32.mrb[0].mxu0
    %v345 = vpop.f32.mrb[0].mxu0
    %346 = vmatprep.mubr.bf16.mxu0 0
    %347 = vmatmul.mubr.bf16.gmra.mrb[0].mxu0 %v140
    %v348 = vpop.f32.mrb[0].mxu0
    %v349 = vadd.f32 0.0, %v348
    %v350 = vpop.f32.mrb[0].mxu0
    %v351 = vpop.f32.mrb[0].mxu0
    %v352 = vadd.f32 0.0, %v351
    %v353 = vpop.f32.mrb[0].mxu0
    %354 = vmatprep.mubr.bf16.mxu0 0
    %355 = vmatmul.mubr.bf16.gmra.mrb[0].mxu0 %v188
    %v356 = vpop.f32.mrb[0].mxu0
    %v357 = vpop.f32.mrb[0].mxu0
    %v358 = vpop.f32.mrb[0].mxu0
    %v359 = vpop.f32.mrb[0].mxu0
    %360 = vmatprep.mubr.bf16.mxu0 0
    %361 = vmatmul.mubr.bf16.gmra.mrb[0].mxu0 %v141
    %v362 = vpop.f32.mrb[0].mxu0
    %v363 = vadd.f32 0.0, %v362
    %v364 = vpop.f32.mrb[0].mxu0
    %v365 = vpop.f32.mrb[0].mxu0
    %v366 = vadd.f32 0.0, %v365
    %v367 = vpop.f32.mrb[0].mxu0
    %368 = vmatprep.mubr.bf16.mxu0 0
    %369 = vmatmul.mubr.bf16.gmra.mrb[0].mxu0 %v189
    %v370 = vpop.f32.mrb[0].mxu0
    %v371 = vpop.f32.mrb[0].mxu0
    %v372 = vpop.f32.mrb[0].mxu0
    %v373 = vpop.f32.mrb[0].mxu0
    %374 = vmatprep.mubr.bf16.mxu0 0
    %375 = vmatmul.mubr.bf16.gmra.mrb[0].mxu0 %v142
    %v376 = vpop.f32.mrb[0].mxu0
    %v377 = vadd.f32 0.0, %v376
    %v378 = vpop.f32.mrb[0].mxu0
    %v379 = vpop.f32.mrb[0].mxu0
    %v380 = vadd.f32 0.0, %v379
    %v381 = vpop.f32.mrb[0].mxu0
    %382 = vmatprep.mubr.bf16.mxu0 0
    %383 = vmatmul.mubr.bf16.gmra.mrb[0].mxu0 %v190
    %v384 = vpop.f32.mrb[0].mxu0
    %v385 = vpop.f32.mrb[0].mxu0
    %v386 = vpop.f32.mrb[0].mxu0
    %v387 = vpop.f32.mrb[0].mxu0
    %388 = vmatprep.mubr.bf16.mxu0 0
    %389 = vmatmul.mubr.bf16.gmra.mrb[0].mxu0 %v143
    %v390 = vpop.f32.mrb[0].mxu0
    %v391 = vadd.f32 0.0, %v390
    %v392 = vpop.f32.mrb[0].mxu0
    %v393 = vpop.f32.mrb[0].mxu0
    %v394 = vadd.f32 0.0, %v393
    %v395 = vpop.f32.mrb[0].mxu0
    %396 = vmatprep.mubr.bf16.mxu0 0
    %397 = vmatmul.mubr.bf16.gmra.mrb[0].mxu0 %v191
    %v398 = vpop.f32.mrb[0].mxu0
    %v399 = vpop.f32.mrb[0].mxu0
    %v400 = vpop.f32.mrb[0].mxu0
    %v401 = vpop.f32.mrb[0].mxu0
    %402 = vmatprep.mubr.bf16.mxu0 0
    %403 = vmatmul.mubr.bf16.gmra.mrb[0].mxu0 %v144
    %v404 = vpop.f32.mrb[0].mxu0
    %v405 = vadd.f32 0.0, %v404
    %v406 = vpop.f32.mrb[0].mxu0
    %v407 = vpop.f32.mrb[0].mxu0
    %v408 = vadd.f32 0.0, %v407
    %v409 = vpop.f32.mrb[0].mxu0
    %410 = vmatprep.mubr.bf16.mxu0 0
    %411 = vmatmul.mubr.bf16.gmra.mrb[0].mxu0 %v192
    %v412 = vpop.f32.mrb[0].mxu0
    %v413 = vpop.f32.mrb[0].mxu0
    %v414 = vpop.f32.mrb[0].mxu0
    %v415 = vpop.f32.mrb[0].mxu0
    %416 = vdwg.mxu0
    %vm417 = vcmp.le.s32.totalorder %v206, 15
    %vm418 = vcmp.le.s32.totalorder %v207, 15
    %v419 = vsel %vm417, 1, 0
    %v420 = vsel %vm418, 1, 0
    %vm421 = vcmp.eq.s32.totalorder %v419, 1
    %vm422 = vcmp.eq.s32.totalorder %v420, 1
    %v423 = vsel %vm421, %v307, -inf
    %v424 = vsel %vm422, %v310, -inf
    %v425 = vsel %vm421, %v321, -inf
    %v426 = vsel %vm422, %v324, -inf
    %v427 = vsel %vm421, %v335, -inf
    %v428 = vsel %vm422, %v338, -inf
    %v429 = vsel %vm421, %v349, -inf
    %v430 = vsel %vm422, %v352, -inf
    %v431 = vsel %vm421, %v363, -inf
    %v432 = vsel %vm422, %v366, -inf
    %v433 = vsel %vm421, %v377, -inf
    %v434 = vsel %vm422, %v380, -inf
    %v435 = vsel %vm421, %v391, -inf
    %v436 = vsel %vm422, %v394, -inf
    %v437 = vsel %vm421, %v405, -inf
    %v438 = vsel %vm422, %v408, -inf
    %vm439 = vcmask 523264
    %v440 = vsel %vm439, %v423, -inf
    %v441 = vsel %vm439, %v424, -inf
    %v442 = vmax.f32 %v440, %v441
    %v443 = vrot.slane %v442, 4
    %v444 = vmax.f32 %v442, %v443
    %v445 = vrot.slane %v444, 2
    %v446 = vmax.f32 %v444, %v445
    %v447 = vrot.slane %v446, 1
    %v448 = vmax.f32 %v446, %v447
    %v449 = vsel %vm439, %v425, -inf
    %v450 = vsel %vm439, %v426, -inf
    %v451 = vmax.f32 %v449, %v450
    %v452 = vrot.slane %v451, 4
    %v453 = vmax.f32 %v451, %v452
    %v454 = vrot.slane %v453, 2
    %v455 = vmax.f32 %v453, %v454
    %v456 = vrot.slane %v455, 1
    %v457 = vmax.f32 %v455, %v456
    %v458 = vsel %vm439, %v427, -inf
    %v459 = vsel %vm439, %v428, -inf
    %v460 = vmax.f32 %v458, %v459
    %v461 = vrot.slane %v460, 4
    %v462 = vmax.f32 %v460, %v461
    %v463 = vrot.slane %v462, 2
    %v464 = vmax.f32 %v462, %v463
    %v465 = vrot.slane %v464, 1
    %v466 = vmax.f32 %v464, %v465
    %v467 = vsel %vm439, %v429, -inf
    %v468 = vsel %vm439, %v430, -inf
    %v469 = vmax.f32 %v467, %v468
    %v470 = vrot.slane %v469, 4
    %v471 = vmax.f32 %v469, %v470
    %v472 = vrot.slane %v471, 2
    %v473 = vmax.f32 %v471, %v472
    %v474 = vrot.slane %v473, 1
    %v475 = vmax.f32 %v473, %v474
    %v476 = vsel %vm439, %v431, -inf
    %v477 = vsel %vm439, %v432, -inf
    %v478 = vmax.f32 %v476, %v477
    %v479 = vrot.slane %v478, 4
    %v480 = vmax.f32 %v478, %v479
    %v481 = vrot.slane %v480, 2
    %v482 = vmax.f32 %v480, %v481
    %v483 = vrot.slane %v482, 1
    %v484 = vmax.f32 %v482, %v483
    %v485 = vsel %vm439, %v433, -inf
    %v486 = vsel %vm439, %v434, -inf
    %v487 = vmax.f32 %v485, %v486
    %v488 = vrot.slane %v487, 4
    %v489 = vmax.f32 %v487, %v488
    %v490 = vrot.slane %v489, 2
    %v491 = vmax.f32 %v489, %v490
    %v492 = vrot.slane %v491, 1
    %v493 = vmax.f32 %v491, %v492
    %v494 = vsel %vm439, %v435, -inf
    %v495 = vsel %vm439, %v436, -inf
    %v496 = vmax.f32 %v494, %v495
    %v497 = vrot.slane %v496, 4
    %v498 = vmax.f32 %v496, %v497
    %v499 = vrot.slane %v498, 2
    %v500 = vmax.f32 %v498, %v499
    %v501 = vrot.slane %v500, 1
    %v502 = vmax.f32 %v500, %v501
    %v503 = vsel %vm439, %v437, -inf
    %v504 = vsel %vm439, %v438, -inf
    %v505 = vmax.f32 %v503, %v504
    %v506 = vrot.slane %v505, 4
    %v507 = vmax.f32 %v505, %v506
    %v508 = vrot.slane %v507, 2
    %v509 = vmax.f32 %v507, %v508
    %v510 = vrot.slane %v509, 1
    %v511 = vmax.f32 %v509, %v510
    %v512 = vld [vmem:[#allocation3 + $0x4] sm:$0xf]
    %v513 = vld [vmem:[#allocation3 + $0x34] sm:$0xf]
    %v514 = vld [vmem:[#allocation3 + $0x64] sm:$0xf]
    %v515 = vld [vmem:[#allocation3 + $0x94] sm:$0xf]
    %v516 = vld [vmem:[#allocation3 + $0xc4] sm:$0xf]
    %v517 = vld [vmem:[#allocation3 + $0xf4] sm:$0xf]
    %v518 = vld [vmem:[#allocation3 + $0x124] sm:$0xf]
    %v519 = vld [vmem:[#allocation3 + $0x154] sm:$0xf]
    %v520 = vld [vmem:[#allocation3 + $0x184] sm:$0xf]
    %v521 = vld [vmem:[#allocation3 + $0x1b4] sm:$0xf]
    %v522 = vld [vmem:[#allocation3 + $0x1e4] sm:$0xf]
    %v523 = vld [vmem:[#allocation3 + $0x214] sm:$0xf]
    %v524 = vld [vmem:[#allocation3 + $0x244] sm:$0xf]
    %v525 = vld [vmem:[#allocation3 + $0x274] sm:$0xf]
    %v526 = vld [vmem:[#allocation3 + $0x2a4] sm:$0xf]
    %v527 = vld [vmem:[#allocation3 + $0x2d4] sm:$0xf]
    %v544 = vunpack.c.l.b16 %v512
    %v545 = vunpack.c.l.b16 %v513
    %v546 = vunpack.c.l.b16 %v514
    %v547 = vunpack.c.l.b16 %v515
    %v548 = vunpack.c.l.b16 %v516
    %v549 = vunpack.c.l.b16 %v517
    %v550 = vunpack.c.l.b16 %v518
    %v551 = vunpack.c.l.b16 %v519
    %v552 = vunpack.c.l.b16 %v520
    %v553 = vunpack.c.l.b16 %v521
    %v554 = vunpack.c.l.b16 %v522
    %v555 = vunpack.c.l.b16 %v523
    %v556 = vunpack.c.l.b16 %v524
    %v557 = vunpack.c.l.b16 %v525
    %v558 = vunpack.c.l.b16 %v526
    %v559 = vunpack.c.l.b16 %v527
    %v560 = vpack.c.b16 %v545, %v544
    %v561 = vpack.c.b16 %v547, %v546
    %v562 = vpack.c.b16 %v549, %v548
    %v563 = vpack.c.b16 %v551, %v550
    %v564 = vpack.c.b16 %v553, %v552
    %v565 = vpack.c.b16 %v555, %v554
    %v566 = vpack.c.b16 %v557, %v556
    %v567 = vpack.c.b16 %v559, %v558
    %576 = vmatprep.subr.bf16.mxu0 0
    %577 = vmatpush1.bf16.msra.mxu0 %v560
    %578 = vmatprep.subr.bf16.mxu0 0
    %579 = vmatpush1.bf16.msra.mxu0 %v561
    %580 = vmatprep.subr.bf16.mxu0 0
    %581 = vmatpush1.bf16.msra.mxu0 %v562
    %582 = vmatprep.subr.bf16.mxu0 0
    %583 = vmatpush1.bf16.msra.mxu0 %v563
    %584 = vmatprep.subr.bf16.mxu0 0
    %585 = vmatpush1.bf16.msra.mxu0 %v564
    %586 = vmatprep.subr.bf16.mxu0 0
    %587 = vmatpush1.bf16.msra.mxu0 %v565
    %588 = vmatprep.subr.bf16.mxu0 0
    %589 = vmatpush1.bf16.msra.mxu0 %v566
    %590 = vmatprep.subr.bf16.mxu0 0
    %591 = vmatpush1.bf16.msra.mxu0 %v567
    %592 = vmatprep.subr.bf16.mxu0 0
    %593 = vmatpush1.bf16.msra.mxu0 0
    %594 = vmatprep.subr.bf16.mxu0 0
    %595 = vmatpush1.bf16.msra.mxu0 0
    %596 = vmatprep.subr.bf16.mxu0 0
    %597 = vmatpush1.bf16.msra.mxu0 0
    %598 = vmatprep.subr.bf16.mxu0 0
    %599 = vmatpush1.bf16.msra.mxu0 0
    %600 = vmatprep.subr.bf16.mxu0 0
    %601 = vmatpush1.bf16.msra.mxu0 0
    %602 = vmatprep.subr.bf16.mxu0 0
    %603 = vmatpush1.bf16.msra.mxu0 0
    %604 = vmatprep.subr.bf16.mxu0 0
    %605 = vmatpush1.bf16.msra.mxu0 0
    %606 = vmatprep.subr.bf16.mxu0 0
    %607 = vmatpush1.bf16.msra.mxu0 0
    %608 = vmatprep.mubr.bf16.mxu0 0
    %609 = vmatmul.mubr.bf16.gmra.mrb[0].mxu0 %v137
    %v610 = vpop.f32.mrb[0].mxu0
    %v611 = vadd.f32 0.0, %v610
    %v612 = vpop.f32.mrb[0].mxu0
    %v613 = vpop.f32.mrb[0].mxu0
    %v614 = vadd.f32 0.0, %v613
    %v615 = vpop.f32.mrb[0].mxu0
    %616 = vmatprep.mubr.bf16.mxu0 0
    %617 = vmatmul.mubr.bf16.gmra.mrb[0].mxu0 %v185
    %v618 = vpop.f32.mrb[0].mxu0
    %v619 = vadd.f32 0.0, %v618
    %v620 = vpop.f32.mrb[0].mxu0
    %v621 = vpop.f32.mrb[0].mxu0
    %v622 = vpop.f32.mrb[0].mxu0
    %623 = vmatprep.mubr.bf16.mxu0 0
    %624 = vmatmul.mubr.bf16.gmra.mrb[0].mxu0 %v138
    %v625 = vpop.f32.mrb[0].mxu0
    %v626 = vadd.f32 0.0, %v625
    %v627 = vpop.f32.mrb[0].mxu0
    %v628 = vpop.f32.mrb[0].mxu0
    %v629 = vadd.f32 0.0, %v628
    %v630 = vpop.f32.mrb[0].mxu0
    %631 = vmatprep.mubr.bf16.mxu0 0
    %632 = vmatmul.mubr.bf16.gmra.mrb[0].mxu0 %v186
    %v633 = vpop.f32.mrb[0].mxu0
    %v634 = vadd.f32 0.0, %v633
    %v635 = vpop.f32.mrb[0].mxu0
    %v636 = vpop.f32.mrb[0].mxu0
    %v637 = vpop.f32.mrb[0].mxu0
    %638 = vmatprep.mubr.bf16.mxu0 0
    %639 = vmatmul.mubr.bf16.gmra.mrb[0].mxu0 %v139
    %v640 = vpop.f32.mrb[0].mxu0
    %v641 = vadd.f32 0.0, %v640
    %v642 = vpop.f32.mrb[0].mxu0
    %v643 = vpop.f32.mrb[0].mxu0
    %v644 = vadd.f32 0.0, %v643
    %v645 = vpop.f32.mrb[0].mxu0
    %646 = vmatprep.mubr.bf16.mxu0 0
    %647 = vmatmul.mubr.bf16.gmra.mrb[0].mxu0 %v187
    %v648 = vpop.f32.mrb[0].mxu0
    %v649 = vadd.f32 0.0, %v648
    %v650 = vpop.f32.mrb[0].mxu0
    %v651 = vpop.f32.mrb[0].mxu0
    %v652 = vpop.f32.mrb[0].mxu0
    %653 = vmatprep.mubr.bf16.mxu0 0
    %654 = vmatmul.mubr.bf16.gmra.mrb[0].mxu0 %v140
    %v655 = vpop.f32.mrb[0].mxu0
    %v656 = vadd.f32 0.0, %v655
    %v657 = vpop.f32.mrb[0].mxu0
    %v658 = vpop.f32.mrb[0].mxu0
    %v659 = vadd.f32 0.0, %v658
    %v660 = vpop.f32.mrb[0].mxu0
    %661 = vmatprep.mubr.bf16.mxu0 0
    %662 = vmatmul.mubr.bf16.gmra.mrb[0].mxu0 %v188
    %v663 = vpop.f32.mrb[0].mxu0
    %v664 = vadd.f32 0.0, %v663
    %v665 = vpop.f32.mrb[0].mxu0
    %v666 = vpop.f32.mrb[0].mxu0
    %v667 = vpop.f32.mrb[0].mxu0
    %668 = vmatprep.mubr.bf16.mxu0 0
    %669 = vmatmul.mubr.bf16.gmra.mrb[0].mxu0 %v141
    %v670 = vpop.f32.mrb[0].mxu0
    %v671 = vadd.f32 0.0, %v670
    %v672 = vpop.f32.mrb[0].mxu0
    %v673 = vpop.f32.mrb[0].mxu0
    %v674 = vadd.f32 0.0, %v673
    %v675 = vpop.f32.mrb[0].mxu0
    %676 = vmatprep.mubr.bf16.mxu0 0
    %677 = vmatmul.mubr.bf16.gmra.mrb[0].mxu0 %v189
    %v678 = vpop.f32.mrb[0].mxu0
    %v679 = vadd.f32 0.0, %v678
    %v680 = vpop.f32.mrb[0].mxu0
    %v681 = vpop.f32.mrb[0].mxu0
    %v682 = vpop.f32.mrb[0].mxu0
    %683 = vmatprep.mubr.bf16.mxu0 0
    %684 = vmatmul.mubr.bf16.gmra.mrb[0].mxu0 %v142
    %v685 = vpop.f32.mrb[0].mxu0
    %v686 = vadd.f32 0.0, %v685
    %v687 = vpop.f32.mrb[0].mxu0
    %v688 = vpop.f32.mrb[0].mxu0
    %v689 = vadd.f32 0.0, %v688
    %v690 = vpop.f32.mrb[0].mxu0
    %691 = vmatprep.mubr.bf16.mxu0 0
    %692 = vmatmul.mubr.bf16.gmra.mrb[0].mxu0 %v190
    %v693 = vpop.f32.mrb[0].mxu0
    %v694 = vadd.f32 0.0, %v693
    %v695 = vpop.f32.mrb[0].mxu0
    %v696 = vpop.f32.mrb[0].mxu0
    %v697 = vpop.f32.mrb[0].mxu0
    %698 = vmatprep.mubr.bf16.mxu0 0
    %699 = vmatmul.mubr.bf16.gmra.mrb[0].mxu0 %v143
    %v700 = vpop.f32.mrb[0].mxu0
    %v701 = vadd.f32 0.0, %v700
    %v702 = vpop.f32.mrb[0].mxu0
    %v703 = vpop.f32.mrb[0].mxu0
    %v704 = vadd.f32 0.0, %v703
    %v705 = vpop.f32.mrb[0].mxu0
    %706 = vmatprep.mubr.bf16.mxu0 0
    %707 = vmatmul.mubr.bf16.gmra.mrb[0].mxu0 %v191
    %v708 = vpop.f32.mrb[0].mxu0
    %v709 = vadd.f32 0.0, %v708
    %v710 = vpop.f32.mrb[0].mxu0
    %v711 = vpop.f32.mrb[0].mxu0
    %v712 = vpop.f32.mrb[0].mxu0
    %713 = vmatprep.mubr.bf16.mxu0 0
    %714 = vmatmul.mubr.bf16.gmra.mrb[0].mxu0 %v144
    %v715 = vpop.f32.mrb[0].mxu0
    %v716 = vadd.f32 0.0, %v715
    %v717 = vpop.f32.mrb[0].mxu0
    %v718 = vpop.f32.mrb[0].mxu0
    %v719 = vadd.f32 0.0, %v718
    %v720 = vpop.f32.mrb[0].mxu0
    %721 = vmatprep.mubr.bf16.mxu0 0
    %722 = vmatmul.mubr.bf16.gmra.mrb[0].mxu0 %v192
    %v723 = vpop.f32.mrb[0].mxu0
    %v724 = vadd.f32 0.0, %v723
    %v725 = vpop.f32.mrb[0].mxu0
    %v726 = vpop.f32.mrb[0].mxu0
    %v727 = vpop.f32.mrb[0].mxu0
    %728 = vdwg.mxu0
    %vm753 = vcmask 1046528
    %v754 = vrot.slane %v611, 1
    %v755 = vrot.slane %v614, 1
    %v756 = vsel %vm753, %v754, %v755
    %v757 = vrot.slane %v619, 1
    %v758 = vsel %vm753, %v755, %v757
    %v759 = vrot.slane %v626, 1
    %v760 = vrot.slane %v629, 1
    %v761 = vsel %vm753, %v759, %v760
    %v762 = vrot.slane %v634, 1
    %v763 = vsel %vm753, %v760, %v762
    %v764 = vrot.slane %v641, 1
    %v765 = vrot.slane %v644, 1
    %v766 = vsel %vm753, %v764, %v765
    %v767 = vrot.slane %v649, 1
    %v768 = vsel %vm753, %v765, %v767
    %v769 = vrot.slane %v656, 1
    %v770 = vrot.slane %v659, 1
    %v771 = vsel %vm753, %v769, %v770
    %v772 = vrot.slane %v664, 1
    %v773 = vsel %vm753, %v770, %v772
    %v774 = vrot.slane %v671, 1
    %v775 = vrot.slane %v674, 1
    %v776 = vsel %vm753, %v774, %v775
    %v777 = vrot.slane %v679, 1
    %v778 = vsel %vm753, %v775, %v777
    %v779 = vrot.slane %v686, 1
    %v780 = vrot.slane %v689, 1
    %v781 = vsel %vm753, %v779, %v780
    %v782 = vrot.slane %v694, 1
    %v783 = vsel %vm753, %v780, %v782
    %v784 = vrot.slane %v701, 1
    %v785 = vrot.slane %v704, 1
    %v786 = vsel %vm753, %v784, %v785
    %v787 = vrot.slane %v709, 1
    %v788 = vsel %vm753, %v785, %v787
    %v789 = vrot.slane %v716, 1
    %v790 = vrot.slane %v719, 1
    %v791 = vsel %vm753, %v789, %v790
    %v792 = vrot.slane %v724, 1
    %v793 = vsel %vm753, %v790, %v792
    %794 = vrot.lane.b32.xlu0 %v756, 64
    %v795 = vpop.permute.xlu0 %794
    %796 = vrot.lane.b32.xlu0 %v758, 64
    %v797 = vpop.permute.xlu0 %796
    %798 = vrot.lane.b32.xlu0 %v761, 64
    %v799 = vpop.permute.xlu0 %798
    %800 = vrot.lane.b32.xlu0 %v763, 64
    %v801 = vpop.permute.xlu0 %800
    %802 = vrot.lane.b32.xlu0 %v766, 64
    %v803 = vpop.permute.xlu0 %802
    %804 = vrot.lane.b32.xlu0 %v768, 64
    %v805 = vpop.permute.xlu0 %804
    %806 = vrot.lane.b32.xlu0 %v771, 64
    %v807 = vpop.permute.xlu0 %806
    %808 = vrot.lane.b32.xlu0 %v773, 64
    %v809 = vpop.permute.xlu0 %808
    %810 = vrot.lane.b32.xlu0 %v776, 64
    %v811 = vpop.permute.xlu0 %810
    %812 = vrot.lane.b32.xlu0 %v778, 64
    %v813 = vpop.permute.xlu0 %812
    %814 = vrot.lane.b32.xlu0 %v781, 64
    %v815 = vpop.permute.xlu0 %814
    %816 = vrot.lane.b32.xlu0 %v783, 64
    %v817 = vpop.permute.xlu0 %816
    %818 = vrot.lane.b32.xlu0 %v786, 64
    %v819 = vpop.permute.xlu0 %818
    %820 = vrot.lane.b32.xlu0 %v788, 64
    %v821 = vpop.permute.xlu0 %820
    %822 = vrot.lane.b32.xlu0 %v791, 64
    %v823 = vpop.permute.xlu0 %822
    %824 = vrot.lane.b32.xlu0 %v793, 64
    %v825 = vpop.permute.xlu0 %824
    %v842 = vadd.f32 %v611, %v795
    %v843 = vadd.f32 %v614, %v797
    %v844 = vadd.f32 %v626, %v799
    %v845 = vadd.f32 %v629, %v801
    %v846 = vadd.f32 %v641, %v803
    %v847 = vadd.f32 %v644, %v805
    %v848 = vadd.f32 %v656, %v807
    %v849 = vadd.f32 %v659, %v809
    %v850 = vadd.f32 %v671, %v811
    %v851 = vadd.f32 %v674, %v813
    %v852 = vadd.f32 %v686, %v815
    %v853 = vadd.f32 %v689, %v817
    %v854 = vadd.f32 %v701, %v819
    %v855 = vadd.f32 %v704, %v821
    %v856 = vadd.f32 %v716, %v823
    %v857 = vadd.f32 %v719, %v825
    %vm858 = vcmp.le.s32.totalorder %v206, 14
    %vm859 = vcmp.le.s32.totalorder %v207, 14
    %v860 = vsel %vm858, 1, 0
    %v861 = vsel %vm859, 1, 0
    %vm862 = vcmp.eq.s32.totalorder %v860, 1
    %vm863 = vcmp.eq.s32.totalorder %v861, 1
    %v864 = vsel %vm862, %v842, -inf
    %v865 = vsel %vm863, %v843, -inf
    %v866 = vsel %vm862, %v844, -inf
    %v867 = vsel %vm863, %v845, -inf
    %v868 = vsel %vm862, %v846, -inf
    %v869 = vsel %vm863, %v847, -inf
    %v870 = vsel %vm862, %v848, -inf
    %v871 = vsel %vm863, %v849, -inf
    %v872 = vsel %vm862, %v850, -inf
    %v873 = vsel %vm863, %v851, -inf
    %v874 = vsel %vm862, %v852, -inf
    %v875 = vsel %vm863, %v853, -inf
    %v876 = vsel %vm862, %v854, -inf
    %v877 = vsel %vm863, %v855, -inf
    %v878 = vsel %vm862, %v856, -inf
    %v879 = vsel %vm863, %v857, -inf
    %v880 = vsel %vm439, %v864, -inf
    %v881 = vsel %vm439, %v865, -inf
    %v882 = vmax.f32 %v880, %v881
    %v883 = vrot.slane %v882, 4
    %v884 = vmax.f32 %v882, %v883
    %v885 = vrot.slane %v884, 2
    %v886 = vmax.f32 %v884, %v885
    %v887 = vrot.slane %v886, 1
    %v888 = vmax.f32 %v886, %v887
    %v889 = vsel %vm439, %v866, -inf
    %v890 = vsel %vm439, %v867, -inf
    %v891 = vmax.f32 %v889, %v890
    %v892 = vrot.slane %v891, 4
    %v893 = vmax.f32 %v891, %v892
    %v894 = vrot.slane %v893, 2
    %v895 = vmax.f32 %v893, %v894
    %v896 = vrot.slane %v895, 1
    %v897 = vmax.f32 %v895, %v896
    %v898 = vsel %vm439, %v868, -inf
    %v899 = vsel %vm439, %v869, -inf
    %v900 = vmax.f32 %v898, %v899
    %v901 = vrot.slane %v900, 4
    %v902 = vmax.f32 %v900, %v901
    %v903 = vrot.slane %v902, 2
    %v904 = vmax.f32 %v902, %v903
    %v905 = vrot.slane %v904, 1
    %v906 = vmax.f32 %v904, %v905
    %v907 = vsel %vm439, %v870, -inf
    %v908 = vsel %vm439, %v871, -inf
    %v909 = vmax.f32 %v907, %v908
    %v910 = vrot.slane %v909, 4
    %v911 = vmax.f32 %v909, %v910
    %v912 = vrot.slane %v911, 2
    %v913 = vmax.f32 %v911, %v912
    %v914 = vrot.slane %v913, 1
    %v915 = vmax.f32 %v913, %v914
    %v916 = vsel %vm439, %v872, -inf
    %v917 = vsel %vm439, %v873, -inf
    %v918 = vmax.f32 %v916, %v917
    %v919 = vrot.slane %v918, 4
    %v920 = vmax.f32 %v918, %v919
    %v921 = vrot.slane %v920, 2
    %v922 = vmax.f32 %v920, %v921
    %v923 = vrot.slane %v922, 1
    %v924 = vmax.f32 %v922, %v923
    %v925 = vsel %vm439, %v874, -inf
    %v926 = vsel %vm439, %v875, -inf
    %v927 = vmax.f32 %v925, %v926
    %v928 = vrot.slane %v927, 4
    %v929 = vmax.f32 %v927, %v928
    %v930 = vrot.slane %v929, 2
    %v931 = vmax.f32 %v929, %v930
    %v932 = vrot.slane %v931, 1
    %v933 = vmax.f32 %v931, %v932
    %v934 = vsel %vm439, %v876, -inf
    %v935 = vsel %vm439, %v877, -inf
    %v936 = vmax.f32 %v934, %v935
    %v937 = vrot.slane %v936, 4
    %v938 = vmax.f32 %v936, %v937
    %v939 = vrot.slane %v938, 2
    %v940 = vmax.f32 %v938, %v939
    %v941 = vrot.slane %v940, 1
    %v942 = vmax.f32 %v940, %v941
    %v943 = vsel %vm439, %v878, -inf
    %v944 = vsel %vm439, %v879, -inf
    %v945 = vmax.f32 %v943, %v944
    %v946 = vrot.slane %v945, 4
    %v947 = vmax.f32 %v945, %v946
    %v948 = vrot.slane %v947, 2
    %v949 = vmax.f32 %v947, %v948
    %v950 = vrot.slane %v949, 1
    %v951 = vmax.f32 %v949, %v950
    %v952 = vld [vmem:[#allocation3 + $0x8] sm:$0xff]
    %v953 = vld [vmem:[#allocation3 + $0x38] sm:$0xff]
    %v954 = vld [vmem:[#allocation3 + $0x68] sm:$0xff]
    %v955 = vld [vmem:[#allocation3 + $0x98] sm:$0xff]
    %v956 = vld [vmem:[#allocation3 + $0xc8] sm:$0xff]
    %v957 = vld [vmem:[#allocation3 + $0xf8] sm:$0xff]
    %v958 = vld [vmem:[#allocation3 + $0x128] sm:$0xff]
    %v959 = vld [vmem:[#allocation3 + $0x158] sm:$0xff]
    %v960 = vld [vmem:[#allocation3 + $0x188] sm:$0xff]
    %v961 = vld [vmem:[#allocation3 + $0x1b8] sm:$0xff]
    %v962 = vld [vmem:[#allocation3 + $0x1e8] sm:$0xff]
    %v963 = vld [vmem:[#allocation3 + $0x218] sm:$0xff]
    %v964 = vld [vmem:[#allocation3 + $0x248] sm:$0xff]
    %v965 = vld [vmem:[#allocation3 + $0x278] sm:$0xff]
    %v966 = vld [vmem:[#allocation3 + $0x2a8] sm:$0xff]
    %v967 = vld [vmem:[#allocation3 + $0x2d8] sm:$0xff]
    %v984 = vunpack.c.l.b16 %v952
    %v985 = vunpack.c.h.b16 %v952
    %v986 = vunpack.c.l.b16 %v953
    %v987 = vunpack.c.h.b16 %v953
    %v988 = vunpack.c.l.b16 %v954
    %v989 = vunpack.c.h.b16 %v954
    %v990 = vunpack.c.l.b16 %v955
    %v991 = vunpack.c.h.b16 %v955
    %v992 = vunpack.c.l.b16 %v956
    %v993 = vunpack.c.h.b16 %v956
    %v994 = vunpack.c.l.b16 %v957
    %v995 = vunpack.c.h.b16 %v957
    %v996 = vunpack.c.l.b16 %v958
    %v997 = vunpack.c.h.b16 %v958
    %v998 = vunpack.c.l.b16 %v959
    %v999 = vunpack.c.h.b16 %v959
    %v1000 = vunpack.c.l.b16 %v960
    %v1001 = vunpack.c.h.b16 %v960
    %v1002 = vunpack.c.l.b16 %v961
    %v1003 = vunpack.c.h.b16 %v961
    %v1004 = vunpack.c.l.b16 %v962
    %v1005 = vunpack.c.h.b16 %v962
    %v1006 = vunpack.c.l.b16 %v963
    %v1007 = vunpack.c.h.b16 %v963
    %v1008 = vunpack.c.l.b16 %v964
    %v1009 = vunpack.c.h.b16 %v964
    %v1010 = vunpack.c.l.b16 %v965
    %v1011 = vunpack.c.h.b16 %v965
    %v1012 = vunpack.c.l.b16 %v966
    %v1013 = vunpack.c.h.b16 %v966
    %v1014 = vunpack.c.l.b16 %v967
    %v1015 = vunpack.c.h.b16 %v967
    %v1016 = vpack.c.b16 %v986, %v984
    %v1017 = vpack.c.b16 %v987, %v985
    %v1018 = vpack.c.b16 %v990, %v988
    %v1019 = vpack.c.b16 %v991, %v989
    %v1020 = vpack.c.b16 %v994, %v992
    %v1021 = vpack.c.b16 %v995, %v993
    %v1022 = vpack.c.b16 %v998, %v996
    %v1023 = vpack.c.b16 %v999, %v997
    %v1024 = vpack.c.b16 %v1002, %v1000
    %v1025 = vpack.c.b16 %v1003, %v1001
    %v1026 = vpack.c.b16 %v1006, %v1004
    %v1027 = vpack.c.b16 %v1007, %v1005
    %v1028 = vpack.c.b16 %v1010, %v1008
    %v1029 = vpack.c.b16 %v1011, %v1009
    %v1030 = vpack.c.b16 %v1014, %v1012
    %v1031 = vpack.c.b16 %v1015, %v1013
    %1048 = vmatprep.subr.bf16.mxu0 %v1017
    %1049 = vmatpush1.bf16.msra.mxu0 %v1016
    %1050 = vmatprep.subr.bf16.mxu0 %v1019
    %1051 = vmatpush1.bf16.msra.mxu0 %v1018
    %1052 = vmatprep.subr.bf16.mxu0 %v1021
    %1053 = vmatpush1.bf16.msra.mxu0 %v1020
    %1054 = vmatprep.subr.bf16.mxu0 %v1023
    %1055 = vmatpush1.bf16.msra.mxu0 %v1022
    %1056 = vmatprep.subr.bf16.mxu0 %v1025
    %1057 = vmatpush1.bf16.msra.mxu0 %v1024
    %1058 = vmatprep.subr.bf16.mxu0 %v1027
    %1059 = vmatpush1.bf16.msra.mxu0 %v1026
    %1060 = vmatprep.subr.bf16.mxu0 %v1029
    %1061 = vmatpush1.bf16.msra.mxu0 %v1028
    %1062 = vmatprep.subr.bf16.mxu0 %v1031
    %1063 = vmatpush1.bf16.msra.mxu0 %v1030
    %1064 = vmatprep.subr.bf16.mxu0 0
    %1065 = vmatpush1.bf16.msra.mxu0 0
    %1066 = vmatprep.subr.bf16.mxu0 0
    %1067 = vmatpush1.bf16.msra.mxu0 0
    %1068 = vmatprep.subr.bf16.mxu0 0
    %1069 = vmatpush1.bf16.msra.mxu0 0
    %1070 = vmatprep.subr.bf16.mxu0 0
    %1071 = vmatpush1.bf16.msra.mxu0 0
    %1072 = vmatprep.subr.bf16.mxu0 0
    %1073 = vmatpush1.bf16.msra.mxu0 0
    %1074 = vmatprep.subr.bf16.mxu0 0
    %1075 = vmatpush1.bf16.msra.mxu0 0
    %1076 = vmatprep.subr.bf16.mxu0 0
    %1077 = vmatpush1.bf16.msra.mxu0 0
    %1078 = vmatprep.subr.bf16.mxu0 0
    %1079 = vmatpush1.bf16.msra.mxu0 0
    %1080 = vmatprep.mubr.bf16.mxu0 0
    %1081 = vmatmul.mubr.bf16.gmra.mrb[0].mxu0 %v137
    %v1082 = vpop.f32.mrb[0].mxu0
    %v1083 = vadd.f32 0.0, %v1082
    %v1084 = vpop.f32.mrb[0].mxu0
    %v1085 = vadd.f32 0.0, %v1084
    %v1086 = vpop.f32.mrb[0].mxu0
    %v1087 = vadd.f32 0.0, %v1086
    %v1088 = vpop.f32.mrb[0].mxu0
    %v1089 = vadd.f32 0.0, %v1088
    %1090 = vmatprep.mubr.bf16.mxu0 0
    %1091 = vmatmul.mubr.bf16.gmra.mrb[0].mxu0 %v185
    %v1092 = vpop.f32.mrb[0].mxu0
    %v1093 = vadd.f32 0.0, %v1092
    %v1094 = vpop.f32.mrb[0].mxu0
    %v1095 = vadd.f32 0.0, %v1094
    %v1096 = vpop.f32.mrb[0].mxu0
    %v1097 = vpop.f32.mrb[0].mxu0
    %1098 = vmatprep.mubr.bf16.mxu0 0
    %1099 = vmatmul.mubr.bf16.gmra.mrb[0].mxu0 %v138
    %v1100 = vpop.f32.mrb[0].mxu0
    %v1101 = vadd.f32 0.0, %v1100
    %v1102 = vpop.f32.mrb[0].mxu0
    %v1103 = vadd.f32 0.0, %v1102
    %v1104 = vpop.f32.mrb[0].mxu0
    %v1105 = vadd.f32 0.0, %v1104
    %v1106 = vpop.f32.mrb[0].mxu0
    %v1107 = vadd.f32 0.0, %v1106
    %1108 = vmatprep.mubr.bf16.mxu0 0
    %1109 = vmatmul.mubr.bf16.gmra.mrb[0].mxu0 %v186
    %v1110 = vpop.f32.mrb[0].mxu0
    %v1111 = vadd.f32 0.0, %v1110
    %v1112 = vpop.f32.mrb[0].mxu0
    %v1113 = vadd.f32 0.0, %v1112
    %v1114 = vpop.f32.mrb[0].mxu0
    %v1115 = vpop.f32.mrb[0].mxu0
    %1116 = vmatprep.mubr.bf16.mxu0 0
    %1117 = vmatmul.mubr.bf16.gmra.mrb[0].mxu0 %v139
    %v1118 = vpop.f32.mrb[0].mxu0
    %v1119 = vadd.f32 0.0, %v1118
    %v1120 = vpop.f32.mrb[0].mxu0
    %v1121 = vadd.f32 0.0, %v1120
    %v1122 = vpop.f32.mrb[0].mxu0
    %v1123 = vadd.f32 0.0, %v1122
    %v1124 = vpop.f32.mrb[0].mxu0
    %v1125 = vadd.f32 0.0, %v1124
    %1126 = vmatprep.mubr.bf16.mxu0 0
    %1127 = vmatmul.mubr.bf16.gmra.mrb[0].mxu0 %v187
    %v1128 = vpop.f32.mrb[0].mxu0
    %v1129 = vadd.f32 0.0, %v1128
    %v1130 = vpop.f32.mrb[0].mxu0
    %v1131 = vadd.f32 0.0, %v1130
    %v1132 = vpop.f32.mrb[0].mxu0
    %v1133 = vpop.f32.mrb[0].mxu0
    %1134 = vmatprep.mubr.bf16.mxu0 0
    %1135 = vmatmul.mubr.bf16.gmra.mrb[0].mxu0 %v140
    %v1136 = vpop.f32.mrb[0].mxu0
    %v1137 = vadd.f32 0.0, %v1136
    %v1138 = vpop.f32.mrb[0].mxu0
    %v1139 = vadd.f32 0.0, %v1138
    %v1140 = vpop.f32.mrb[0].mxu0
    %v1141 = vadd.f32 0.0, %v1140
    %v1142 = vpop.f32.mrb[0].mxu0
    %v1143 = vadd.f32 0.0, %v1142
    %1144 = vmatprep.mubr.bf16.mxu0 0
    %1145 = vmatmul.mubr.bf16.gmra.mrb[0].mxu0 %v188
    %v1146 = vpop.f32.mrb[0].mxu0
    %v1147 = vadd.f32 0.0, %v1146
    %v1148 = vpop.f32.mrb[0].mxu0
    %v1149 = vadd.f32 0.0, %v1148
    %v1150 = vpop.f32.mrb[0].mxu0
    %v1151 = vpop.f32.mrb[0].mxu0
    %1152 = vmatprep.mubr.bf16.mxu0 0
    %1153 = vmatmul.mubr.bf16.gmra.mrb[0].mxu0 %v141
    %v1154 = vpop.f32.mrb[0].mxu0
    %v1155 = vadd.f32 0.0, %v1154
    %v1156 = vpop.f32.mrb[0].mxu0
    %v1157 = vadd.f32 0.0, %v1156
    %v1158 = vpop.f32.mrb[0].mxu0
    %v1159 = vadd.f32 0.0, %v1158
    %v1160 = vpop.f32.mrb[0].mxu0
    %v1161 = vadd.f32 0.0, %v1160
    %1162 = vmatprep.mubr.bf16.mxu0 0
    %1163 = vmatmul.mubr.bf16.gmra.mrb[0].mxu0 %v189
    %v1164 = vpop.f32.mrb[0].mxu0
    %v1165 = vadd.f32 0.0, %v1164
    %v1166 = vpop.f32.mrb[0].mxu0
    %v1167 = vadd.f32 0.0, %v1166
    %v1168 = vpop.f32.mrb[0].mxu0
    %v1169 = vpop.f32.mrb[0].mxu0
    %1170 = vmatprep.mubr.bf16.mxu0 0
    %1171 = vmatmul.mubr.bf16.gmra.mrb[0].mxu0 %v142
    %v1172 = vpop.f32.mrb[0].mxu0
    %v1173 = vadd.f32 0.0, %v1172
    %v1174 = vpop.f32.mrb[0].mxu0
    %v1175 = vadd.f32 0.0, %v1174
    %v1176 = vpop.f32.mrb[0].mxu0
    %v1177 = vadd.f32 0.0, %v1176
    %v1178 = vpop.f32.mrb[0].mxu0
    %v1179 = vadd.f32 0.0, %v1178
    %1180 = vmatprep.mubr.bf16.mxu0 0
    %1181 = vmatmul.mubr.bf16.gmra.mrb[0].mxu0 %v190
    %v1182 = vpop.f32.mrb[0].mxu0
    %v1183 = vadd.f32 0.0, %v1182
    %v1184 = vpop.f32.mrb[0].mxu0
    %v1185 = vadd.f32 0.0, %v1184
    %v1186 = vpop.f32.mrb[0].mxu0
    %v1187 = vpop.f32.mrb[0].mxu0
    %1188 = vmatprep.mubr.bf16.mxu0 0
    %1189 = vmatmul.mubr.bf16.gmra.mrb[0].mxu0 %v143
    %v1190 = vpop.f32.mrb[0].mxu0
    %v1191 = vadd.f32 0.0, %v1190
    %v1192 = vpop.f32.mrb[0].mxu0
    %v1193 = vadd.f32 0.0, %v1192
    %v1194 = vpop.f32.mrb[0].mxu0
    %v1195 = vadd.f32 0.0, %v1194
    %v1196 = vpop.f32.mrb[0].mxu0
    %v1197 = vadd.f32 0.0, %v1196
    %1198 = vmatprep.mubr.bf16.mxu0 0
    %1199 = vmatmul.mubr.bf16.gmra.mrb[0].mxu0 %v191
    %v1200 = vpop.f32.mrb[0].mxu0
    %v1201 = vadd.f32 0.0, %v1200
    %v1202 = vpop.f32.mrb[0].mxu0
    %v1203 = vadd.f32 0.0, %v1202
    %v1204 = vpop.f32.mrb[0].mxu0
    %v1205 = vpop.f32.mrb[0].mxu0
    %1206 = vmatprep.mubr.bf16.mxu0 0
    %1207 = vmatmul.mubr.bf16.gmra.mrb[0].mxu0 %v144
    %v1208 = vpop.f32.mrb[0].mxu0
    %v1209 = vadd.f32 0.0, %v1208
    %v1210 = vpop.f32.mrb[0].mxu0
    %v1211 = vadd.f32 0.0, %v1210
    %v1212 = vpop.f32.mrb[0].mxu0
    %v1213 = vadd.f32 0.0, %v1212
    %v1214 = vpop.f32.mrb[0].mxu0
    %v1215 = vadd.f32 0.0, %v1214
    %1216 = vmatprep.mubr.bf16.mxu0 0
    %1217 = vmatmul.mubr.bf16.gmra.mrb[0].mxu0 %v192
    %v1218 = vpop.f32.mrb[0].mxu0
    %v1219 = vadd.f32 0.0, %v1218
    %v1220 = vpop.f32.mrb[0].mxu0
    %v1221 = vadd.f32 0.0, %v1220
    %v1222 = vpop.f32.mrb[0].mxu0
    %v1223 = vpop.f32.mrb[0].mxu0
    %1224 = vdwg.mxu0
    %v1249 = vrot.slane %v1083, 1
    %v1250 = vrot.slane %v1087, 1
    %v1251 = vsel %vm753, %v1249, %v1250
    %v1252 = vrot.slane %v1093, 1
    %v1253 = vsel %vm753, %v1250, %v1252
    %v1254 = vrot.slane %v1101, 1
    %v1255 = vrot.slane %v1105, 1
    %v1256 = vsel %vm753, %v1254, %v1255
    %v1257 = vrot.slane %v1111, 1
    %v1258 = vsel %vm753, %v1255, %v1257
    %v1259 = vrot.slane %v1119, 1
    %v1260 = vrot.slane %v1123, 1
    %v1261 = vsel %vm753, %v1259, %v1260
    %v1262 = vrot.slane %v1129, 1
    %v1263 = vsel %vm753, %v1260, %v1262
    %v1264 = vrot.slane %v1137, 1
    %v1265 = vrot.slane %v1141, 1
    %v1266 = vsel %vm753, %v1264, %v1265
    %v1267 = vrot.slane %v1147, 1
    %v1268 = vsel %vm753, %v1265, %v1267
    %v1269 = vrot.slane %v1155, 1
    %v1270 = vrot.slane %v1159, 1
    %v1271 = vsel %vm753, %v1269, %v1270
    %v1272 = vrot.slane %v1165, 1
    %v1273 = vsel %vm753, %v1270, %v1272
    %v1274 = vrot.slane %v1173, 1
    %v1275 = vrot.slane %v1177, 1
    %v1276 = vsel %vm753, %v1274, %v1275
    %v1277 = vrot.slane %v1183, 1
    %v1278 = vsel %vm753, %v1275, %v1277
    %v1279 = vrot.slane %v1191, 1
    %v1280 = vrot.slane %v1195, 1
    %v1281 = vsel %vm753, %v1279, %v1280
    %v1282 = vrot.slane %v1201, 1
    %v1283 = vsel %vm753, %v1280, %v1282
    %v1284 = vrot.slane %v1209, 1
    %v1285 = vrot.slane %v1213, 1
    %v1286 = vsel %vm753, %v1284, %v1285
    %v1287 = vrot.slane %v1219, 1
    %v1288 = vsel %vm753, %v1285, %v1287
    %1289 = vrot.lane.b32.xlu0 %v1251, 64
    %v1290 = vpop.permute.xlu0 %1289
    %1291 = vrot.lane.b32.xlu0 %v1253, 64
    %v1292 = vpop.permute.xlu0 %1291
    %1293 = vrot.lane.b32.xlu0 %v1256, 64
    %v1294 = vpop.permute.xlu0 %1293
    %1295 = vrot.lane.b32.xlu0 %v1258, 64
    %v1296 = vpop.permute.xlu0 %1295
    %1297 = vrot.lane.b32.xlu0 %v1261, 64
    %v1298 = vpop.permute.xlu0 %1297
    %1299 = vrot.lane.b32.xlu0 %v1263, 64
    %v1300 = vpop.permute.xlu0 %1299
    %1301 = vrot.lane.b32.xlu0 %v1266, 64
    %v1302 = vpop.permute.xlu0 %1301
    %1303 = vrot.lane.b32.xlu0 %v1268, 64
    %v1304 = vpop.permute.xlu0 %1303
    %1305 = vrot.lane.b32.xlu0 %v1271, 64
    %v1306 = vpop.permute.xlu0 %1305
    %1307 = vrot.lane.b32.xlu0 %v1273, 64
    %v1308 = vpop.permute.xlu0 %1307
    %1309 = vrot.lane.b32.xlu0 %v1276, 64
    %v1310 = vpop.permute.xlu0 %1309
    %1311 = vrot.lane.b32.xlu0 %v1278, 64
    %v1312 = vpop.permute.xlu0 %1311
    %1313 = vrot.lane.b32.xlu0 %v1281, 64
    %v1314 = vpop.permute.xlu0 %1313
    %1315 = vrot.lane.b32.xlu0 %v1283, 64
    %v1316 = vpop.permute.xlu0 %1315
    %1317 = vrot.lane.b32.xlu0 %v1286, 64
    %v1318 = vpop.permute.xlu0 %1317
    %1319 = vrot.lane.b32.xlu0 %v1288, 64
    %v1320 = vpop.permute.xlu0 %1319
    %v1337 = vadd.f32 %v1083, %v1290
    %v1338 = vadd.f32 %v1087, %v1292
    %v1339 = vadd.f32 %v1101, %v1294
    %v1340 = vadd.f32 %v1105, %v1296
    %v1341 = vadd.f32 %v1119, %v1298
    %v1342 = vadd.f32 %v1123, %v1300
    %v1343 = vadd.f32 %v1137, %v1302
    %v1344 = vadd.f32 %v1141, %v1304
    %v1345 = vadd.f32 %v1155, %v1306
    %v1346 = vadd.f32 %v1159, %v1308
    %v1347 = vadd.f32 %v1173, %v1310
    %v1348 = vadd.f32 %v1177, %v1312
    %v1349 = vadd.f32 %v1191, %v1314
    %v1350 = vadd.f32 %v1195, %v1316
    %v1351 = vadd.f32 %v1209, %v1318
    %v1352 = vadd.f32 %v1213, %v1320
    %vm1377 = vcmask 1045504
    %v1378 = vrot.slane %v1085, 2
    %v1379 = vrot.slane %v1089, 2
    %v1380 = vsel %vm1377, %v1378, %v1379
    %v1381 = vrot.slane %v1095, 2
    %v1382 = vsel %vm1377, %v1379, %v1381
    %v1383 = vrot.slane %v1103, 2
    %v1384 = vrot.slane %v1107, 2
    %v1385 = vsel %vm1377, %v1383, %v1384
    %v1386 = vrot.slane %v1113, 2
    %v1387 = vsel %vm1377, %v1384, %v1386
    %v1388 = vrot.slane %v1121, 2
    %v1389 = vrot.slane %v1125, 2
    %v1390 = vsel %vm1377, %v1388, %v1389
    %v1391 = vrot.slane %v1131, 2
    %v1392 = vsel %vm1377, %v1389, %v1391
    %v1393 = vrot.slane %v1139, 2
    %v1394 = vrot.slane %v1143, 2
    %v1395 = vsel %vm1377, %v1393, %v1394
    %v1396 = vrot.slane %v1149, 2
    %v1397 = vsel %vm1377, %v1394, %v1396
    %v1398 = vrot.slane %v1157, 2
    %v1399 = vrot.slane %v1161, 2
    %v1400 = vsel %vm1377, %v1398, %v1399
    %v1401 = vrot.slane %v1167, 2
    %v1402 = vsel %vm1377, %v1399, %v1401
    %v1403 = vrot.slane %v1175, 2
    %v1404 = vrot.slane %v1179, 2
    %v1405 = vsel %vm1377, %v1403, %v1404
    %v1406 = vrot.slane %v1185, 2
    %v1407 = vsel %vm1377, %v1404, %v1406
    %v1408 = vrot.slane %v1193, 2
    %v1409 = vrot.slane %v1197, 2
    %v1410 = vsel %vm1377, %v1408, %v1409
    %v1411 = vrot.slane %v1203, 2
    %v1412 = vsel %vm1377, %v1409, %v1411
    %v1413 = vrot.slane %v1211, 2
    %v1414 = vrot.slane %v1215, 2
    %v1415 = vsel %vm1377, %v1413, %v1414
    %v1416 = vrot.slane %v1221, 2
    %v1417 = vsel %vm1377, %v1414, %v1416
    %v1434 = vadd.f32 %v1337, %v1380
    %v1435 = vadd.f32 %v1338, %v1382
    %v1436 = vadd.f32 %v1339, %v1385
    %v1437 = vadd.f32 %v1340, %v1387
    %v1438 = vadd.f32 %v1341, %v1390
    %v1439 = vadd.f32 %v1342, %v1392
    %v1440 = vadd.f32 %v1343, %v1395
    %v1441 = vadd.f32 %v1344, %v1397
    %v1442 = vadd.f32 %v1345, %v1400
    %v1443 = vadd.f32 %v1346, %v1402
    %v1444 = vadd.f32 %v1347, %v1405
    %v1445 = vadd.f32 %v1348, %v1407
    %v1446 = vadd.f32 %v1349, %v1410
    %v1447 = vadd.f32 %v1350, %v1412
    %v1448 = vadd.f32 %v1351, %v1415
    %v1449 = vadd.f32 %v1352, %v1417
    %vm1450 = vcmp.le.s32.totalorder %v206, 13
    %vm1451 = vcmp.le.s32.totalorder %v207, 13
    %v1452 = vsel %vm1450, 1, 0
    %v1453 = vsel %vm1451, 1, 0
    %vm1454 = vcmp.eq.s32.totalorder %v1452, 1
    %vm1455 = vcmp.eq.s32.totalorder %v1453, 1
    %v1456 = vsel %vm1454, %v1434, -inf
    %v1457 = vsel %vm1455, %v1435, -inf
    %v1458 = vsel %vm1454, %v1436, -inf
    %v1459 = vsel %vm1455, %v1437, -inf
    %v1460 = vsel %vm1454, %v1438, -inf
    %v1461 = vsel %vm1455, %v1439, -inf
    %v1462 = vsel %vm1454, %v1440, -inf
    %v1463 = vsel %vm1455, %v1441, -inf
    %v1464 = vsel %vm1454, %v1442, -inf
    %v1465 = vsel %vm1455, %v1443, -inf
    %v1466 = vsel %vm1454, %v1444, -inf
    %v1467 = vsel %vm1455, %v1445, -inf
    %v1468 = vsel %vm1454, %v1446, -inf
    %v1469 = vsel %vm1455, %v1447, -inf
    %v1470 = vsel %vm1454, %v1448, -inf
    %v1471 = vsel %vm1455, %v1449, -inf
    %v1472 = vsel %vm439, %v1456, -inf
    %v1473 = vsel %vm439, %v1457, -inf
    %v1474 = vmax.f32 %v1472, %v1473
    %v1475 = vrot.slane %v1474, 4
    %v1476 = vmax.f32 %v1474, %v1475
    %v1477 = vrot.slane %v1476, 2
    %v1478 = vmax.f32 %v1476, %v1477
    %v1479 = vrot.slane %v1478, 1
    %v1480 = vmax.f32 %v1478, %v1479
    %v1481 = vsel %vm439, %v1458, -inf
    %v1482 = vsel %vm439, %v1459, -inf
    %v1483 = vmax.f32 %v1481, %v1482
    %v1484 = vrot.slane %v1483, 4
    %v1485 = vmax.f32 %v1483, %v1484
    %v1486 = vrot.slane %v1485, 2
    %v1487 = vmax.f32 %v1485, %v1486
    %v1488 = vrot.slane %v1487, 1
    %v1489 = vmax.f32 %v1487, %v1488
    %v1490 = vsel %vm439, %v1460, -inf
    %v1491 = vsel %vm439, %v1461, -inf
    %v1492 = vmax.f32 %v1490, %v1491
    %v1493 = vrot.slane %v1492, 4
    %v1494 = vmax.f32 %v1492, %v1493
    %v1495 = vrot.slane %v1494, 2
    %v1496 = vmax.f32 %v1494, %v1495
    %v1497 = vrot.slane %v1496, 1
    %v1498 = vmax.f32 %v1496, %v1497
    %v1499 = vsel %vm439, %v1462, -inf
    %v1500 = vsel %vm439, %v1463, -inf
    %v1501 = vmax.f32 %v1499, %v1500
    %v1502 = vrot.slane %v1501, 4
    %v1503 = vmax.f32 %v1501, %v1502
    %v1504 = vrot.slane %v1503, 2
    %v1505 = vmax.f32 %v1503, %v1504
    %v1506 = vrot.slane %v1505, 1
    %v1507 = vmax.f32 %v1505, %v1506
    %v1508 = vsel %vm439, %v1464, -inf
    %v1509 = vsel %vm439, %v1465, -inf
    %v1510 = vmax.f32 %v1508, %v1509
    %v1511 = vrot.slane %v1510, 4
    %v1512 = vmax.f32 %v1510, %v1511
    %v1513 = vrot.slane %v1512, 2
    %v1514 = vmax.f32 %v1512, %v1513
    %v1515 = vrot.slane %v1514, 1
    %v1516 = vmax.f32 %v1514, %v1515
    %v1517 = vsel %vm439, %v1466, -inf
    %v1518 = vsel %vm439, %v1467, -inf
    %v1519 = vmax.f32 %v1517, %v1518
    %v1520 = vrot.slane %v1519, 4
    %v1521 = vmax.f32 %v1519, %v1520
    %v1522 = vrot.slane %v1521, 2
    %v1523 = vmax.f32 %v1521, %v1522
    %v1524 = vrot.slane %v1523, 1
    %v1525 = vmax.f32 %v1523, %v1524
    %v1526 = vsel %vm439, %v1468, -inf
    %v1527 = vsel %vm439, %v1469, -inf
    %v1528 = vmax.f32 %v1526, %v1527
    %v1529 = vrot.slane %v1528, 4
    %v1530 = vmax.f32 %v1528, %v1529
    %v1531 = vrot.slane %v1530, 2
    %v1532 = vmax.f32 %v1530, %v1531
    %v1533 = vrot.slane %v1532, 1
    %v1534 = vmax.f32 %v1532, %v1533
    %v1535 = vsel %vm439, %v1470, -inf
    %v1536 = vsel %vm439, %v1471, -inf
    %v1537 = vmax.f32 %v1535, %v1536
    %v1538 = vrot.slane %v1537, 4
    %v1539 = vmax.f32 %v1537, %v1538
    %v1540 = vrot.slane %v1539, 2
    %v1541 = vmax.f32 %v1539, %v1540
    %v1542 = vrot.slane %v1541, 1
    %v1543 = vmax.f32 %v1541, %v1542
    %v1544 = vld [vmem:[#allocation3 + $0x10] sm:$0xff]
    %v1545 = vld [vmem:[#allocation3 + $0x18] sm:$0xf]
    %v1546 = vld [vmem:[#allocation3 + $0x40] sm:$0xff]
    %v1547 = vld [vmem:[#allocation3 + $0x48] sm:$0xf]
    %v1548 = vld [vmem:[#allocation3 + $0x70] sm:$0xff]
    %v1549 = vld [vmem:[#allocation3 + $0x78] sm:$0xf]
    %v1550 = vld [vmem:[#allocation3 + $0xa0] sm:$0xff]
    %v1551 = vld [vmem:[#allocation3 + $0xa8] sm:$0xf]
    %v1552 = vld [vmem:[#allocation3 + $0xd0] sm:$0xff]
    %v1553 = vld [vmem:[#allocation3 + $0xd8] sm:$0xf]
    %v1554 = vld [vmem:[#allocation3 + $0x100] sm:$0xff]
    %v1555 = vld [vmem:[#allocation3 + $0x108] sm:$0xf]
    %v1556 = vld [vmem:[#allocation3 + $0x130] sm:$0xff]
    %v1557 = vld [vmem:[#allocation3 + $0x138] sm:$0xf]
    %v1558 = vld [vmem:[#allocation3 + $0x160] sm:$0xff]
    %v1559 = vld [vmem:[#allocation3 + $0x168] sm:$0xf]
    %v1560 = vld [vmem:[#allocation3 + $0x190] sm:$0xff]
    %v1561 = vld [vmem:[#allocation3 + $0x198] sm:$0xf]
    %v1562 = vld [vmem:[#allocation3 + $0x1c0] sm:$0xff]
    %v1563 = vld [vmem:[#allocation3 + $0x1c8] sm:$0xf]
    %v1564 = vld [vmem:[#allocation3 + $0x1f0] sm:$0xff]
    %v1565 = vld [vmem:[#allocation3 + $0x1f8] sm:$0xf]
    %v1566 = vld [vmem:[#allocation3 + $0x220] sm:$0xff]
    %v1567 = vld [vmem:[#allocation3 + $0x228] sm:$0xf]
    %v1568 = vld [vmem:[#allocation3 + $0x250] sm:$0xff]
    %v1569 = vld [vmem:[#allocation3 + $0x258] sm:$0xf]
    %v1570 = vld [vmem:[#allocation3 + $0x280] sm:$0xff]
    %v1571 = vld [vmem:[#allocation3 + $0x288] sm:$0xf]
    %v1572 = vld [vmem:[#allocation3 + $0x2b0] sm:$0xff]
    %v1573 = vld [vmem:[#allocation3 + $0x2b8] sm:$0xf]
    %v1574 = vld [vmem:[#allocation3 + $0x2e0] sm:$0xff]
    %v1575 = vld [vmem:[#allocation3 + $0x2e8] sm:$0xf]
    %v1608 = vunpack.c.l.b16 %v1544
    %v1609 = vunpack.c.h.b16 %v1544
    %v1610 = vunpack.c.l.b16 %v1545
    %v1611 = vunpack.c.l.b16 %v1546
    %v1612 = vunpack.c.h.b16 %v1546
    %v1613 = vunpack.c.l.b16 %v1547
    %v1614 = vunpack.c.l.b16 %v1548
    %v1615 = vunpack.c.h.b16 %v1548
    %v1616 = vunpack.c.l.b16 %v1549
    %v1617 = vunpack.c.l.b16 %v1550
    %v1618 = vunpack.c.h.b16 %v1550
    %v1619 = vunpack.c.l.b16 %v1551
    %v1620 = vunpack.c.l.b16 %v1552
    %v1621 = vunpack.c.h.b16 %v1552
    %v1622 = vunpack.c.l.b16 %v1553
    %v1623 = vunpack.c.l.b16 %v1554
    %v1624 = vunpack.c.h.b16 %v1554
    %v1625 = vunpack.c.l.b16 %v1555
    %v1626 = vunpack.c.l.b16 %v1556
    %v1627 = vunpack.c.h.b16 %v1556
    %v1628 = vunpack.c.l.b16 %v1557
    %v1629 = vunpack.c.l.b16 %v1558
    %v1630 = vunpack.c.h.b16 %v1558
    %v1631 = vunpack.c.l.b16 %v1559
    %v1632 = vunpack.c.l.b16 %v1560
    %v1633 = vunpack.c.h.b16 %v1560
    %v1634 = vunpack.c.l.b16 %v1561
    %v1635 = vunpack.c.l.b16 %v1562
    %v1636 = vunpack.c.h.b16 %v1562
    %v1637 = vunpack.c.l.b16 %v1563
    %v1638 = vunpack.c.l.b16 %v1564
    %v1639 = vunpack.c.h.b16 %v1564
    %v1640 = vunpack.c.l.b16 %v1565
    %v1641 = vunpack.c.l.b16 %v1566
    %v1642 = vunpack.c.h.b16 %v1566
    %v1643 = vunpack.c.l.b16 %v1567
    %v1644 = vunpack.c.l.b16 %v1568
    %v1645 = vunpack.c.h.b16 %v1568
    %v1646 = vunpack.c.l.b16 %v1569
    %v1647 = vunpack.c.l.b16 %v1570
    %v1648 = vunpack.c.h.b16 %v1570
    %v1649 = vunpack.c.l.b16 %v1571
    %v1650 = vunpack.c.l.b16 %v1572
    %v1651 = vunpack.c.h.b16 %v1572
    %v1652 = vunpack.c.l.b16 %v1573
    %v1653 = vunpack.c.l.b16 %v1574
    %v1654 = vunpack.c.h.b16 %v1574
    %v1655 = vunpack.c.l.b16 %v1575
    %v1656 = vpack.c.b16 %v1611, %v1608
    %v1657 = vpack.c.b16 %v1612, %v1609
    %v1658 = vpack.c.b16 %v1613, %v1610
    %v1659 = vpack.c.b16 %v1617, %v1614
    %v1660 = vpack.c.b16 %v1618, %v1615
    %v1661 = vpack.c.b16 %v1619, %v1616
    %v1662 = vpack.c.b16 %v1623, %v1620
    %v1663 = vpack.c.b16 %v1624, %v1621
    %v1664 = vpack.c.b16 %v1625, %v1622
    %v1665 = vpack.c.b16 %v1629, %v1626
    %v1666 = vpack.c.b16 %v1630, %v1627
    %v1667 = vpack.c.b16 %v1631, %v1628
    %v1668 = vpack.c.b16 %v1635, %v1632
    %v1669 = vpack.c.b16 %v1636, %v1633
    %v1670 = vpack.c.b16 %v1637, %v1634
    %v1671 = vpack.c.b16 %v1641, %v1638
    %v1672 = vpack.c.b16 %v1642, %v1639
    %v1673 = vpack.c.b16 %v1643, %v1640
    %v1674 = vpack.c.b16 %v1647, %v1644
    %v1675 = vpack.c.b16 %v1648, %v1645
    %v1676 = vpack.c.b16 %v1649, %v1646
    %v1677 = vpack.c.b16 %v1653, %v1650
    %v1678 = vpack.c.b16 %v1654, %v1651
    %v1679 = vpack.c.b16 %v1655, %v1652
    %1704 = vmatprep.subr.bf16.mxu0 %v1657
    %1705 = vmatpush1.bf16.msra.mxu0 %v1656
    %1706 = vmatprep.subr.bf16.mxu0 %v1660
    %1707 = vmatpush1.bf16.msra.mxu0 %v1659
    %1708 = vmatprep.subr.bf16.mxu0 %v1663
    %1709 = vmatpush1.bf16.msra.mxu0 %v1662
    %1710 = vmatprep.subr.bf16.mxu0 %v1666
    %1711 = vmatpush1.bf16.msra.mxu0 %v1665
    %1712 = vmatprep.subr.bf16.mxu0 %v1669
    %1713 = vmatpush1.bf16.msra.mxu0 %v1668
    %1714 = vmatprep.subr.bf16.mxu0 %v1672
    %1715 = vmatpush1.bf16.msra.mxu0 %v1671
    %1716 = vmatprep.subr.bf16.mxu0 %v1675
    %1717 = vmatpush1.bf16.msra.mxu0 %v1674
    %1718 = vmatprep.subr.bf16.mxu0 %v1678
    %1719 = vmatpush1.bf16.msra.mxu0 %v1677
    %1720 = vmatprep.subr.bf16.mxu0 0
    %1721 = vmatpush1.bf16.msra.mxu0 0
    %1722 = vmatprep.subr.bf16.mxu0 0
    %1723 = vmatpush1.bf16.msra.mxu0 0
    %1724 = vmatprep.subr.bf16.mxu0 0
    %1725 = vmatpush1.bf16.msra.mxu0 0
    %1726 = vmatprep.subr.bf16.mxu0 0
    %1727 = vmatpush1.bf16.msra.mxu0 0
    %1728 = vmatprep.subr.bf16.mxu0 0
    %1729 = vmatpush1.bf16.msra.mxu0 0
    %1730 = vmatprep.subr.bf16.mxu0 0
    %1731 = vmatpush1.bf16.msra.mxu0 0
    %1732 = vmatprep.subr.bf16.mxu0 0
    %1733 = vmatpush1.bf16.msra.mxu0 0
    %1734 = vmatprep.subr.bf16.mxu0 0
    %1735 = vmatpush1.bf16.msra.mxu0 0
    %1736 = vmatprep.mubr.bf16.mxu0 0
    %1737 = vmatmul.mubr.bf16.gmra.mrb[0].mxu0 %v137
    %v1738 = vpop.f32.mrb[0].mxu0
    %v1739 = vadd.f32 0.0, %v1738
    %v1740 = vpop.f32.mrb[0].mxu0
    %v1741 = vadd.f32 0.0, %v1740
    %v1742 = vpop.f32.mrb[0].mxu0
    %v1743 = vadd.f32 0.0, %v1742
    %v1744 = vpop.f32.mrb[0].mxu0
    %v1745 = vadd.f32 0.0, %v1744
    %1746 = vmatprep.mubr.bf16.mxu0 0
    %1747 = vmatmul.mubr.bf16.gmra.mrb[0].mxu0 %v185
    %v1748 = vpop.f32.mrb[0].mxu0
    %v1749 = vadd.f32 0.0, %v1748
    %v1750 = vpop.f32.mrb[0].mxu0
    %v1751 = vadd.f32 0.0, %v1750
    %v1752 = vpop.f32.mrb[0].mxu0
    %v1753 = vpop.f32.mrb[0].mxu0
    %1754 = vmatprep.mubr.bf16.mxu0 0
    %1755 = vmatmul.mubr.bf16.gmra.mrb[0].mxu0 %v138
    %v1756 = vpop.f32.mrb[0].mxu0
    %v1757 = vadd.f32 0.0, %v1756
    %v1758 = vpop.f32.mrb[0].mxu0
    %v1759 = vadd.f32 0.0, %v1758
    %v1760 = vpop.f32.mrb[0].mxu0
    %v1761 = vadd.f32 0.0, %v1760
    %v1762 = vpop.f32.mrb[0].mxu0
    %v1763 = vadd.f32 0.0, %v1762
    %1764 = vmatprep.mubr.bf16.mxu0 0
    %1765 = vmatmul.mubr.bf16.gmra.mrb[0].mxu0 %v186
    %v1766 = vpop.f32.mrb[0].mxu0
    %v1767 = vadd.f32 0.0, %v1766
    %v1768 = vpop.f32.mrb[0].mxu0
    %v1769 = vadd.f32 0.0, %v1768
    %v1770 = vpop.f32.mrb[0].mxu0
    %v1771 = vpop.f32.mrb[0].mxu0
    %1772 = vmatprep.mubr.bf16.mxu0 0
    %1773 = vmatmul.mubr.bf16.gmra.mrb[0].mxu0 %v139
    %v1774 = vpop.f32.mrb[0].mxu0
    %v1775 = vadd.f32 0.0, %v1774
    %v1776 = vpop.f32.mrb[0].mxu0
    %v1777 = vadd.f32 0.0, %v1776
    %v1778 = vpop.f32.mrb[0].mxu0
    %v1779 = vadd.f32 0.0, %v1778
    %v1780 = vpop.f32.mrb[0].mxu0
    %v1781 = vadd.f32 0.0, %v1780
    %1782 = vmatprep.mubr.bf16.mxu0 0
    %1783 = vmatmul.mubr.bf16.gmra.mrb[0].mxu0 %v187
    %v1784 = vpop.f32.mrb[0].mxu0
    %v1785 = vadd.f32 0.0, %v1784
    %v1786 = vpop.f32.mrb[0].mxu0
    %v1787 = vadd.f32 0.0, %v1786
    %v1788 = vpop.f32.mrb[0].mxu0
    %v1789 = vpop.f32.mrb[0].mxu0
    %1790 = vmatprep.mubr.bf16.mxu0 0
    %1791 = vmatmul.mubr.bf16.gmra.mrb[0].mxu0 %v140
    %v1792 = vpop.f32.mrb[0].mxu0
    %v1793 = vadd.f32 0.0, %v1792
    %v1794 = vpop.f32.mrb[0].mxu0
    %v1795 = vadd.f32 0.0, %v1794
    %v1796 = vpop.f32.mrb[0].mxu0
    %v1797 = vadd.f32 0.0, %v1796
    %v1798 = vpop.f32.mrb[0].mxu0
    %v1799 = vadd.f32 0.0, %v1798
    %1800 = vmatprep.mubr.bf16.mxu0 0
    %1801 = vmatmul.mubr.bf16.gmra.mrb[0].mxu0 %v188
    %v1802 = vpop.f32.mrb[0].mxu0
    %v1803 = vadd.f32 0.0, %v1802
    %v1804 = vpop.f32.mrb[0].mxu0
    %v1805 = vadd.f32 0.0, %v1804
    %v1806 = vpop.f32.mrb[0].mxu0
    %v1807 = vpop.f32.mrb[0].mxu0
    %1808 = vmatprep.mubr.bf16.mxu0 0
    %1809 = vmatmul.mubr.bf16.gmra.mrb[0].mxu0 %v141
    %v1810 = vpop.f32.mrb[0].mxu0
    %v1811 = vadd.f32 0.0, %v1810
    %v1812 = vpop.f32.mrb[0].mxu0
    %v1813 = vadd.f32 0.0, %v1812
    %v1814 = vpop.f32.mrb[0].mxu0
    %v1815 = vadd.f32 0.0, %v1814
    %v1816 = vpop.f32.mrb[0].mxu0
    %v1817 = vadd.f32 0.0, %v1816
    %1818 = vmatprep.mubr.bf16.mxu0 0
    %1819 = vmatmul.mubr.bf16.gmra.mrb[0].mxu0 %v189
    %v1820 = vpop.f32.mrb[0].mxu0
    %v1821 = vadd.f32 0.0, %v1820
    %v1822 = vpop.f32.mrb[0].mxu0
    %v1823 = vadd.f32 0.0, %v1822
    %v1824 = vpop.f32.mrb[0].mxu0
    %v1825 = vpop.f32.mrb[0].mxu0
    %1826 = vmatprep.mubr.bf16.mxu0 0
    %1827 = vmatmul.mubr.bf16.gmra.mrb[0].mxu0 %v142
    %v1828 = vpop.f32.mrb[0].mxu0
    %v1829 = vadd.f32 0.0, %v1828
    %v1830 = vpop.f32.mrb[0].mxu0
    %v1831 = vadd.f32 0.0, %v1830
    %v1832 = vpop.f32.mrb[0].mxu0
    %v1833 = vadd.f32 0.0, %v1832
    %v1834 = vpop.f32.mrb[0].mxu0
    %v1835 = vadd.f32 0.0, %v1834
    %1836 = vmatprep.mubr.bf16.mxu0 0
    %1837 = vmatmul.mubr.bf16.gmra.mrb[0].mxu0 %v190
    %v1838 = vpop.f32.mrb[0].mxu0
    %v1839 = vadd.f32 0.0, %v1838
    %v1840 = vpop.f32.mrb[0].mxu0
    %v1841 = vadd.f32 0.0, %v1840
    %v1842 = vpop.f32.mrb[0].mxu0
    %v1843 = vpop.f32.mrb[0].mxu0
    %1844 = vmatprep.mubr.bf16.mxu0 0
    %1845 = vmatmul.mubr.bf16.gmra.mrb[0].mxu0 %v143
    %v1846 = vpop.f32.mrb[0].mxu0
    %v1847 = vadd.f32 0.0, %v1846
    %v1848 = vpop.f32.mrb[0].mxu0
    %v1849 = vadd.f32 0.0, %v1848
    %v1850 = vpop.f32.mrb[0].mxu0
    %v1851 = vadd.f32 0.0, %v1850
    %v1852 = vpop.f32.mrb[0].mxu0
    %v1853 = vadd.f32 0.0, %v1852
    %1854 = vmatprep.mubr.bf16.mxu0 0
    %1855 = vmatmul.mubr.bf16.gmra.mrb[0].mxu0 %v191
    %v1856 = vpop.f32.mrb[0].mxu0
    %v1857 = vadd.f32 0.0, %v1856
    %v1858 = vpop.f32.mrb[0].mxu0
    %v1859 = vadd.f32 0.0, %v1858
    %v1860 = vpop.f32.mrb[0].mxu0
    %v1861 = vpop.f32.mrb[0].mxu0
    %1862 = vmatprep.mubr.bf16.mxu0 0
    %1863 = vmatmul.mubr.bf16.gmra.mrb[0].mxu0 %v144
    %v1864 = vpop.f32.mrb[0].mxu0
    %v1865 = vadd.f32 0.0, %v1864
    %v1866 = vpop.f32.mrb[0].mxu0
    %v1867 = vadd.f32 0.0, %v1866
    %v1868 = vpop.f32.mrb[0].mxu0
    %v1869 = vadd.f32 0.0, %v1868
    %v1870 = vpop.f32.mrb[0].mxu0
    %v1871 = vadd.f32 0.0, %v1870
    %1872 = vmatprep.mubr.bf16.mxu0 0
    %1873 = vmatmul.mubr.bf16.gmra.mrb[0].mxu0 %v192
    %v1874 = vpop.f32.mrb[0].mxu0
    %v1875 = vadd.f32 0.0, %v1874
    %v1876 = vpop.f32.mrb[0].mxu0
    %v1877 = vadd.f32 0.0, %v1876
    %v1878 = vpop.f32.mrb[0].mxu0
    %v1879 = vpop.f32.mrb[0].mxu0
    %1880 = vdwg.mxu0
    %1881 = vmatprep.subr.bf16.mxu0 0
    %1882 = vmatpush1.bf16.msra.mxu0 %v1658
    %1883 = vmatprep.subr.bf16.mxu0 0
    %1884 = vmatpush1.bf16.msra.mxu0 %v1661
    %1885 = vmatprep.subr.bf16.mxu0 0
    %1886 = vmatpush1.bf16.msra.mxu0 %v1664
    %1887 = vmatprep.subr.bf16.mxu0 0
    %1888 = vmatpush1.bf16.msra.mxu0 %v1667
    %1889 = vmatprep.subr.bf16.mxu0 0
    %1890 = vmatpush1.bf16.msra.mxu0 %v1670
    %1891 = vmatprep.subr.bf16.mxu0 0
    %1892 = vmatpush1.bf16.msra.mxu0 %v1673
    %1893 = vmatprep.subr.bf16.mxu0 0
    %1894 = vmatpush1.bf16.msra.mxu0 %v1676
    %1895 = vmatprep.subr.bf16.mxu0 0
    %1896 = vmatpush1.bf16.msra.mxu0 %v1679
    %1897 = vmatprep.subr.bf16.mxu0 0
    %1898 = vmatpush1.bf16.msra.mxu0 0
    %1899 = vmatprep.subr.bf16.mxu0 0
    %1900 = vmatpush1.bf16.msra.mxu0 0
    %1901 = vmatprep.subr.bf16.mxu0 0
    %1902 = vmatpush1.bf16.msra.mxu0 0
    %1903 = vmatprep.subr.bf16.mxu0 0
    %1904 = vmatpush1.bf16.msra.mxu0 0
    %1905 = vmatprep.subr.bf16.mxu0 0
    %1906 = vmatpush1.bf16.msra.mxu0 0
    %1907 = vmatprep.subr.bf16.mxu0 0
    %1908 = vmatpush1.bf16.msra.mxu0 0
    %1909 = vmatprep.subr.bf16.mxu0 0
    %1910 = vmatpush1.bf16.msra.mxu0 0
    %1911 = vmatprep.subr.bf16.mxu0 0
    %1912 = vmatpush1.bf16.msra.mxu0 0
    %1913 = vmatprep.mubr.bf16.mxu0 0
    %1914 = vmatmul.mubr.bf16.gmra.mrb[0].mxu0 %v137
    %v1915 = vpop.f32.mrb[0].mxu0
    %v1916 = vadd.f32 0.0, %v1915
    %v1917 = vpop.f32.mrb[0].mxu0
    %v1918 = vpop.f32.mrb[0].mxu0
    %v1919 = vadd.f32 0.0, %v1918
    %v1920 = vpop.f32.mrb[0].mxu0
    %1921 = vmatprep.mubr.bf16.mxu0 0
    %1922 = vmatmul.mubr.bf16.gmra.mrb[0].mxu0 %v185
    %v1923 = vpop.f32.mrb[0].mxu0
    %v1924 = vadd.f32 0.0, %v1923
    %v1925 = vpop.f32.mrb[0].mxu0
    %v1926 = vpop.f32.mrb[0].mxu0
    %v1927 = vpop.f32.mrb[0].mxu0
    %1928 = vmatprep.mubr.bf16.mxu0 0
    %1929 = vmatmul.mubr.bf16.gmra.mrb[0].mxu0 %v138
    %v1930 = vpop.f32.mrb[0].mxu0
    %v1931 = vadd.f32 0.0, %v1930
    %v1932 = vpop.f32.mrb[0].mxu0
    %v1933 = vpop.f32.mrb[0].mxu0
    %v1934 = vadd.f32 0.0, %v1933
    %v1935 = vpop.f32.mrb[0].mxu0
    %1936 = vmatprep.mubr.bf16.mxu0 0
    %1937 = vmatmul.mubr.bf16.gmra.mrb[0].mxu0 %v186
    %v1938 = vpop.f32.mrb[0].mxu0
    %v1939 = vadd.f32 0.0, %v1938
    %v1940 = vpop.f32.mrb[0].mxu0
    %v1941 = vpop.f32.mrb[0].mxu0
    %v1942 = vpop.f32.mrb[0].mxu0
    %1943 = vmatprep.mubr.bf16.mxu0 0
    %1944 = vmatmul.mubr.bf16.gmra.mrb[0].mxu0 %v139
    %v1945 = vpop.f32.mrb[0].mxu0
    %v1946 = vadd.f32 0.0, %v1945
    %v1947 = vpop.f32.mrb[0].mxu0
    %v1948 = vpop.f32.mrb[0].mxu0
    %v1949 = vadd.f32 0.0, %v1948
    %v1950 = vpop.f32.mrb[0].mxu0
    %1951 = vmatprep.mubr.bf16.mxu0 0
    %1952 = vmatmul.mubr.bf16.gmra.mrb[0].mxu0 %v187
    %v1953 = vpop.f32.mrb[0].mxu0
    %v1954 = vadd.f32 0.0, %v1953
    %v1955 = vpop.f32.mrb[0].mxu0
    %v1956 = vpop.f32.mrb[0].mxu0
    %v1957 = vpop.f32.mrb[0].mxu0
    %1958 = vmatprep.mubr.bf16.mxu0 0
    %1959 = vmatmul.mubr.bf16.gmra.mrb[0].mxu0 %v140
    %v1960 = vpop.f32.mrb[0].mxu0
    %v1961 = vadd.f32 0.0, %v1960
    %v1962 = vpop.f32.mrb[0].mxu0
    %v1963 = vpop.f32.mrb[0].mxu0
    %v1964 = vadd.f32 0.0, %v1963
    %v1965 = vpop.f32.mrb[0].mxu0
    %1966 = vmatprep.mubr.bf16.mxu0 0
    %1967 = vmatmul.mubr.bf16.gmra.mrb[0].mxu0 %v188
    %v1968 = vpop.f32.mrb[0].mxu0
    %v1969 = vadd.f32 0.0, %v1968
    %v1970 = vpop.f32.mrb[0].mxu0
    %v1971 = vpop.f32.mrb[0].mxu0
    %v1972 = vpop.f32.mrb[0].mxu0
    %1973 = vmatprep.mubr.bf16.mxu0 0
    %1974 = vmatmul.mubr.bf16.gmra.mrb[0].mxu0 %v141
    %v1975 = vpop.f32.mrb[0].mxu0
    %v1976 = vadd.f32 0.0, %v1975
    %v1977 = vpop.f32.mrb[0].mxu0
    %v1978 = vpop.f32.mrb[0].mxu0
    %v1979 = vadd.f32 0.0, %v1978
    %v1980 = vpop.f32.mrb[0].mxu0
    %1981 = vmatprep.mubr.bf16.mxu0 0
    %1982 = vmatmul.mubr.bf16.gmra.mrb[0].mxu0 %v189
    %v1983 = vpop.f32.mrb[0].mxu0
    %v1984 = vadd.f32 0.0, %v1983
    %v1985 = vpop.f32.mrb[0].mxu0
    %v1986 = vpop.f32.mrb[0].mxu0
    %v1987 = vpop.f32.mrb[0].mxu0
    %1988 = vmatprep.mubr.bf16.mxu0 0
    %1989 = vmatmul.mubr.bf16.gmra.mrb[0].mxu0 %v142
    %v1990 = vpop.f32.mrb[0].mxu0
    %v1991 = vadd.f32 0.0, %v1990
    %v1992 = vpop.f32.mrb[0].mxu0
    %v1993 = vpop.f32.mrb[0].mxu0
    %v1994 = vadd.f32 0.0, %v1993
    %v1995 = vpop.f32.mrb[0].mxu0
    %1996 = vmatprep.mubr.bf16.mxu0 0
    %1997 = vmatmul.mubr.bf16.gmra.mrb[0].mxu0 %v190
    %v1998 = vpop.f32.mrb[0].mxu0
    %v1999 = vadd.f32 0.0, %v1998
    %v2000 = vpop.f32.mrb[0].mxu0
    %v2001 = vpop.f32.mrb[0].mxu0
    %v2002 = vpop.f32.mrb[0].mxu0
    %2003 = vmatprep.mubr.bf16.mxu0 0
    %2004 = vmatmul.mubr.bf16.gmra.mrb[0].mxu0 %v143
    %v2005 = vpop.f32.mrb[0].mxu0
    %v2006 = vadd.f32 0.0, %v2005
    %v2007 = vpop.f32.mrb[0].mxu0
    %v2008 = vpop.f32.mrb[0].mxu0
    %v2009 = vadd.f32 0.0, %v2008
    %v2010 = vpop.f32.mrb[0].mxu0
    %2011 = vmatprep.mubr.bf16.mxu0 0
    %2012 = vmatmul.mubr.bf16.gmra.mrb[0].mxu0 %v191
    %v2013 = vpop.f32.mrb[0].mxu0
    %v2014 = vadd.f32 0.0, %v2013
    %v2015 = vpop.f32.mrb[0].mxu0
    %v2016 = vpop.f32.mrb[0].mxu0
    %v2017 = vpop.f32.mrb[0].mxu0
    %2018 = vmatprep.mubr.bf16.mxu0 0
    %2019 = vmatmul.mubr.bf16.gmra.mrb[0].mxu0 %v144
    %v2020 = vpop.f32.mrb[0].mxu0
    %v2021 = vadd.f32 0.0, %v2020
    %v2022 = vpop.f32.mrb[0].mxu0
    %v2023 = vpop.f32.mrb[0].mxu0
    %v2024 = vadd.f32 0.0, %v2023
    %v2025 = vpop.f32.mrb[0].mxu0
    %2026 = vmatprep.mubr.bf16.mxu0 0
    %2027 = vmatmul.mubr.bf16.gmra.mrb[0].mxu0 %v192
    %v2028 = vpop.f32.mrb[0].mxu0
    %v2029 = vadd.f32 0.0, %v2028
    %v2030 = vpop.f32.mrb[0].mxu0
    %v2031 = vpop.f32.mrb[0].mxu0
    %v2032 = vpop.f32.mrb[0].mxu0
    %2033 = vdwg.mxu0
    %v2058 = vrot.slane %v1739, 1
    %v2059 = vrot.slane %v1743, 1
    %v2060 = vsel %vm753, %v2058, %v2059
    %v2061 = vrot.slane %v1749, 1
    %v2062 = vsel %vm753, %v2059, %v2061
    %v2063 = vrot.slane %v1757, 1
    %v2064 = vrot.slane %v1761, 1
    %v2065 = vsel %vm753, %v2063, %v2064
    %v2066 = vrot.slane %v1767, 1
    %v2067 = vsel %vm753, %v2064, %v2066
    %v2068 = vrot.slane %v1775, 1
    %v2069 = vrot.slane %v1779, 1
    %v2070 = vsel %vm753, %v2068, %v2069
    %v2071 = vrot.slane %v1785, 1
    %v2072 = vsel %vm753, %v2069, %v2071
    %v2073 = vrot.slane %v1793, 1
    %v2074 = vrot.slane %v1797, 1
    %v2075 = vsel %vm753, %v2073, %v2074
    %v2076 = vrot.slane %v1803, 1
    %v2077 = vsel %vm753, %v2074, %v2076
    %v2078 = vrot.slane %v1811, 1
    %v2079 = vrot.slane %v1815, 1
    %v2080 = vsel %vm753, %v2078, %v2079
    %v2081 = vrot.slane %v1821, 1
    %v2082 = vsel %vm753, %v2079, %v2081
    %v2083 = vrot.slane %v1829, 1
    %v2084 = vrot.slane %v1833, 1
    %v2085 = vsel %vm753, %v2083, %v2084
    %v2086 = vrot.slane %v1839, 1
    %v2087 = vsel %vm753, %v2084, %v2086
    %v2088 = vrot.slane %v1847, 1
    %v2089 = vrot.slane %v1851, 1
    %v2090 = vsel %vm753, %v2088, %v2089
    %v2091 = vrot.slane %v1857, 1
    %v2092 = vsel %vm753, %v2089, %v2091
    %v2093 = vrot.slane %v1865, 1
    %v2094 = vrot.slane %v1869, 1
    %v2095 = vsel %vm753, %v2093, %v2094
    %v2096 = vrot.slane %v1875, 1
    %v2097 = vsel %vm753, %v2094, %v2096
    %2098 = vrot.lane.b32.xlu0 %v2060, 64
    %v2099 = vpop.permute.xlu0 %2098
    %2100 = vrot.lane.b32.xlu0 %v2062, 64
    %v2101 = vpop.permute.xlu0 %2100
    %2102 = vrot.lane.b32.xlu0 %v2065, 64
    %v2103 = vpop.permute.xlu0 %2102
    %2104 = vrot.lane.b32.xlu0 %v2067, 64
    %v2105 = vpop.permute.xlu0 %2104
    %2106 = vrot.lane.b32.xlu0 %v2070, 64
    %v2107 = vpop.permute.xlu0 %2106
    %2108 = vrot.lane.b32.xlu0 %v2072, 64
    %v2109 = vpop.permute.xlu0 %2108
    %2110 = vrot.lane.b32.xlu0 %v2075, 64
    %v2111 = vpop.permute.xlu0 %2110
    %2112 = vrot.lane.b32.xlu0 %v2077, 64
    %v2113 = vpop.permute.xlu0 %2112
    %2114 = vrot.lane.b32.xlu0 %v2080, 64
    %v2115 = vpop.permute.xlu0 %2114
    %2116 = vrot.lane.b32.xlu0 %v2082, 64
    %v2117 = vpop.permute.xlu0 %2116
    %2118 = vrot.lane.b32.xlu0 %v2085, 64
    %v2119 = vpop.permute.xlu0 %2118
    %2120 = vrot.lane.b32.xlu0 %v2087, 64
    %v2121 = vpop.permute.xlu0 %2120
    %2122 = vrot.lane.b32.xlu0 %v2090, 64
    %v2123 = vpop.permute.xlu0 %2122
    %2124 = vrot.lane.b32.xlu0 %v2092, 64
    %v2125 = vpop.permute.xlu0 %2124
    %2126 = vrot.lane.b32.xlu0 %v2095, 64
    %v2127 = vpop.permute.xlu0 %2126
    %2128 = vrot.lane.b32.xlu0 %v2097, 64
    %v2129 = vpop.permute.xlu0 %2128
    %v2146 = vadd.f32 %v1739, %v2099
    %v2147 = vadd.f32 %v1743, %v2101
    %v2148 = vadd.f32 %v1757, %v2103
    %v2149 = vadd.f32 %v1761, %v2105
    %v2150 = vadd.f32 %v1775, %v2107
    %v2151 = vadd.f32 %v1779, %v2109
    %v2152 = vadd.f32 %v1793, %v2111
    %v2153 = vadd.f32 %v1797, %v2113
    %v2154 = vadd.f32 %v1811, %v2115
    %v2155 = vadd.f32 %v1815, %v2117
    %v2156 = vadd.f32 %v1829, %v2119
    %v2157 = vadd.f32 %v1833, %v2121
    %v2158 = vadd.f32 %v1847, %v2123
    %v2159 = vadd.f32 %v1851, %v2125
    %v2160 = vadd.f32 %v1865, %v2127
    %v2161 = vadd.f32 %v1869, %v2129
    %v2186 = vrot.slane %v1741, 2
    %v2187 = vrot.slane %v1745, 2
    %v2188 = vsel %vm1377, %v2186, %v2187
    %v2189 = vrot.slane %v1751, 2
    %v2190 = vsel %vm1377, %v2187, %v2189
    %v2191 = vrot.slane %v1759, 2
    %v2192 = vrot.slane %v1763, 2
    %v2193 = vsel %vm1377, %v2191, %v2192
    %v2194 = vrot.slane %v1769, 2
    %v2195 = vsel %vm1377, %v2192, %v2194
    %v2196 = vrot.slane %v1777, 2
    %v2197 = vrot.slane %v1781, 2
    %v2198 = vsel %vm1377, %v2196, %v2197
    %v2199 = vrot.slane %v1787, 2
    %v2200 = vsel %vm1377, %v2197, %v2199
    %v2201 = vrot.slane %v1795, 2
    %v2202 = vrot.slane %v1799, 2
    %v2203 = vsel %vm1377, %v2201, %v2202
    %v2204 = vrot.slane %v1805, 2
    %v2205 = vsel %vm1377, %v2202, %v2204
    %v2206 = vrot.slane %v1813, 2
    %v2207 = vrot.slane %v1817, 2
    %v2208 = vsel %vm1377, %v2206, %v2207
    %v2209 = vrot.slane %v1823, 2
    %v2210 = vsel %vm1377, %v2207, %v2209
    %v2211 = vrot.slane %v1831, 2
    %v2212 = vrot.slane %v1835, 2
    %v2213 = vsel %vm1377, %v2211, %v2212
    %v2214 = vrot.slane %v1841, 2
    %v2215 = vsel %vm1377, %v2212, %v2214
    %v2216 = vrot.slane %v1849, 2
    %v2217 = vrot.slane %v1853, 2
    %v2218 = vsel %vm1377, %v2216, %v2217
    %v2219 = vrot.slane %v1859, 2
    %v2220 = vsel %vm1377, %v2217, %v2219
    %v2221 = vrot.slane %v1867, 2
    %v2222 = vrot.slane %v1871, 2
    %v2223 = vsel %vm1377, %v2221, %v2222
    %v2224 = vrot.slane %v1877, 2
    %v2225 = vsel %vm1377, %v2222, %v2224
    %v2242 = vadd.f32 %v2146, %v2188
    %v2243 = vadd.f32 %v2147, %v2190
    %v2244 = vadd.f32 %v2148, %v2193
    %v2245 = vadd.f32 %v2149, %v2195
    %v2246 = vadd.f32 %v2150, %v2198
    %v2247 = vadd.f32 %v2151, %v2200
    %v2248 = vadd.f32 %v2152, %v2203
    %v2249 = vadd.f32 %v2153, %v2205
    %v2250 = vadd.f32 %v2154, %v2208
    %v2251 = vadd.f32 %v2155, %v2210
    %v2252 = vadd.f32 %v2156, %v2213
    %v2253 = vadd.f32 %v2157, %v2215
    %v2254 = vadd.f32 %v2158, %v2218
    %v2255 = vadd.f32 %v2159, %v2220
    %v2256 = vadd.f32 %v2160, %v2223
    %v2257 = vadd.f32 %v2161, %v2225
    %vm2258 = vcmask 1044480
    %v2259 = vrot.slane %v1741, 3
    %v2260 = vrot.slane %v1745, 3
    %v2261 = vsel %vm2258, %v2259, %v2260
    %v2262 = vrot.slane %v1751, 3
    %v2263 = vsel %vm2258, %v2260, %v2262
    %v2264 = vrot.slane %v1759, 3
    %v2265 = vrot.slane %v1763, 3
    %v2266 = vsel %vm2258, %v2264, %v2265
    %v2267 = vrot.slane %v1769, 3
    %v2268 = vsel %vm2258, %v2265, %v2267
    %v2269 = vrot.slane %v1777, 3
    %v2270 = vrot.slane %v1781, 3
    %v2271 = vsel %vm2258, %v2269, %v2270
    %v2272 = vrot.slane %v1787, 3
    %v2273 = vsel %vm2258, %v2270, %v2272
    %v2274 = vrot.slane %v1795, 3
    %v2275 = vrot.slane %v1799, 3
    %v2276 = vsel %vm2258, %v2274, %v2275
    %v2277 = vrot.slane %v1805, 3
    %v2278 = vsel %vm2258, %v2275, %v2277
    %v2279 = vrot.slane %v1813, 3
    %v2280 = vrot.slane %v1817, 3
    %v2281 = vsel %vm2258, %v2279, %v2280
    %v2282 = vrot.slane %v1823, 3
    %v2283 = vsel %vm2258, %v2280, %v2282
    %v2284 = vrot.slane %v1831, 3
    %v2285 = vrot.slane %v1835, 3
    %v2286 = vsel %vm2258, %v2284, %v2285
    %v2287 = vrot.slane %v1841, 3
    %v2288 = vsel %vm2258, %v2285, %v2287
    %v2289 = vrot.slane %v1849, 3
    %v2290 = vrot.slane %v1853, 3
    %v2291 = vsel %vm2258, %v2289, %v2290
    %v2292 = vrot.slane %v1859, 3
    %v2293 = vsel %vm2258, %v2290, %v2292
    %v2294 = vrot.slane %v1867, 3
    %v2295 = vrot.slane %v1871, 3
    %v2296 = vsel %vm2258, %v2294, %v2295
    %v2297 = vrot.slane %v1877, 3
    %v2298 = vsel %vm2258, %v2295, %v2297
    %2299 = vrot.lane.b32.xlu0 %v2261, 64
    %v2300 = vpop.permute.xlu0 %2299
    %2301 = vrot.lane.b32.xlu0 %v2263, 64
    %v2302 = vpop.permute.xlu0 %2301
    %2303 = vrot.lane.b32.xlu0 %v2266, 64
    %v2304 = vpop.permute.xlu0 %2303
    %2305 = vrot.lane.b32.xlu0 %v2268, 64
    %v2306 = vpop.permute.xlu0 %2305
    %2307 = vrot.lane.b32.xlu0 %v2271, 64
    %v2308 = vpop.permute.xlu0 %2307
    %2309 = vrot.lane.b32.xlu0 %v2273, 64
    %v2310 = vpop.permute.xlu0 %2309
    %2311 = vrot.lane.b32.xlu0 %v2276, 64
    %v2312 = vpop.permute.xlu0 %2311
    %2313 = vrot.lane.b32.xlu0 %v2278, 64
    %v2314 = vpop.permute.xlu0 %2313
    %2315 = vrot.lane.b32.xlu0 %v2281, 64
    %v2316 = vpop.permute.xlu0 %2315
    %2317 = vrot.lane.b32.xlu0 %v2283, 64
    %v2318 = vpop.permute.xlu0 %2317
    %2319 = vrot.lane.b32.xlu0 %v2286, 64
    %v2320 = vpop.permute.xlu0 %2319
    %2321 = vrot.lane.b32.xlu0 %v2288, 64
    %v2322 = vpop.permute.xlu0 %2321
    %2323 = vrot.lane.b32.xlu0 %v2291, 64
    %v2324 = vpop.permute.xlu0 %2323
    %2325 = vrot.lane.b32.xlu0 %v2293, 64
    %v2326 = vpop.permute.xlu0 %2325
    %2327 = vrot.lane.b32.xlu0 %v2296, 64
    %v2328 = vpop.permute.xlu0 %2327
    %2329 = vrot.lane.b32.xlu0 %v2298, 64
    %v2330 = vpop.permute.xlu0 %2329
    %v2347 = vadd.f32 %v2242, %v2300
    %v2348 = vadd.f32 %v2243, %v2302
    %v2349 = vadd.f32 %v2244, %v2304
    %v2350 = vadd.f32 %v2245, %v2306
    %v2351 = vadd.f32 %v2246, %v2308
    %v2352 = vadd.f32 %v2247, %v2310
    %v2353 = vadd.f32 %v2248, %v2312
    %v2354 = vadd.f32 %v2249, %v2314
    %v2355 = vadd.f32 %v2250, %v2316
    %v2356 = vadd.f32 %v2251, %v2318
    %v2357 = vadd.f32 %v2252, %v2320
    %v2358 = vadd.f32 %v2253, %v2322
    %v2359 = vadd.f32 %v2254, %v2324
    %v2360 = vadd.f32 %v2255, %v2326
    %v2361 = vadd.f32 %v2256, %v2328
    %v2362 = vadd.f32 %v2257, %v2330
    %vm2387 = vcmask 1043456
    %v2388 = vrot.slane %v1916, 4
    %v2389 = vrot.slane %v1919, 4
    %v2390 = vsel %vm2387, %v2388, %v2389
    %v2391 = vrot.slane %v1924, 4
    %v2392 = vsel %vm2387, %v2389, %v2391
    %v2393 = vrot.slane %v1931, 4
    %v2394 = vrot.slane %v1934, 4
    %v2395 = vsel %vm2387, %v2393, %v2394
    %v2396 = vrot.slane %v1939, 4
    %v2397 = vsel %vm2387, %v2394, %v2396
    %v2398 = vrot.slane %v1946, 4
    %v2399 = vrot.slane %v1949, 4
    %v2400 = vsel %vm2387, %v2398, %v2399
    %v2401 = vrot.slane %v1954, 4
    %v2402 = vsel %vm2387, %v2399, %v2401
    %v2403 = vrot.slane %v1961, 4
    %v2404 = vrot.slane %v1964, 4
    %v2405 = vsel %vm2387, %v2403, %v2404
    %v2406 = vrot.slane %v1969, 4
    %v2407 = vsel %vm2387, %v2404, %v2406
    %v2408 = vrot.slane %v1976, 4
    %v2409 = vrot.slane %v1979, 4
    %v2410 = vsel %vm2387, %v2408, %v2409
    %v2411 = vrot.slane %v1984, 4
    %v2412 = vsel %vm2387, %v2409, %v2411
    %v2413 = vrot.slane %v1991, 4
    %v2414 = vrot.slane %v1994, 4
    %v2415 = vsel %vm2387, %v2413, %v2414
    %v2416 = vrot.slane %v1999, 4
    %v2417 = vsel %vm2387, %v2414, %v2416
    %v2418 = vrot.slane %v2006, 4
    %v2419 = vrot.slane %v2009, 4
    %v2420 = vsel %vm2387, %v2418, %v2419
    %v2421 = vrot.slane %v2014, 4
    %v2422 = vsel %vm2387, %v2419, %v2421
    %v2423 = vrot.slane %v2021, 4
    %v2424 = vrot.slane %v2024, 4
    %v2425 = vsel %vm2387, %v2423, %v2424
    %v2426 = vrot.slane %v2029, 4
    %v2427 = vsel %vm2387, %v2424, %v2426
    %v2444 = vadd.f32 %v2347, %v2390
    %v2445 = vadd.f32 %v2348, %v2392
    %v2446 = vadd.f32 %v2349, %v2395
    %v2447 = vadd.f32 %v2350, %v2397
    %v2448 = vadd.f32 %v2351, %v2400
    %v2449 = vadd.f32 %v2352, %v2402
    %v2450 = vadd.f32 %v2353, %v2405
    %v2451 = vadd.f32 %v2354, %v2407
    %v2452 = vadd.f32 %v2355, %v2410
    %v2453 = vadd.f32 %v2356, %v2412
    %v2454 = vadd.f32 %v2357, %v2415
    %v2455 = vadd.f32 %v2358, %v2417
    %v2456 = vadd.f32 %v2359, %v2420
    %v2457 = vadd.f32 %v2360, %v2422
    %v2458 = vadd.f32 %v2361, %v2425
    %v2459 = vadd.f32 %v2362, %v2427
    %vm2460 = vcmp.le.s32.totalorder %v206, 11
    %vm2461 = vcmp.le.s32.totalorder %v207, 11
    %v2462 = vsel %vm2460, 1, 0
    %v2463 = vsel %vm2461, 1, 0
    %vm2464 = vcmp.eq.s32.totalorder %v2462, 1
    %vm2465 = vcmp.eq.s32.totalorder %v2463, 1
    %v2466 = vsel %vm2464, %v2444, -inf
    %v2467 = vsel %vm2465, %v2445, -inf
    %v2468 = vsel %vm2464, %v2446, -inf
    %v2469 = vsel %vm2465, %v2447, -inf
    %v2470 = vsel %vm2464, %v2448, -inf
    %v2471 = vsel %vm2465, %v2449, -inf
    %v2472 = vsel %vm2464, %v2450, -inf
    %v2473 = vsel %vm2465, %v2451, -inf
    %v2474 = vsel %vm2464, %v2452, -inf
    %v2475 = vsel %vm2465, %v2453, -inf
    %v2476 = vsel %vm2464, %v2454, -inf
    %v2477 = vsel %vm2465, %v2455, -inf
    %v2478 = vsel %vm2464, %v2456, -inf
    %v2479 = vsel %vm2465, %v2457, -inf
    %v2480 = vsel %vm2464, %v2458, -inf
    %v2481 = vsel %vm2465, %v2459, -inf
    %v2482 = vsel %vm439, %v2466, -inf
    %v2483 = vsel %vm439, %v2467, -inf
    %v2484 = vmax.f32 %v2482, %v2483
    %v2485 = vrot.slane %v2484, 4
    %v2486 = vmax.f32 %v2484, %v2485
    %v2487 = vrot.slane %v2486, 2
    %v2488 = vmax.f32 %v2486, %v2487
    %v2489 = vrot.slane %v2488, 1
    %v2490 = vmax.f32 %v2488, %v2489
    %v2491 = vsel %vm439, %v2468, -inf
    %v2492 = vsel %vm439, %v2469, -inf
    %v2493 = vmax.f32 %v2491, %v2492
    %v2494 = vrot.slane %v2493, 4
    %v2495 = vmax.f32 %v2493, %v2494
    %v2496 = vrot.slane %v2495, 2
    %v2497 = vmax.f32 %v2495, %v2496
    %v2498 = vrot.slane %v2497, 1
    %v2499 = vmax.f32 %v2497, %v2498
    %v2500 = vsel %vm439, %v2470, -inf
    %v2501 = vsel %vm439, %v2471, -inf
    %v2502 = vmax.f32 %v2500, %v2501
    %v2503 = vrot.slane %v2502, 4
    %v2504 = vmax.f32 %v2502, %v2503
    %v2505 = vrot.slane %v2504, 2
    %v2506 = vmax.f32 %v2504, %v2505
    %v2507 = vrot.slane %v2506, 1
    %v2508 = vmax.f32 %v2506, %v2507
    %v2509 = vsel %vm439, %v2472, -inf
    %v2510 = vsel %vm439, %v2473, -inf
    %v2511 = vmax.f32 %v2509, %v2510
    %v2512 = vrot.slane %v2511, 4
    %v2513 = vmax.f32 %v2511, %v2512
    %v2514 = vrot.slane %v2513, 2
    %v2515 = vmax.f32 %v2513, %v2514
    %v2516 = vrot.slane %v2515, 1
    %v2517 = vmax.f32 %v2515, %v2516
    %v2518 = vsel %vm439, %v2474, -inf
    %v2519 = vsel %vm439, %v2475, -inf
    %v2520 = vmax.f32 %v2518, %v2519
    %v2521 = vrot.slane %v2520, 4
    %v2522 = vmax.f32 %v2520, %v2521
    %v2523 = vrot.slane %v2522, 2
    %v2524 = vmax.f32 %v2522, %v2523
    %v2525 = vrot.slane %v2524, 1
    %v2526 = vmax.f32 %v2524, %v2525
    %v2527 = vsel %vm439, %v2476, -inf
    %v2528 = vsel %vm439, %v2477, -inf
    %v2529 = vmax.f32 %v2527, %v2528
    %v2530 = vrot.slane %v2529, 4
    %v2531 = vmax.f32 %v2529, %v2530
    %v2532 = vrot.slane %v2531, 2
    %v2533 = vmax.f32 %v2531, %v2532
    %v2534 = vrot.slane %v2533, 1
    %v2535 = vmax.f32 %v2533, %v2534
    %v2536 = vsel %vm439, %v2478, -inf
    %v2537 = vsel %vm439, %v2479, -inf
    %v2538 = vmax.f32 %v2536, %v2537
    %v2539 = vrot.slane %v2538, 4
    %v2540 = vmax.f32 %v2538, %v2539
    %v2541 = vrot.slane %v2540, 2
    %v2542 = vmax.f32 %v2540, %v2541
    %v2543 = vrot.slane %v2542, 1
    %v2544 = vmax.f32 %v2542, %v2543
    %v2545 = vsel %vm439, %v2480, -inf
    %v2546 = vsel %vm439, %v2481, -inf
    %v2547 = vmax.f32 %v2545, %v2546
    %v2548 = vrot.slane %v2547, 4
    %v2549 = vmax.f32 %v2547, %v2548
    %v2550 = vrot.slane %v2549, 2
    %v2551 = vmax.f32 %v2549, %v2550
    %v2552 = vrot.slane %v2551, 1
    %v2553 = vmax.f32 %v2551, %v2552
    %v2554 = vld [vmem:[#allocation3 + $0x1c] sm:$0xff]
    %v2555 = vld [vmem:[#allocation3 + $0x24] sm:$0xff]
    %v2556 = vld [vmem:[#allocation3 + $0x2c] sm:$0xf]
    %v2557 = vld [vmem:[#allocation3 + $0x4c] sm:$0xff]
    %v2558 = vld [vmem:[#allocation3 + $0x54] sm:$0xff]
    %v2559 = vld [vmem:[#allocation3 + $0x5c] sm:$0xf]
    %v2560 = vld [vmem:[#allocation3 + $0x7c] sm:$0xff]
    %v2561 = vld [vmem:[#allocation3 + $0x84] sm:$0xff]
    %v2562 = vld [vmem:[#allocation3 + $0x8c] sm:$0xf]
    %v2563 = vld [vmem:[#allocation3 + $0xac] sm:$0xff]
    %v2564 = vld [vmem:[#allocation3 + $0xb4] sm:$0xff]
    %v2565 = vld [vmem:[#allocation3 + $0xbc] sm:$0xf]
    %v2566 = vld [vmem:[#allocation3 + $0xdc] sm:$0xff]
    %v2567 = vld [vmem:[#allocation3 + $0xe4] sm:$0xff]
    %v2568 = vld [vmem:[#allocation3 + $0xec] sm:$0xf]
    %v2569 = vld [vmem:[#allocation3 + $0x10c] sm:$0xff]
    %v2570 = vld [vmem:[#allocation3 + $0x114] sm:$0xff]
    %v2571 = vld [vmem:[#allocation3 + $0x11c] sm:$0xf]
    %v2572 = vld [vmem:[#allocation3 + $0x13c] sm:$0xff]
    %v2573 = vld [vmem:[#allocation3 + $0x144] sm:$0xff]
    %v2574 = vld [vmem:[#allocation3 + $0x14c] sm:$0xf]
    %v2575 = vld [vmem:[#allocation3 + $0x16c] sm:$0xff]
    %v2576 = vld [vmem:[#allocation3 + $0x174] sm:$0xff]
    %v2577 = vld [vmem:[#allocation3 + $0x17c] sm:$0xf]
    %v2578 = vld [vmem:[#allocation3 + $0x19c] sm:$0xff]
    %v2579 = vld [vmem:[#allocation3 + $0x1a4] sm:$0xff]
    %v2580 = vld [vmem:[#allocation3 + $0x1ac] sm:$0xf]
    %v2581 = vld [vmem:[#allocation3 + $0x1cc] sm:$0xff]
    %v2582 = vld [vmem:[#allocation3 + $0x1d4] sm:$0xff]
    %v2583 = vld [vmem:[#allocation3 + $0x1dc] sm:$0xf]
    %v2584 = vld [vmem:[#allocation3 + $0x1fc] sm:$0xff]
    %v2585 = vld [vmem:[#allocation3 + $0x204] sm:$0xff]
    %v2586 = vld [vmem:[#allocation3 + $0x20c] sm:$0xf]
    %v2587 = vld [vmem:[#allocation3 + $0x22c] sm:$0xff]
    %v2588 = vld [vmem:[#allocation3 + $0x234] sm:$0xff]
    %v2589 = vld [vmem:[#allocation3 + $0x23c] sm:$0xf]
    %v2590 = vld [vmem:[#allocation3 + $0x25c] sm:$0xff]
    %v2591 = vld [vmem:[#allocation3 + $0x264] sm:$0xff]
    %v2592 = vld [vmem:[#allocation3 + $0x26c] sm:$0xf]
    %v2593 = vld [vmem:[#allocation3 + $0x28c] sm:$0xff]
    %v2594 = vld [vmem:[#allocation3 + $0x294] sm:$0xff]
    %v2595 = vld [vmem:[#allocation3 + $0x29c] sm:$0xf]
    %v2596 = vld [vmem:[#allocation3 + $0x2bc] sm:$0xff]
    %v2597 = vld [vmem:[#allocation3 + $0x2c4] sm:$0xff]
    %v2598 = vld [vmem:[#allocation3 + $0x2cc] sm:$0xf]
    %v2599 = vld [vmem:[#allocation3 + $0x2ec] sm:$0xff]
    %v2600 = vld [vmem:[#allocation3 + $0x2f4] sm:$0xff]
    %v2601 = vld [vmem:[#allocation3 + $0x2fc] sm:$0xf]
    %v2650 = vunpack.c.l.b16 %v2554
    %v2651 = vunpack.c.h.b16 %v2554
    %v2652 = vunpack.c.l.b16 %v2555
    %v2653 = vunpack.c.h.b16 %v2555
    %v2654 = vunpack.c.l.b16 %v2556
    %v2655 = vunpack.c.l.b16 %v2557
    %v2656 = vunpack.c.h.b16 %v2557
    %v2657 = vunpack.c.l.b16 %v2558
    %v2658 = vunpack.c.h.b16 %v2558
    %v2659 = vunpack.c.l.b16 %v2559
    %v2660 = vunpack.c.l.b16 %v2560
    %v2661 = vunpack.c.h.b16 %v2560
    %v2662 = vunpack.c.l.b16 %v2561
    %v2663 = vunpack.c.h.b16 %v2561
    %v2664 = vunpack.c.l.b16 %v2562
    %v2665 = vunpack.c.l.b16 %v2563
    %v2666 = vunpack.c.h.b16 %v2563
    %v2667 = vunpack.c.l.b16 %v2564
    %v2668 = vunpack.c.h.b16 %v2564
    %v2669 = vunpack.c.l.b16 %v2565
    %v2670 = vunpack.c.l.b16 %v2566
    %v2671 = vunpack.c.h.b16 %v2566
    %v2672 = vunpack.c.l.b16 %v2567
    %v2673 = vunpack.c.h.b16 %v2567
    %v2674 = vunpack.c.l.b16 %v2568
    %v2675 = vunpack.c.l.b16 %v2569
    %v2676 = vunpack.c.h.b16 %v2569
    %v2677 = vunpack.c.l.b16 %v2570
    %v2678 = vunpack.c.h.b16 %v2570
    %v2679 = vunpack.c.l.b16 %v2571
    %v2680 = vunpack.c.l.b16 %v2572
    %v2681 = vunpack.c.h.b16 %v2572
    %v2682 = vunpack.c.l.b16 %v2573
    %v2683 = vunpack.c.h.b16 %v2573
    %v2684 = vunpack.c.l.b16 %v2574
    %v2685 = vunpack.c.l.b16 %v2575
    %v2686 = vunpack.c.h.b16 %v2575
    %v2687 = vunpack.c.l.b16 %v2576
    %v2688 = vunpack.c.h.b16 %v2576
    %v2689 = vunpack.c.l.b16 %v2577
    %v2690 = vunpack.c.l.b16 %v2578
    %v2691 = vunpack.c.h.b16 %v2578
    %v2692 = vunpack.c.l.b16 %v2579
    %v2693 = vunpack.c.h.b16 %v2579
    %v2694 = vunpack.c.l.b16 %v2580
    %v2695 = vunpack.c.l.b16 %v2581
    %v2696 = vunpack.c.h.b16 %v2581
    %v2697 = vunpack.c.l.b16 %v2582
    %v2698 = vunpack.c.h.b16 %v2582
    %v2699 = vunpack.c.l.b16 %v2583
    %v2700 = vunpack.c.l.b16 %v2584
    %v2701 = vunpack.c.h.b16 %v2584
    %v2702 = vunpack.c.l.b16 %v2585
    %v2703 = vunpack.c.h.b16 %v2585
    %v2704 = vunpack.c.l.b16 %v2586
    %v2705 = vunpack.c.l.b16 %v2587
    %v2706 = vunpack.c.h.b16 %v2587
    %v2707 = vunpack.c.l.b16 %v2588
    %v2708 = vunpack.c.h.b16 %v2588
    %v2709 = vunpack.c.l.b16 %v2589
    %v2710 = vunpack.c.l.b16 %v2590
    %v2711 = vunpack.c.h.b16 %v2590
    %v2712 = vunpack.c.l.b16 %v2591
    %v2713 = vunpack.c.h.b16 %v2591
    %v2714 = vunpack.c.l.b16 %v2592
    %v2715 = vunpack.c.l.b16 %v2593
    %v2716 = vunpack.c.h.b16 %v2593
    %v2717 = vunpack.c.l.b16 %v2594
    %v2718 = vunpack.c.h.b16 %v2594
    %v2719 = vunpack.c.l.b16 %v2595
    %v2720 = vunpack.c.l.b16 %v2596
    %v2721 = vunpack.c.h.b16 %v2596
    %v2722 = vunpack.c.l.b16 %v2597
    %v2723 = vunpack.c.h.b16 %v2597
    %v2724 = vunpack.c.l.b16 %v2598
    %v2725 = vunpack.c.l.b16 %v2599
    %v2726 = vunpack.c.h.b16 %v2599
    %v2727 = vunpack.c.l.b16 %v2600
    %v2728 = vunpack.c.h.b16 %v2600
    %v2729 = vunpack.c.l.b16 %v2601
    %v2730 = vpack.c.b16 %v2655, %v2650
    %v2731 = vpack.c.b16 %v2656, %v2651
    %v2732 = vpack.c.b16 %v2657, %v2652
    %v2733 = vpack.c.b16 %v2658, %v2653
    %v2734 = vpack.c.b16 %v2659, %v2654
    %v2735 = vpack.c.b16 %v2665, %v2660
    %v2736 = vpack.c.b16 %v2666, %v2661
    %v2737 = vpack.c.b16 %v2667, %v2662
    %v2738 = vpack.c.b16 %v2668, %v2663
    %v2739 = vpack.c.b16 %v2669, %v2664
    %v2740 = vpack.c.b16 %v2675, %v2670
    %v2741 = vpack.c.b16 %v2676, %v2671
    %v2742 = vpack.c.b16 %v2677, %v2672
    %v2743 = vpack.c.b16 %v2678, %v2673
    %v2744 = vpack.c.b16 %v2679, %v2674
    %v2745 = vpack.c.b16 %v2685, %v2680
    %v2746 = vpack.c.b16 %v2686, %v2681
    %v2747 = vpack.c.b16 %v2687, %v2682
    %v2748 = vpack.c.b16 %v2688, %v2683
    %v2749 = vpack.c.b16 %v2689, %v2684
    %v2750 = vpack.c.b16 %v2695, %v2690
    %v2751 = vpack.c.b16 %v2696, %v2691
    %v2752 = vpack.c.b16 %v2697, %v2692
    %v2753 = vpack.c.b16 %v2698, %v2693
    %v2754 = vpack.c.b16 %v2699, %v2694
    %v2755 = vpack.c.b16 %v2705, %v2700
    %v2756 = vpack.c.b16 %v2706, %v2701
    %v2757 = vpack.c.b16 %v2707, %v2702
    %v2758 = vpack.c.b16 %v2708, %v2703
    %v2759 = vpack.c.b16 %v2709, %v2704
    %v2760 = vpack.c.b16 %v2715, %v2710
    %v2761 = vpack.c.b16 %v2716, %v2711
    %v2762 = vpack.c.b16 %v2717, %v2712
    %v2763 = vpack.c.b16 %v2718, %v2713
    %v2764 = vpack.c.b16 %v2719, %v2714
    %v2765 = vpack.c.b16 %v2725, %v2720
    %v2766 = vpack.c.b16 %v2726, %v2721
    %v2767 = vpack.c.b16 %v2727, %v2722
    %v2768 = vpack.c.b16 %v2728, %v2723
    %v2769 = vpack.c.b16 %v2729, %v2724
    %2810 = vmatprep.subr.bf16.mxu0 %v2731
    %2811 = vmatpush1.bf16.msra.mxu0 %v2730
    %2812 = vmatprep.subr.bf16.mxu0 %v2736
    %2813 = vmatpush1.bf16.msra.mxu0 %v2735
    %2814 = vmatprep.subr.bf16.mxu0 %v2741
    %2815 = vmatpush1.bf16.msra.mxu0 %v2740
    %2816 = vmatprep.subr.bf16.mxu0 %v2746
    %2817 = vmatpush1.bf16.msra.mxu0 %v2745
    %2818 = vmatprep.subr.bf16.mxu0 %v2751
    %2819 = vmatpush1.bf16.msra.mxu0 %v2750
    %2820 = vmatprep.subr.bf16.mxu0 %v2756
    %2821 = vmatpush1.bf16.msra.mxu0 %v2755
    %2822 = vmatprep.subr.bf16.mxu0 %v2761
    %2823 = vmatpush1.bf16.msra.mxu0 %v2760
    %2824 = vmatprep.subr.bf16.mxu0 %v2766
    %2825 = vmatpush1.bf16.msra.mxu0 %v2765
    %2826 = vmatprep.subr.bf16.mxu0 0
    %2827 = vmatpush1.bf16.msra.mxu0 0
    %2828 = vmatprep.subr.bf16.mxu0 0
    %2829 = vmatpush1.bf16.msra.mxu0 0
    %2830 = vmatprep.subr.bf16.mxu0 0
    %2831 = vmatpush1.bf16.msra.mxu0 0
    %2832 = vmatprep.subr.bf16.mxu0 0
    %2833 = vmatpush1.bf16.msra.mxu0 0
    %2834 = vmatprep.subr.bf16.mxu0 0
    %2835 = vmatpush1.bf16.msra.mxu0 0
    %2836 = vmatprep.subr.bf16.mxu0 0
    %2837 = vmatpush1.bf16.msra.mxu0 0
    %2838 = vmatprep.subr.bf16.mxu0 0
    %2839 = vmatpush1.bf16.msra.mxu0 0
    %2840 = vmatprep.subr.bf16.mxu0 0
    %2841 = vmatpush1.bf16.msra.mxu0 0
    %2842 = vmatprep.mubr.bf16.mxu0 0
    %2843 = vmatmul.mubr.bf16.gmra.mrb[0].mxu0 %v137
    %v2844 = vpop.f32.mrb[0].mxu0
    %v2845 = vadd.f32 0.0, %v2844
    %v2846 = vpop.f32.mrb[0].mxu0
    %v2847 = vadd.f32 0.0, %v2846
    %v2848 = vpop.f32.mrb[0].mxu0
    %v2849 = vadd.f32 0.0, %v2848
    %v2850 = vpop.f32.mrb[0].mxu0
    %v2851 = vadd.f32 0.0, %v2850
    %2852 = vmatprep.mubr.bf16.mxu0 0
    %2853 = vmatmul.mubr.bf16.gmra.mrb[0].mxu0 %v185
    %v2854 = vpop.f32.mrb[0].mxu0
    %v2855 = vadd.f32 0.0, %v2854
    %v2856 = vpop.f32.mrb[0].mxu0
    %v2857 = vadd.f32 0.0, %v2856
    %v2858 = vpop.f32.mrb[0].mxu0
    %v2859 = vpop.f32.mrb[0].mxu0
    %2860 = vmatprep.mubr.bf16.mxu0 0
    %2861 = vmatmul.mubr.bf16.gmra.mrb[0].mxu0 %v138
    %v2862 = vpop.f32.mrb[0].mxu0
    %v2863 = vadd.f32 0.0, %v2862
    %v2864 = vpop.f32.mrb[0].mxu0
    %v2865 = vadd.f32 0.0, %v2864
    %v2866 = vpop.f32.mrb[0].mxu0
    %v2867 = vadd.f32 0.0, %v2866
    %v2868 = vpop.f32.mrb[0].mxu0
    %v2869 = vadd.f32 0.0, %v2868
    %2870 = vmatprep.mubr.bf16.mxu0 0
    %2871 = vmatmul.mubr.bf16.gmra.mrb[0].mxu0 %v186
    %v2872 = vpop.f32.mrb[0].mxu0
    %v2873 = vadd.f32 0.0, %v2872
    %v2874 = vpop.f32.mrb[0].mxu0
    %v2875 = vadd.f32 0.0, %v2874
    %v2876 = vpop.f32.mrb[0].mxu0
    %v2877 = vpop.f32.mrb[0].mxu0
    %2878 = vmatprep.mubr.bf16.mxu0 0
    %2879 = vmatmul.mubr.bf16.gmra.mrb[0].mxu0 %v139
    %v2880 = vpop.f32.mrb[0].mxu0
    %v2881 = vadd.f32 0.0, %v2880
    %v2882 = vpop.f32.mrb[0].mxu0
    %v2883 = vadd.f32 0.0, %v2882
    %v2884 = vpop.f32.mrb[0].mxu0
    %v2885 = vadd.f32 0.0, %v2884
    %v2886 = vpop.f32.mrb[0].mxu0
    %v2887 = vadd.f32 0.0, %v2886
    %2888 = vmatprep.mubr.bf16.mxu0 0
    %2889 = vmatmul.mubr.bf16.gmra.mrb[0].mxu0 %v187
    %v2890 = vpop.f32.mrb[0].mxu0
    %v2891 = vadd.f32 0.0, %v2890
    %v2892 = vpop.f32.mrb[0].mxu0
    %v2893 = vadd.f32 0.0, %v2892
    %v2894 = vpop.f32.mrb[0].mxu0
    %v2895 = vpop.f32.mrb[0].mxu0
    %2896 = vmatprep.mubr.bf16.mxu0 0
    %2897 = vmatmul.mubr.bf16.gmra.mrb[0].mxu0 %v140
    %v2898 = vpop.f32.mrb[0].mxu0
    %v2899 = vadd.f32 0.0, %v2898
    %v2900 = vpop.f32.mrb[0].mxu0
    %v2901 = vadd.f32 0.0, %v2900
    %v2902 = vpop.f32.mrb[0].mxu0
    %v2903 = vadd.f32 0.0, %v2902
    %v2904 = vpop.f32.mrb[0].mxu0
    %v2905 = vadd.f32 0.0, %v2904
    %2906 = vmatprep.mubr.bf16.mxu0 0
    %2907 = vmatmul.mubr.bf16.gmra.mrb[0].mxu0 %v188
    %v2908 = vpop.f32.mrb[0].mxu0
    %v2909 = vadd.f32 0.0, %v2908
    %v2910 = vpop.f32.mrb[0].mxu0
    %v2911 = vadd.f32 0.0, %v2910
    %v2912 = vpop.f32.mrb[0].mxu0
    %v2913 = vpop.f32.mrb[0].mxu0
    %2914 = vmatprep.mubr.bf16.mxu0 0
    %2915 = vmatmul.mubr.bf16.gmra.mrb[0].mxu0 %v141
    %v2916 = vpop.f32.mrb[0].mxu0
    %v2917 = vadd.f32 0.0, %v2916
    %v2918 = vpop.f32.mrb[0].mxu0
    %v2919 = vadd.f32 0.0, %v2918
    %v2920 = vpop.f32.mrb[0].mxu0
    %v2921 = vadd.f32 0.0, %v2920
    %v2922 = vpop.f32.mrb[0].mxu0
    %v2923 = vadd.f32 0.0, %v2922
    %2924 = vmatprep.mubr.bf16.mxu0 0
    %2925 = vmatmul.mubr.bf16.gmra.mrb[0].mxu0 %v189
    %v2926 = vpop.f32.mrb[0].mxu0
    %v2927 = vadd.f32 0.0, %v2926
    %v2928 = vpop.f32.mrb[0].mxu0
    %v2929 = vadd.f32 0.0, %v2928
    %v2930 = vpop.f32.mrb[0].mxu0
    %v2931 = vpop.f32.mrb[0].mxu0
    %2932 = vmatprep.mubr.bf16.mxu0 0
    %2933 = vmatmul.mubr.bf16.gmra.mrb[0].mxu0 %v142
    %v2934 = vpop.f32.mrb[0].mxu0
    %v2935 = vadd.f32 0.0, %v2934
    %v2936 = vpop.f32.mrb[0].mxu0
    %v2937 = vadd.f32 0.0, %v2936
    %v2938 = vpop.f32.mrb[0].mxu0
    %v2939 = vadd.f32 0.0, %v2938
    %v2940 = vpop.f32.mrb[0].mxu0
    %v2941 = vadd.f32 0.0, %v2940
    %2942 = vmatprep.mubr.bf16.mxu0 0
    %2943 = vmatmul.mubr.bf16.gmra.mrb[0].mxu0 %v190
    %v2944 = vpop.f32.mrb[0].mxu0
    %v2945 = vadd.f32 0.0, %v2944
    %v2946 = vpop.f32.mrb[0].mxu0
    %v2947 = vadd.f32 0.0, %v2946
    %v2948 = vpop.f32.mrb[0].mxu0
    %v2949 = vpop.f32.mrb[0].mxu0
    %2950 = vmatprep.mubr.bf16.mxu0 0
    %2951 = vmatmul.mubr.bf16.gmra.mrb[0].mxu0 %v143
    %v2952 = vpop.f32.mrb[0].mxu0
    %v2953 = vadd.f32 0.0, %v2952
    %v2954 = vpop.f32.mrb[0].mxu0
    %v2955 = vadd.f32 0.0, %v2954
    %v2956 = vpop.f32.mrb[0].mxu0
    %v2957 = vadd.f32 0.0, %v2956
    %v2958 = vpop.f32.mrb[0].mxu0
    %v2959 = vadd.f32 0.0, %v2958
    %2960 = vmatprep.mubr.bf16.mxu0 0
    %2961 = vmatmul.mubr.bf16.gmra.mrb[0].mxu0 %v191
    %v2962 = vpop.f32.mrb[0].mxu0
    %v2963 = vadd.f32 0.0, %v2962
    %v2964 = vpop.f32.mrb[0].mxu0
    %v2965 = vadd.f32 0.0, %v2964
    %v2966 = vpop.f32.mrb[0].mxu0
    %v2967 = vpop.f32.mrb[0].mxu0
    %2968 = vmatprep.mubr.bf16.mxu0 0
    %2969 = vmatmul.mubr.bf16.gmra.mrb[0].mxu0 %v144
    %v2970 = vpop.f32.mrb[0].mxu0
    %v2971 = vadd.f32 0.0, %v2970
    %v2972 = vpop.f32.mrb[0].mxu0
    %v2973 = vadd.f32 0.0, %v2972
    %v2974 = vpop.f32.mrb[0].mxu0
    %v2975 = vadd.f32 0.0, %v2974
    %v2976 = vpop.f32.mrb[0].mxu0
    %v2977 = vadd.f32 0.0, %v2976
    %2978 = vmatprep.mubr.bf16.mxu0 0
    %2979 = vmatmul.mubr.bf16.gmra.mrb[0].mxu0 %v192
    %v2980 = vpop.f32.mrb[0].mxu0
    %v2981 = vadd.f32 0.0, %v2980
    %v2982 = vpop.f32.mrb[0].mxu0
    %v2983 = vadd.f32 0.0, %v2982
    %v2984 = vpop.f32.mrb[0].mxu0
    %v2985 = vpop.f32.mrb[0].mxu0
    %2986 = vdwg.mxu0
    %2987 = vmatprep.subr.bf16.mxu0 %v2733
    %2988 = vmatpush1.bf16.msra.mxu0 %v2732
    %2989 = vmatprep.subr.bf16.mxu0 %v2738
    %2990 = vmatpush1.bf16.msra.mxu0 %v2737
    %2991 = vmatprep.subr.bf16.mxu0 %v2743
    %2992 = vmatpush1.bf16.msra.mxu0 %v2742
    %2993 = vmatprep.subr.bf16.mxu0 %v2748
    %2994 = vmatpush1.bf16.msra.mxu0 %v2747
    %2995 = vmatprep.subr.bf16.mxu0 %v2753
    %2996 = vmatpush1.bf16.msra.mxu0 %v2752
    %2997 = vmatprep.subr.bf16.mxu0 %v2758
    %2998 = vmatpush1.bf16.msra.mxu0 %v2757
    %2999 = vmatprep.subr.bf16.mxu0 %v2763
    %3000 = vmatpush1.bf16.msra.mxu0 %v2762
    %3001 = vmatprep.subr.bf16.mxu0 %v2768
    %3002 = vmatpush1.bf16.msra.mxu0 %v2767
    %3003 = vmatprep.subr.bf16.mxu0 0
    %3004 = vmatpush1.bf16.msra.mxu0 0
    %3005 = vmatprep.subr.bf16.mxu0 0
    %3006 = vmatpush1.bf16.msra.mxu0 0
    %3007 = vmatprep.subr.bf16.mxu0 0
    %3008 = vmatpush1.bf16.msra.mxu0 0
    %3009 = vmatprep.subr.bf16.mxu0 0
    %3010 = vmatpush1.bf16.msra.mxu0 0
    %3011 = vmatprep.subr.bf16.mxu0 0
    %3012 = vmatpush1.bf16.msra.mxu0 0
    %3013 = vmatprep.subr.bf16.mxu0 0
    %3014 = vmatpush1.bf16.msra.mxu0 0
    %3015 = vmatprep.subr.bf16.mxu0 0
    %3016 = vmatpush1.bf16.msra.mxu0 0
    %3017 = vmatprep.subr.bf16.mxu0 0
    %3018 = vmatpush1.bf16.msra.mxu0 0
    %3019 = vmatprep.mubr.bf16.mxu0 0
    %3020 = vmatmul.mubr.bf16.gmra.mrb[0].mxu0 %v137
    %v3021 = vpop.f32.mrb[0].mxu0
    %v3022 = vadd.f32 0.0, %v3021
    %v3023 = vpop.f32.mrb[0].mxu0
    %v3024 = vadd.f32 0.0, %v3023
    %v3025 = vpop.f32.mrb[0].mxu0
    %v3026 = vadd.f32 0.0, %v3025
    %v3027 = vpop.f32.mrb[0].mxu0
    %v3028 = vadd.f32 0.0, %v3027
    %3029 = vmatprep.mubr.bf16.mxu0 0
    %3030 = vmatmul.mubr.bf16.gmra.mrb[0].mxu0 %v185
    %v3031 = vpop.f32.mrb[0].mxu0
    %v3032 = vadd.f32 0.0, %v3031
    %v3033 = vpop.f32.mrb[0].mxu0
    %v3034 = vadd.f32 0.0, %v3033
    %v3035 = vpop.f32.mrb[0].mxu0
    %v3036 = vpop.f32.mrb[0].mxu0
    %3037 = vmatprep.mubr.bf16.mxu0 0
    %3038 = vmatmul.mubr.bf16.gmra.mrb[0].mxu0 %v138
    %v3039 = vpop.f32.mrb[0].mxu0
    %v3040 = vadd.f32 0.0, %v3039
    %v3041 = vpop.f32.mrb[0].mxu0
    %v3042 = vadd.f32 0.0, %v3041
    %v3043 = vpop.f32.mrb[0].mxu0
    %v3044 = vadd.f32 0.0, %v3043
    %v3045 = vpop.f32.mrb[0].mxu0
    %v3046 = vadd.f32 0.0, %v3045
    %3047 = vmatprep.mubr.bf16.mxu0 0
    %3048 = vmatmul.mubr.bf16.gmra.mrb[0].mxu0 %v186
    %v3049 = vpop.f32.mrb[0].mxu0
    %v3050 = vadd.f32 0.0, %v3049
    %v3051 = vpop.f32.mrb[0].mxu0
    %v3052 = vadd.f32 0.0, %v3051
    %v3053 = vpop.f32.mrb[0].mxu0
    %v3054 = vpop.f32.mrb[0].mxu0
    %3055 = vmatprep.mubr.bf16.mxu0 0
    %3056 = vmatmul.mubr.bf16.gmra.mrb[0].mxu0 %v139
    %v3057 = vpop.f32.mrb[0].mxu0
    %v3058 = vadd.f32 0.0, %v3057
    %v3059 = vpop.f32.mrb[0].mxu0
    %v3060 = vadd.f32 0.0, %v3059
    %v3061 = vpop.f32.mrb[0].mxu0
    %v3062 = vadd.f32 0.0, %v3061
    %v3063 = vpop.f32.mrb[0].mxu0
    %v3064 = vadd.f32 0.0, %v3063
    %3065 = vmatprep.mubr.bf16.mxu0 0
    %3066 = vmatmul.mubr.bf16.gmra.mrb[0].mxu0 %v187
    %v3067 = vpop.f32.mrb[0].mxu0
    %v3068 = vadd.f32 0.0, %v3067
    %v3069 = vpop.f32.mrb[0].mxu0
    %v3070 = vadd.f32 0.0, %v3069
    %v3071 = vpop.f32.mrb[0].mxu0
    %v3072 = vpop.f32.mrb[0].mxu0
    %3073 = vmatprep.mubr.bf16.mxu0 0
    %3074 = vmatmul.mubr.bf16.gmra.mrb[0].mxu0 %v140
    %v3075 = vpop.f32.mrb[0].mxu0
    %v3076 = vadd.f32 0.0, %v3075
    %v3077 = vpop.f32.mrb[0].mxu0
    %v3078 = vadd.f32 0.0, %v3077
    %v3079 = vpop.f32.mrb[0].mxu0
    %v3080 = vadd.f32 0.0, %v3079
    %v3081 = vpop.f32.mrb[0].mxu0
    %v3082 = vadd.f32 0.0, %v3081
    %3083 = vmatprep.mubr.bf16.mxu0 0
    %3084 = vmatmul.mubr.bf16.gmra.mrb[0].mxu0 %v188
    %v3085 = vpop.f32.mrb[0].mxu0
    %v3086 = vadd.f32 0.0, %v3085
    %v3087 = vpop.f32.mrb[0].mxu0
    %v3088 = vadd.f32 0.0, %v3087
    %v3089 = vpop.f32.mrb[0].mxu0
    %v3090 = vpop.f32.mrb[0].mxu0
    %3091 = vmatprep.mubr.bf16.mxu0 0
    %3092 = vmatmul.mubr.bf16.gmra.mrb[0].mxu0 %v141
    %v3093 = vpop.f32.mrb[0].mxu0
    %v3094 = vadd.f32 0.0, %v3093
    %v3095 = vpop.f32.mrb[0].mxu0
    %v3096 = vadd.f32 0.0, %v3095
    %v3097 = vpop.f32.mrb[0].mxu0
    %v3098 = vadd.f32 0.0, %v3097
    %v3099 = vpop.f32.mrb[0].mxu0
    %v3100 = vadd.f32 0.0, %v3099
    %3101 = vmatprep.mubr.bf16.mxu0 0
    %3102 = vmatmul.mubr.bf16.gmra.mrb[0].mxu0 %v189
    %v3103 = vpop.f32.mrb[0].mxu0
    %v3104 = vadd.f32 0.0, %v3103
    %v3105 = vpop.f32.mrb[0].mxu0
    %v3106 = vadd.f32 0.0, %v3105
    %v3107 = vpop.f32.mrb[0].mxu0
    %v3108 = vpop.f32.mrb[0].mxu0
    %3109 = vmatprep.mubr.bf16.mxu0 0
    %3110 = vmatmul.mubr.bf16.gmra.mrb[0].mxu0 %v142
    %v3111 = vpop.f32.mrb[0].mxu0
    %v3112 = vadd.f32 0.0, %v3111
    %v3113 = vpop.f32.mrb[0].mxu0
    %v3114 = vadd.f32 0.0, %v3113
    %v3115 = vpop.f32.mrb[0].mxu0
    %v3116 = vadd.f32 0.0, %v3115
    %v3117 = vpop.f32.mrb[0].mxu0
    %v3118 = vadd.f32 0.0, %v3117
    %3119 = vmatprep.mubr.bf16.mxu0 0
    %3120 = vmatmul.mubr.bf16.gmra.mrb[0].mxu0 %v190
    %v3121 = vpop.f32.mrb[0].mxu0
    %v3122 = vadd.f32 0.0, %v3121
    %v3123 = vpop.f32.mrb[0].mxu0
    %v3124 = vadd.f32 0.0, %v3123
    %v3125 = vpop.f32.mrb[0].mxu0
    %v3126 = vpop.f32.mrb[0].mxu0
    %3127 = vmatprep.mubr.bf16.mxu0 0
    %3128 = vmatmul.mubr.bf16.gmra.mrb[0].mxu0 %v143
    %v3129 = vpop.f32.mrb[0].mxu0
    %v3130 = vadd.f32 0.0, %v3129
    %v3131 = vpop.f32.mrb[0].mxu0
    %v3132 = vadd.f32 0.0, %v3131
    %v3133 = vpop.f32.mrb[0].mxu0
    %v3134 = vadd.f32 0.0, %v3133
    %v3135 = vpop.f32.mrb[0].mxu0
    %v3136 = vadd.f32 0.0, %v3135
    %3137 = vmatprep.mubr.bf16.mxu0 0
    %3138 = vmatmul.mubr.bf16.gmra.mrb[0].mxu0 %v191
    %v3139 = vpop.f32.mrb[0].mxu0
    %v3140 = vadd.f32 0.0, %v3139
    %v3141 = vpop.f32.mrb[0].mxu0
    %v3142 = vadd.f32 0.0, %v3141
    %v3143 = vpop.f32.mrb[0].mxu0
    %v3144 = vpop.f32.mrb[0].mxu0
    %3145 = vmatprep.mubr.bf16.mxu0 0
    %3146 = vmatmul.mubr.bf16.gmra.mrb[0].mxu0 %v144
    %v3147 = vpop.f32.mrb[0].mxu0
    %v3148 = vadd.f32 0.0, %v3147
    %v3149 = vpop.f32.mrb[0].mxu0
    %v3150 = vadd.f32 0.0, %v3149
    %v3151 = vpop.f32.mrb[0].mxu0
    %v3152 = vadd.f32 0.0, %v3151
    %v3153 = vpop.f32.mrb[0].mxu0
    %v3154 = vadd.f32 0.0, %v3153
    %3155 = vmatprep.mubr.bf16.mxu0 0
    %3156 = vmatmul.mubr.bf16.gmra.mrb[0].mxu0 %v192
    %v3157 = vpop.f32.mrb[0].mxu0
    %v3158 = vadd.f32 0.0, %v3157
    %v3159 = vpop.f32.mrb[0].mxu0
    %v3160 = vadd.f32 0.0, %v3159
    %v3161 = vpop.f32.mrb[0].mxu0
    %v3162 = vpop.f32.mrb[0].mxu0
    %3163 = vdwg.mxu0
    %3164 = vmatprep.subr.bf16.mxu0 0
    %3165 = vmatpush1.bf16.msra.mxu0 %v2734
    %3166 = vmatprep.subr.bf16.mxu0 0
    %3167 = vmatpush1.bf16.msra.mxu0 %v2739
    %3168 = vmatprep.subr.bf16.mxu0 0
    %3169 = vmatpush1.bf16.msra.mxu0 %v2744
    %3170 = vmatprep.subr.bf16.mxu0 0
    %3171 = vmatpush1.bf16.msra.mxu0 %v2749
    %3172 = vmatprep.subr.bf16.mxu0 0
    %3173 = vmatpush1.bf16.msra.mxu0 %v2754
    %3174 = vmatprep.subr.bf16.mxu0 0
    %3175 = vmatpush1.bf16.msra.mxu0 %v2759
    %3176 = vmatprep.subr.bf16.mxu0 0
    %3177 = vmatpush1.bf16.msra.mxu0 %v2764
    %3178 = vmatprep.subr.bf16.mxu0 0
    %3179 = vmatpush1.bf16.msra.mxu0 %v2769
    %3180 = vmatprep.subr.bf16.mxu0 0
    %3181 = vmatpush1.bf16.msra.mxu0 0
    %3182 = vmatprep.subr.bf16.mxu0 0
    %3183 = vmatpush1.bf16.msra.mxu0 0
    %3184 = vmatprep.subr.bf16.mxu0 0
    %3185 = vmatpush1.bf16.msra.mxu0 0
    %3186 = vmatprep.subr.bf16.mxu0 0
    %3187 = vmatpush1.bf16.msra.mxu0 0
    %3188 = vmatprep.subr.bf16.mxu0 0
    %3189 = vmatpush1.bf16.msra.mxu0 0
    %3190 = vmatprep.subr.bf16.mxu0 0
    %3191 = vmatpush1.bf16.msra.mxu0 0
    %3192 = vmatprep.subr.bf16.mxu0 0
    %3193 = vmatpush1.bf16.msra.mxu0 0
    %3194 = vmatprep.subr.bf16.mxu0 0
    %3195 = vmatpush1.bf16.msra.mxu0 0
    %3196 = vmatprep.mubr.bf16.mxu0 0
    %3197 = vmatmul.mubr.bf16.gmra.mrb[0].mxu0 %v137
    %v3198 = vpop.f32.mrb[0].mxu0
    %v3199 = vpop.f32.mrb[0].mxu0
    %v3200 = vpop.f32.mrb[0].mxu0
    %v3201 = vadd.f32 0.0, %v3200
    %v3202 = vpop.f32.mrb[0].mxu0
    %3203 = vmatprep.mubr.bf16.mxu0 0
    %3204 = vmatmul.mubr.bf16.gmra.mrb[0].mxu0 %v185
    %v3205 = vpop.f32.mrb[0].mxu0
    %v3206 = vadd.f32 0.0, %v3205
    %v3207 = vpop.f32.mrb[0].mxu0
    %v3208 = vpop.f32.mrb[0].mxu0
    %v3209 = vadd.f32 0.0, %v3208
    %v3210 = vpop.f32.mrb[0].mxu0
    %3211 = vmatprep.mubr.bf16.mxu0 0
    %3212 = vmatmul.mubr.bf16.gmra.mrb[0].mxu0 %v138
    %v3213 = vpop.f32.mrb[0].mxu0
    %v3214 = vpop.f32.mrb[0].mxu0
    %v3215 = vpop.f32.mrb[0].mxu0
    %v3216 = vadd.f32 0.0, %v3215
    %v3217 = vpop.f32.mrb[0].mxu0
    %3218 = vmatprep.mubr.bf16.mxu0 0
    %3219 = vmatmul.mubr.bf16.gmra.mrb[0].mxu0 %v186
    %v3220 = vpop.f32.mrb[0].mxu0
    %v3221 = vadd.f32 0.0, %v3220
    %v3222 = vpop.f32.mrb[0].mxu0
    %v3223 = vpop.f32.mrb[0].mxu0
    %v3224 = vadd.f32 0.0, %v3223
    %v3225 = vpop.f32.mrb[0].mxu0
    %3226 = vmatprep.mubr.bf16.mxu0 0
    %3227 = vmatmul.mubr.bf16.gmra.mrb[0].mxu0 %v139
    %v3228 = vpop.f32.mrb[0].mxu0
    %v3229 = vpop.f32.mrb[0].mxu0
    %v3230 = vpop.f32.mrb[0].mxu0
    %v3231 = vadd.f32 0.0, %v3230
    %v3232 = vpop.f32.mrb[0].mxu0
    %3233 = vmatprep.mubr.bf16.mxu0 0
    %3234 = vmatmul.mubr.bf16.gmra.mrb[0].mxu0 %v187
    %v3235 = vpop.f32.mrb[0].mxu0
    %v3236 = vadd.f32 0.0, %v3235
    %v3237 = vpop.f32.mrb[0].mxu0
    %v3238 = vpop.f32.mrb[0].mxu0
    %v3239 = vadd.f32 0.0, %v3238
    %v3240 = vpop.f32.mrb[0].mxu0
    %3241 = vmatprep.mubr.bf16.mxu0 0
    %3242 = vmatmul.mubr.bf16.gmra.mrb[0].mxu0 %v140
    %v3243 = vpop.f32.mrb[0].mxu0
    %v3244 = vpop.f32.mrb[0].mxu0
    %v3245 = vpop.f32.mrb[0].mxu0
    %v3246 = vadd.f32 0.0, %v3245
    %v3247 = vpop.f32.mrb[0].mxu0
    %3248 = vmatprep.mubr.bf16.mxu0 0
    %3249 = vmatmul.mubr.bf16.gmra.mrb[0].mxu0 %v188
    %v3250 = vpop.f32.mrb[0].mxu0
    %v3251 = vadd.f32 0.0, %v3250
    %v3252 = vpop.f32.mrb[0].mxu0
    %v3253 = vpop.f32.mrb[0].mxu0
    %v3254 = vadd.f32 0.0, %v3253
    %v3255 = vpop.f32.mrb[0].mxu0
    %3256 = vmatprep.mubr.bf16.mxu0 0
    %3257 = vmatmul.mubr.bf16.gmra.mrb[0].mxu0 %v141
    %v3258 = vpop.f32.mrb[0].mxu0
    %v3259 = vpop.f32.mrb[0].mxu0
    %v3260 = vpop.f32.mrb[0].mxu0
    %v3261 = vadd.f32 0.0, %v3260
    %v3262 = vpop.f32.mrb[0].mxu0
    %3263 = vmatprep.mubr.bf16.mxu0 0
    %3264 = vmatmul.mubr.bf16.gmra.mrb[0].mxu0 %v189
    %v3265 = vpop.f32.mrb[0].mxu0
    %v3266 = vadd.f32 0.0, %v3265
    %v3267 = vpop.f32.mrb[0].mxu0
    %v3268 = vpop.f32.mrb[0].mxu0
    %v3269 = vadd.f32 0.0, %v3268
    %v3270 = vpop.f32.mrb[0].mxu0
    %3271 = vmatprep.mubr.bf16.mxu0 0
    %3272 = vmatmul.mubr.bf16.gmra.mrb[0].mxu0 %v142
    %v3273 = vpop.f32.mrb[0].mxu0
    %v3274 = vpop.f32.mrb[0].mxu0
    %v3275 = vpop.f32.mrb[0].mxu0
    %v3276 = vadd.f32 0.0, %v3275
    %v3277 = vpop.f32.mrb[0].mxu0
    %3278 = vmatprep.mubr.bf16.mxu0 0
    %3279 = vmatmul.mubr.bf16.gmra.mrb[0].mxu0 %v190
    %v3280 = vpop.f32.mrb[0].mxu0
    %v3281 = vadd.f32 0.0, %v3280
    %v3282 = vpop.f32.mrb[0].mxu0
    %v3283 = vpop.f32.mrb[0].mxu0
    %v3284 = vadd.f32 0.0, %v3283
    %v3285 = vpop.f32.mrb[0].mxu0
    %3286 = vmatprep.mubr.bf16.mxu0 0
    %3287 = vmatmul.mubr.bf16.gmra.mrb[0].mxu0 %v143
    %v3288 = vpop.f32.mrb[0].mxu0
    %v3289 = vpop.f32.mrb[0].mxu0
    %v3290 = vpop.f32.mrb[0].mxu0
    %v3291 = vadd.f32 0.0, %v3290
    %v3292 = vpop.f32.mrb[0].mxu0
    %3293 = vmatprep.mubr.bf16.mxu0 0
    %3294 = vmatmul.mubr.bf16.gmra.mrb[0].mxu0 %v191
    %v3295 = vpop.f32.mrb[0].mxu0
    %v3296 = vadd.f32 0.0, %v3295
    %v3297 = vpop.f32.mrb[0].mxu0
    %v3298 = vpop.f32.mrb[0].mxu0
    %v3299 = vadd.f32 0.0, %v3298
    %v3300 = vpop.f32.mrb[0].mxu0
    %3301 = vmatprep.mubr.bf16.mxu0 0
    %3302 = vmatmul.mubr.bf16.gmra.mrb[0].mxu0 %v144
    %v3303 = vpop.f32.mrb[0].mxu0
    %v3304 = vpop.f32.mrb[0].mxu0
    %v3305 = vpop.f32.mrb[0].mxu0
    %v3306 = vadd.f32 0.0, %v3305
    %v3307 = vpop.f32.mrb[0].mxu0
    %3308 = vmatprep.mubr.bf16.mxu0 0
    %3309 = vmatmul.mubr.bf16.gmra.mrb[0].mxu0 %v192
    %v3310 = vpop.f32.mrb[0].mxu0
    %v3311 = vadd.f32 0.0, %v3310
    %v3312 = vpop.f32.mrb[0].mxu0
    %v3313 = vpop.f32.mrb[0].mxu0
    %v3314 = vadd.f32 0.0, %v3313
    %v3315 = vpop.f32.mrb[0].mxu0
    %3316 = vdwg.mxu0
    %v3341 = vrot.slane %v2845, 1
    %v3342 = vrot.slane %v2849, 1
    %v3343 = vsel %vm753, %v3341, %v3342
    %v3344 = vrot.slane %v2855, 1
    %v3345 = vsel %vm753, %v3342, %v3344
    %v3346 = vrot.slane %v2863, 1
    %v3347 = vrot.slane %v2867, 1
    %v3348 = vsel %vm753, %v3346, %v3347
    %v3349 = vrot.slane %v2873, 1
    %v3350 = vsel %vm753, %v3347, %v3349
    %v3351 = vrot.slane %v2881, 1
    %v3352 = vrot.slane %v2885, 1
    %v3353 = vsel %vm753, %v3351, %v3352
    %v3354 = vrot.slane %v2891, 1
    %v3355 = vsel %vm753, %v3352, %v3354
    %v3356 = vrot.slane %v2899, 1
    %v3357 = vrot.slane %v2903, 1
    %v3358 = vsel %vm753, %v3356, %v3357
    %v3359 = vrot.slane %v2909, 1
    %v3360 = vsel %vm753, %v3357, %v3359
    %v3361 = vrot.slane %v2917, 1
    %v3362 = vrot.slane %v2921, 1
    %v3363 = vsel %vm753, %v3361, %v3362
    %v3364 = vrot.slane %v2927, 1
    %v3365 = vsel %vm753, %v3362, %v3364
    %v3366 = vrot.slane %v2935, 1
    %v3367 = vrot.slane %v2939, 1
    %v3368 = vsel %vm753, %v3366, %v3367
    %v3369 = vrot.slane %v2945, 1
    %v3370 = vsel %vm753, %v3367, %v3369
    %v3371 = vrot.slane %v2953, 1
    %v3372 = vrot.slane %v2957, 1
    %v3373 = vsel %vm753, %v3371, %v3372
    %v3374 = vrot.slane %v2963, 1
    %v3375 = vsel %vm753, %v3372, %v3374
    %v3376 = vrot.slane %v2971, 1
    %v3377 = vrot.slane %v2975, 1
    %v3378 = vsel %vm753, %v3376, %v3377
    %v3379 = vrot.slane %v2981, 1
    %v3380 = vsel %vm753, %v3377, %v3379
    %3381 = vrot.lane.b32.xlu0 %v3343, 64
    %v3382 = vpop.permute.xlu0 %3381
    %3383 = vrot.lane.b32.xlu0 %v3345, 64
    %v3384 = vpop.permute.xlu0 %3383
    %3385 = vrot.lane.b32.xlu0 %v3348, 64
    %v3386 = vpop.permute.xlu0 %3385
    %3387 = vrot.lane.b32.xlu0 %v3350, 64
    %v3388 = vpop.permute.xlu0 %3387
    %3389 = vrot.lane.b32.xlu0 %v3353, 64
    %v3390 = vpop.permute.xlu0 %3389
    %3391 = vrot.lane.b32.xlu0 %v3355, 64
    %v3392 = vpop.permute.xlu0 %3391
    %3393 = vrot.lane.b32.xlu0 %v3358, 64
    %v3394 = vpop.permute.xlu0 %3393
    %3395 = vrot.lane.b32.xlu0 %v3360, 64
    %v3396 = vpop.permute.xlu0 %3395
    %3397 = vrot.lane.b32.xlu0 %v3363, 64
    %v3398 = vpop.permute.xlu0 %3397
    %3399 = vrot.lane.b32.xlu0 %v3365, 64
    %v3400 = vpop.permute.xlu0 %3399
    %3401 = vrot.lane.b32.xlu0 %v3368, 64
    %v3402 = vpop.permute.xlu0 %3401
    %3403 = vrot.lane.b32.xlu0 %v3370, 64
    %v3404 = vpop.permute.xlu0 %3403
    %3405 = vrot.lane.b32.xlu0 %v3373, 64
    %v3406 = vpop.permute.xlu0 %3405
    %3407 = vrot.lane.b32.xlu0 %v3375, 64
    %v3408 = vpop.permute.xlu0 %3407
    %3409 = vrot.lane.b32.xlu0 %v3378, 64
    %v3410 = vpop.permute.xlu0 %3409
    %3411 = vrot.lane.b32.xlu0 %v3380, 64
    %v3412 = vpop.permute.xlu0 %3411
    %v3429 = vadd.f32 %v2845, %v3382
    %v3430 = vadd.f32 %v2849, %v3384
    %v3431 = vadd.f32 %v2863, %v3386
    %v3432 = vadd.f32 %v2867, %v3388
    %v3433 = vadd.f32 %v2881, %v3390
    %v3434 = vadd.f32 %v2885, %v3392
    %v3435 = vadd.f32 %v2899, %v3394
    %v3436 = vadd.f32 %v2903, %v3396
    %v3437 = vadd.f32 %v2917, %v3398
    %v3438 = vadd.f32 %v2921, %v3400
    %v3439 = vadd.f32 %v2935, %v3402
    %v3440 = vadd.f32 %v2939, %v3404
    %v3441 = vadd.f32 %v2953, %v3406
    %v3442 = vadd.f32 %v2957, %v3408
    %v3443 = vadd.f32 %v2971, %v3410
    %v3444 = vadd.f32 %v2975, %v3412
    %v3469 = vrot.slane %v2847, 2
    %v3470 = vrot.slane %v2851, 2
    %v3471 = vsel %vm1377, %v3469, %v3470
    %v3472 = vrot.slane %v2857, 2
    %v3473 = vsel %vm1377, %v3470, %v3472
    %v3474 = vrot.slane %v2865, 2
    %v3475 = vrot.slane %v2869, 2
    %v3476 = vsel %vm1377, %v3474, %v3475
    %v3477 = vrot.slane %v2875, 2
    %v3478 = vsel %vm1377, %v3475, %v3477
    %v3479 = vrot.slane %v2883, 2
    %v3480 = vrot.slane %v2887, 2
    %v3481 = vsel %vm1377, %v3479, %v3480
    %v3482 = vrot.slane %v2893, 2
    %v3483 = vsel %vm1377, %v3480, %v3482
    %v3484 = vrot.slane %v2901, 2
    %v3485 = vrot.slane %v2905, 2
    %v3486 = vsel %vm1377, %v3484, %v3485
    %v3487 = vrot.slane %v2911, 2
    %v3488 = vsel %vm1377, %v3485, %v3487
    %v3489 = vrot.slane %v2919, 2
    %v3490 = vrot.slane %v2923, 2
    %v3491 = vsel %vm1377, %v3489, %v3490
    %v3492 = vrot.slane %v2929, 2
    %v3493 = vsel %vm1377, %v3490, %v3492
    %v3494 = vrot.slane %v2937, 2
    %v3495 = vrot.slane %v2941, 2
    %v3496 = vsel %vm1377, %v3494, %v3495
    %v3497 = vrot.slane %v2947, 2
    %v3498 = vsel %vm1377, %v3495, %v3497
    %v3499 = vrot.slane %v2955, 2
    %v3500 = vrot.slane %v2959, 2
    %v3501 = vsel %vm1377, %v3499, %v3500
    %v3502 = vrot.slane %v2965, 2
    %v3503 = vsel %vm1377, %v3500, %v3502
    %v3504 = vrot.slane %v2973, 2
    %v3505 = vrot.slane %v2977, 2
    %v3506 = vsel %vm1377, %v3504, %v3505
    %v3507 = vrot.slane %v2983, 2
    %v3508 = vsel %vm1377, %v3505, %v3507
    %v3525 = vadd.f32 %v3429, %v3471
    %v3526 = vadd.f32 %v3430, %v3473
    %v3527 = vadd.f32 %v3431, %v3476
    %v3528 = vadd.f32 %v3432, %v3478
    %v3529 = vadd.f32 %v3433, %v3481
    %v3530 = vadd.f32 %v3434, %v3483
    %v3531 = vadd.f32 %v3435, %v3486
    %v3532 = vadd.f32 %v3436, %v3488
    %v3533 = vadd.f32 %v3437, %v3491
    %v3534 = vadd.f32 %v3438, %v3493
    %v3535 = vadd.f32 %v3439, %v3496
    %v3536 = vadd.f32 %v3440, %v3498
    %v3537 = vadd.f32 %v3441, %v3501
    %v3538 = vadd.f32 %v3442, %v3503
    %v3539 = vadd.f32 %v3443, %v3506
    %v3540 = vadd.f32 %v3444, %v3508
    %v3541 = vrot.slane %v2847, 3
    %v3542 = vrot.slane %v2851, 3
    %v3543 = vsel %vm2258, %v3541, %v3542
    %v3544 = vrot.slane %v2857, 3
    %v3545 = vsel %vm2258, %v3542, %v3544
    %v3546 = vrot.slane %v2865, 3
    %v3547 = vrot.slane %v2869, 3
    %v3548 = vsel %vm2258, %v3546, %v3547
    %v3549 = vrot.slane %v2875, 3
    %v3550 = vsel %vm2258, %v3547, %v3549
    %v3551 = vrot.slane %v2883, 3
    %v3552 = vrot.slane %v2887, 3
    %v3553 = vsel %vm2258, %v3551, %v3552
    %v3554 = vrot.slane %v2893, 3
    %v3555 = vsel %vm2258, %v3552, %v3554
    %v3556 = vrot.slane %v2901, 3
    %v3557 = vrot.slane %v2905, 3
    %v3558 = vsel %vm2258, %v3556, %v3557
    %v3559 = vrot.slane %v2911, 3
    %v3560 = vsel %vm2258, %v3557, %v3559
    %v3561 = vrot.slane %v2919, 3
    %v3562 = vrot.slane %v2923, 3
    %v3563 = vsel %vm2258, %v3561, %v3562
    %v3564 = vrot.slane %v2929, 3
    %v3565 = vsel %vm2258, %v3562, %v3564
    %v3566 = vrot.slane %v2937, 3
    %v3567 = vrot.slane %v2941, 3
    %v3568 = vsel %vm2258, %v3566, %v3567
    %v3569 = vrot.slane %v2947, 3
    %v3570 = vsel %vm2258, %v3567, %v3569
    %v3571 = vrot.slane %v2955, 3
    %v3572 = vrot.slane %v2959, 3
    %v3573 = vsel %vm2258, %v3571, %v3572
    %v3574 = vrot.slane %v2965, 3
    %v3575 = vsel %vm2258, %v3572, %v3574
    %v3576 = vrot.slane %v2973, 3
    %v3577 = vrot.slane %v2977, 3
    %v3578 = vsel %vm2258, %v3576, %v3577
    %v3579 = vrot.slane %v2983, 3
    %v3580 = vsel %vm2258, %v3577, %v3579
    %3581 = vrot.lane.b32.xlu0 %v3543, 64
    %v3582 = vpop.permute.xlu0 %3581
    %3583 = vrot.lane.b32.xlu0 %v3545, 64
    %v3584 = vpop.permute.xlu0 %3583
    %3585 = vrot.lane.b32.xlu0 %v3548, 64
    %v3586 = vpop.permute.xlu0 %3585
    %3587 = vrot.lane.b32.xlu0 %v3550, 64
    %v3588 = vpop.permute.xlu0 %3587
    %3589 = vrot.lane.b32.xlu0 %v3553, 64
    %v3590 = vpop.permute.xlu0 %3589
    %3591 = vrot.lane.b32.xlu0 %v3555, 64
    %v3592 = vpop.permute.xlu0 %3591
    %3593 = vrot.lane.b32.xlu0 %v3558, 64
    %v3594 = vpop.permute.xlu0 %3593
    %3595 = vrot.lane.b32.xlu0 %v3560, 64
    %v3596 = vpop.permute.xlu0 %3595
    %3597 = vrot.lane.b32.xlu0 %v3563, 64
    %v3598 = vpop.permute.xlu0 %3597
    %3599 = vrot.lane.b32.xlu0 %v3565, 64
    %v3600 = vpop.permute.xlu0 %3599
    %3601 = vrot.lane.b32.xlu0 %v3568, 64
    %v3602 = vpop.permute.xlu0 %3601
    %3603 = vrot.lane.b32.xlu0 %v3570, 64
    %v3604 = vpop.permute.xlu0 %3603
    %3605 = vrot.lane.b32.xlu0 %v3573, 64
    %v3606 = vpop.permute.xlu0 %3605
    %3607 = vrot.lane.b32.xlu0 %v3575, 64
    %v3608 = vpop.permute.xlu0 %3607
    %3609 = vrot.lane.b32.xlu0 %v3578, 64
    %v3610 = vpop.permute.xlu0 %3609
    %3611 = vrot.lane.b32.xlu0 %v3580, 64
    %v3612 = vpop.permute.xlu0 %3611
    %v3629 = vadd.f32 %v3525, %v3582
    %v3630 = vadd.f32 %v3526, %v3584
    %v3631 = vadd.f32 %v3527, %v3586
    %v3632 = vadd.f32 %v3528, %v3588
    %v3633 = vadd.f32 %v3529, %v3590
    %v3634 = vadd.f32 %v3530, %v3592
    %v3635 = vadd.f32 %v3531, %v3594
    %v3636 = vadd.f32 %v3532, %v3596
    %v3637 = vadd.f32 %v3533, %v3598
    %v3638 = vadd.f32 %v3534, %v3600
    %v3639 = vadd.f32 %v3535, %v3602
    %v3640 = vadd.f32 %v3536, %v3604
    %v3641 = vadd.f32 %v3537, %v3606
    %v3642 = vadd.f32 %v3538, %v3608
    %v3643 = vadd.f32 %v3539, %v3610
    %v3644 = vadd.f32 %v3540, %v3612
    %v3669 = vrot.slane %v3022, 4
    %v3670 = vrot.slane %v3026, 4
    %v3671 = vsel %vm2387, %v3669, %v3670
    %v3672 = vrot.slane %v3032, 4
    %v3673 = vsel %vm2387, %v3670, %v3672
    %v3674 = vrot.slane %v3040, 4
    %v3675 = vrot.slane %v3044, 4
    %v3676 = vsel %vm2387, %v3674, %v3675
    %v3677 = vrot.slane %v3050, 4
    %v3678 = vsel %vm2387, %v3675, %v3677
    %v3679 = vrot.slane %v3058, 4
    %v3680 = vrot.slane %v3062, 4
    %v3681 = vsel %vm2387, %v3679, %v3680
    %v3682 = vrot.slane %v3068, 4
    %v3683 = vsel %vm2387, %v3680, %v3682
    %v3684 = vrot.slane %v3076, 4
    %v3685 = vrot.slane %v3080, 4
    %v3686 = vsel %vm2387, %v3684, %v3685
    %v3687 = vrot.slane %v3086, 4
    %v3688 = vsel %vm2387, %v3685, %v3687
    %v3689 = vrot.slane %v3094, 4
    %v3690 = vrot.slane %v3098, 4
    %v3691 = vsel %vm2387, %v3689, %v3690
    %v3692 = vrot.slane %v3104, 4
    %v3693 = vsel %vm2387, %v3690, %v3692
    %v3694 = vrot.slane %v3112, 4
    %v3695 = vrot.slane %v3116, 4
    %v3696 = vsel %vm2387, %v3694, %v3695
    %v3697 = vrot.slane %v3122, 4
    %v3698 = vsel %vm2387, %v3695, %v3697
    %v3699 = vrot.slane %v3130, 4
    %v3700 = vrot.slane %v3134, 4
    %v3701 = vsel %vm2387, %v3699, %v3700
    %v3702 = vrot.slane %v3140, 4
    %v3703 = vsel %vm2387, %v3700, %v3702
    %v3704 = vrot.slane %v3148, 4
    %v3705 = vrot.slane %v3152, 4
    %v3706 = vsel %vm2387, %v3704, %v3705
    %v3707 = vrot.slane %v3158, 4
    %v3708 = vsel %vm2387, %v3705, %v3707
    %v3725 = vadd.f32 %v3629, %v3671
    %v3726 = vadd.f32 %v3630, %v3673
    %v3727 = vadd.f32 %v3631, %v3676
    %v3728 = vadd.f32 %v3632, %v3678
    %v3729 = vadd.f32 %v3633, %v3681
    %v3730 = vadd.f32 %v3634, %v3683
    %v3731 = vadd.f32 %v3635, %v3686
    %v3732 = vadd.f32 %v3636, %v3688
    %v3733 = vadd.f32 %v3637, %v3691
    %v3734 = vadd.f32 %v3638, %v3693
    %v3735 = vadd.f32 %v3639, %v3696
    %v3736 = vadd.f32 %v3640, %v3698
    %v3737 = vadd.f32 %v3641, %v3701
    %v3738 = vadd.f32 %v3642, %v3703
    %v3739 = vadd.f32 %v3643, %v3706
    %v3740 = vadd.f32 %v3644, %v3708
    %vm3741 = vcmask 1042432
    %v3742 = vrot.slane %v3022, 5
    %v3743 = vrot.slane %v3026, 5
    %v3744 = vsel %vm3741, %v3742, %v3743
    %v3745 = vrot.slane %v3032, 5
    %v3746 = vsel %vm3741, %v3743, %v3745
    %v3747 = vrot.slane %v3040, 5
    %v3748 = vrot.slane %v3044, 5
    %v3749 = vsel %vm3741, %v3747, %v3748
    %v3750 = vrot.slane %v3050, 5
    %v3751 = vsel %vm3741, %v3748, %v3750
    %v3752 = vrot.slane %v3058, 5
    %v3753 = vrot.slane %v3062, 5
    %v3754 = vsel %vm3741, %v3752, %v3753
    %v3755 = vrot.slane %v3068, 5
    %v3756 = vsel %vm3741, %v3753, %v3755
    %v3757 = vrot.slane %v3076, 5
    %v3758 = vrot.slane %v3080, 5
    %v3759 = vsel %vm3741, %v3757, %v3758
    %v3760 = vrot.slane %v3086, 5
    %v3761 = vsel %vm3741, %v3758, %v3760
    %v3762 = vrot.slane %v3094, 5
    %v3763 = vrot.slane %v3098, 5
    %v3764 = vsel %vm3741, %v3762, %v3763
    %v3765 = vrot.slane %v3104, 5
    %v3766 = vsel %vm3741, %v3763, %v3765
    %v3767 = vrot.slane %v3112, 5
    %v3768 = vrot.slane %v3116, 5
    %v3769 = vsel %vm3741, %v3767, %v3768
    %v3770 = vrot.slane %v3122, 5
    %v3771 = vsel %vm3741, %v3768, %v3770
    %v3772 = vrot.slane %v3130, 5
    %v3773 = vrot.slane %v3134, 5
    %v3774 = vsel %vm3741, %v3772, %v3773
    %v3775 = vrot.slane %v3140, 5
    %v3776 = vsel %vm3741, %v3773, %v3775
    %v3777 = vrot.slane %v3148, 5
    %v3778 = vrot.slane %v3152, 5
    %v3779 = vsel %vm3741, %v3777, %v3778
    %v3780 = vrot.slane %v3158, 5
    %v3781 = vsel %vm3741, %v3778, %v3780
    %3782 = vrot.lane.b32.xlu0 %v3744, 64
    %v3783 = vpop.permute.xlu0 %3782
    %3784 = vrot.lane.b32.xlu0 %v3746, 64
    %v3785 = vpop.permute.xlu0 %3784
    %3786 = vrot.lane.b32.xlu0 %v3749, 64
    %v3787 = vpop.permute.xlu0 %3786
    %3788 = vrot.lane.b32.xlu0 %v3751, 64
    %v3789 = vpop.permute.xlu0 %3788
    %3790 = vrot.lane.b32.xlu0 %v3754, 64
    %v3791 = vpop.permute.xlu0 %3790
    %3792 = vrot.lane.b32.xlu0 %v3756, 64
    %v3793 = vpop.permute.xlu0 %3792
    %3794 = vrot.lane.b32.xlu0 %v3759, 64
    %v3795 = vpop.permute.xlu0 %3794
    %3796 = vrot.lane.b32.xlu0 %v3761, 64
    %v3797 = vpop.permute.xlu0 %3796
    %3798 = vrot.lane.b32.xlu0 %v3764, 64
    %v3799 = vpop.permute.xlu0 %3798
    %3800 = vrot.lane.b32.xlu0 %v3766, 64
    %v3801 = vpop.permute.xlu0 %3800
    %3802 = vrot.lane.b32.xlu0 %v3769, 64
    %v3803 = vpop.permute.xlu0 %3802
    %3804 = vrot.lane.b32.xlu0 %v3771, 64
    %v3805 = vpop.permute.xlu0 %3804
    %3806 = vrot.lane.b32.xlu0 %v3774, 64
    %v3807 = vpop.permute.xlu0 %3806
    %3808 = vrot.lane.b32.xlu0 %v3776, 64
    %v3809 = vpop.permute.xlu0 %3808
    %3810 = vrot.lane.b32.xlu0 %v3779, 64
    %v3811 = vpop.permute.xlu0 %3810
    %3812 = vrot.lane.b32.xlu0 %v3781, 64
    %v3813 = vpop.permute.xlu0 %3812
    %v3830 = vadd.f32 %v3725, %v3783
    %v3831 = vadd.f32 %v3726, %v3785
    %v3832 = vadd.f32 %v3727, %v3787
    %v3833 = vadd.f32 %v3728, %v3789
    %v3834 = vadd.f32 %v3729, %v3791
    %v3835 = vadd.f32 %v3730, %v3793
    %v3836 = vadd.f32 %v3731, %v3795
    %v3837 = vadd.f32 %v3732, %v3797
    %v3838 = vadd.f32 %v3733, %v3799
    %v3839 = vadd.f32 %v3734, %v3801
    %v3840 = vadd.f32 %v3735, %v3803
    %v3841 = vadd.f32 %v3736, %v3805
    %v3842 = vadd.f32 %v3737, %v3807
    %v3843 = vadd.f32 %v3738, %v3809
    %v3844 = vadd.f32 %v3739, %v3811
    %v3845 = vadd.f32 %v3740, %v3813
    %vm3870 = vcmask 1041408
    %v3871 = vrot.slane %v3024, 6
    %v3872 = vrot.slane %v3028, 6
    %v3873 = vsel %vm3870, %v3871, %v3872
    %v3874 = vrot.slane %v3034, 6
    %v3875 = vsel %vm3870, %v3872, %v3874
    %v3876 = vrot.slane %v3042, 6
    %v3877 = vrot.slane %v3046, 6
    %v3878 = vsel %vm3870, %v3876, %v3877
    %v3879 = vrot.slane %v3052, 6
    %v3880 = vsel %vm3870, %v3877, %v3879
    %v3881 = vrot.slane %v3060, 6
    %v3882 = vrot.slane %v3064, 6
    %v3883 = vsel %vm3870, %v3881, %v3882
    %v3884 = vrot.slane %v3070, 6
    %v3885 = vsel %vm3870, %v3882, %v3884
    %v3886 = vrot.slane %v3078, 6
    %v3887 = vrot.slane %v3082, 6
    %v3888 = vsel %vm3870, %v3886, %v3887
    %v3889 = vrot.slane %v3088, 6
    %v3890 = vsel %vm3870, %v3887, %v3889
    %v3891 = vrot.slane %v3096, 6
    %v3892 = vrot.slane %v3100, 6
    %v3893 = vsel %vm3870, %v3891, %v3892
    %v3894 = vrot.slane %v3106, 6
    %v3895 = vsel %vm3870, %v3892, %v3894
    %v3896 = vrot.slane %v3114, 6
    %v3897 = vrot.slane %v3118, 6
    %v3898 = vsel %vm3870, %v3896, %v3897
    %v3899 = vrot.slane %v3124, 6
    %v3900 = vsel %vm3870, %v3897, %v3899
    %v3901 = vrot.slane %v3132, 6
    %v3902 = vrot.slane %v3136, 6
    %v3903 = vsel %vm3870, %v3901, %v3902
    %v3904 = vrot.slane %v3142, 6
    %v3905 = vsel %vm3870, %v3902, %v3904
    %v3906 = vrot.slane %v3150, 6
    %v3907 = vrot.slane %v3154, 6
    %v3908 = vsel %vm3870, %v3906, %v3907
    %v3909 = vrot.slane %v3160, 6
    %v3910 = vsel %vm3870, %v3907, %v3909
    %v3927 = vadd.f32 %v3830, %v3873
    %v3928 = vadd.f32 %v3831, %v3875
    %v3929 = vadd.f32 %v3832, %v3878
    %v3930 = vadd.f32 %v3833, %v3880
    %v3931 = vadd.f32 %v3834, %v3883
    %v3932 = vadd.f32 %v3835, %v3885
    %v3933 = vadd.f32 %v3836, %v3888
    %v3934 = vadd.f32 %v3837, %v3890
    %v3935 = vadd.f32 %v3838, %v3893
    %v3936 = vadd.f32 %v3839, %v3895
    %v3937 = vadd.f32 %v3840, %v3898
    %v3938 = vadd.f32 %v3841, %v3900
    %v3939 = vadd.f32 %v3842, %v3903
    %v3940 = vadd.f32 %v3843, %v3905
    %v3941 = vadd.f32 %v3844, %v3908
    %v3942 = vadd.f32 %v3845, %v3910
    %vm3943 = vcmask 1040384
    %v3944 = vrot.slane %v3024, 7
    %v3945 = vrot.slane %v3028, 7
    %v3946 = vsel %vm3943, %v3944, %v3945
    %v3947 = vrot.slane %v3034, 7
    %v3948 = vsel %vm3943, %v3945, %v3947
    %v3949 = vrot.slane %v3042, 7
    %v3950 = vrot.slane %v3046, 7
    %v3951 = vsel %vm3943, %v3949, %v3950
    %v3952 = vrot.slane %v3052, 7
    %v3953 = vsel %vm3943, %v3950, %v3952
    %v3954 = vrot.slane %v3060, 7
    %v3955 = vrot.slane %v3064, 7
    %v3956 = vsel %vm3943, %v3954, %v3955
    %v3957 = vrot.slane %v3070, 7
    %v3958 = vsel %vm3943, %v3955, %v3957
    %v3959 = vrot.slane %v3078, 7
    %v3960 = vrot.slane %v3082, 7
    %v3961 = vsel %vm3943, %v3959, %v3960
    %v3962 = vrot.slane %v3088, 7
    %v3963 = vsel %vm3943, %v3960, %v3962
    %v3964 = vrot.slane %v3096, 7
    %v3965 = vrot.slane %v3100, 7
    %v3966 = vsel %vm3943, %v3964, %v3965
    %v3967 = vrot.slane %v3106, 7
    %v3968 = vsel %vm3943, %v3965, %v3967
    %v3969 = vrot.slane %v3114, 7
    %v3970 = vrot.slane %v3118, 7
    %v3971 = vsel %vm3943, %v3969, %v3970
    %v3972 = vrot.slane %v3124, 7
    %v3973 = vsel %vm3943, %v3970, %v3972
    %v3974 = vrot.slane %v3132, 7
    %v3975 = vrot.slane %v3136, 7
    %v3976 = vsel %vm3943, %v3974, %v3975
    %v3977 = vrot.slane %v3142, 7
    %v3978 = vsel %vm3943, %v3975, %v3977
    %v3979 = vrot.slane %v3150, 7
    %v3980 = vrot.slane %v3154, 7
    %v3981 = vsel %vm3943, %v3979, %v3980
    %v3982 = vrot.slane %v3160, 7
    %v3983 = vsel %vm3943, %v3980, %v3982
    %3984 = vrot.lane.b32.xlu0 %v3946, 64
    %v3985 = vpop.permute.xlu0 %3984
    %3986 = vrot.lane.b32.xlu0 %v3948, 64
    %v3987 = vpop.permute.xlu0 %3986
    %3988 = vrot.lane.b32.xlu0 %v3951, 64
    %v3989 = vpop.permute.xlu0 %3988
    %3990 = vrot.lane.b32.xlu0 %v3953, 64
    %v3991 = vpop.permute.xlu0 %3990
    %3992 = vrot.lane.b32.xlu0 %v3956, 64
    %v3993 = vpop.permute.xlu0 %3992
    %3994 = vrot.lane.b32.xlu0 %v3958, 64
    %v3995 = vpop.permute.xlu0 %3994
    %3996 = vrot.lane.b32.xlu0 %v3961, 64
    %v3997 = vpop.permute.xlu0 %3996
    %3998 = vrot.lane.b32.xlu0 %v3963, 64
    %v3999 = vpop.permute.xlu0 %3998
    %4000 = vrot.lane.b32.xlu0 %v3966, 64
    %v4001 = vpop.permute.xlu0 %4000
    %4002 = vrot.lane.b32.xlu0 %v3968, 64
    %v4003 = vpop.permute.xlu0 %4002
    %4004 = vrot.lane.b32.xlu0 %v3971, 64
    %v4005 = vpop.permute.xlu0 %4004
    %4006 = vrot.lane.b32.xlu0 %v3973, 64
    %v4007 = vpop.permute.xlu0 %4006
    %4008 = vrot.lane.b32.xlu0 %v3976, 64
    %v4009 = vpop.permute.xlu0 %4008
    %4010 = vrot.lane.b32.xlu0 %v3978, 64
    %v4011 = vpop.permute.xlu0 %4010
    %4012 = vrot.lane.b32.xlu0 %v3981, 64
    %v4013 = vpop.permute.xlu0 %4012
    %4014 = vrot.lane.b32.xlu0 %v3983, 64
    %v4015 = vpop.permute.xlu0 %4014
    %v4032 = vadd.f32 %v3927, %v3985
    %v4033 = vadd.f32 %v3928, %v3987
    %v4034 = vadd.f32 %v3929, %v3989
    %v4035 = vadd.f32 %v3930, %v3991
    %v4036 = vadd.f32 %v3931, %v3993
    %v4037 = vadd.f32 %v3932, %v3995
    %v4038 = vadd.f32 %v3933, %v3997
    %v4039 = vadd.f32 %v3934, %v3999
    %v4040 = vadd.f32 %v3935, %v4001
    %v4041 = vadd.f32 %v3936, %v4003
    %v4042 = vadd.f32 %v3937, %v4005
    %v4043 = vadd.f32 %v3938, %v4007
    %v4044 = vadd.f32 %v3939, %v4009
    %v4045 = vadd.f32 %v3940, %v4011
    %v4046 = vadd.f32 %v3941, %v4013
    %v4047 = vadd.f32 %v3942, %v4015
    %v4048 = vadd.f32 %v4032, %v3201
    %v4049 = vadd.f32 %v4033, %v3206
    %v4050 = vadd.f32 %v4034, %v3216
    %v4051 = vadd.f32 %v4035, %v3221
    %v4052 = vadd.f32 %v4036, %v3231
    %v4053 = vadd.f32 %v4037, %v3236
    %v4054 = vadd.f32 %v4038, %v3246
    %v4055 = vadd.f32 %v4039, %v3251
    %v4056 = vadd.f32 %v4040, %v3261
    %v4057 = vadd.f32 %v4041, %v3266
    %v4058 = vadd.f32 %v4042, %v3276
    %v4059 = vadd.f32 %v4043, %v3281
    %v4060 = vadd.f32 %v4044, %v3291
    %v4061 = vadd.f32 %v4045, %v3296
    %v4062 = vadd.f32 %v4046, %v3306
    %v4063 = vadd.f32 %v4047, %v3311
    %v4088 = vrot.slane %v3201, 1
    %v4089 = vrot.slane %v3206, 1
    %v4090 = vsel %vm753, %v4088, %v4089
    %v4091 = vrot.slane %v3209, 1
    %v4092 = vsel %vm753, %v4089, %v4091
    %v4093 = vrot.slane %v3216, 1
    %v4094 = vrot.slane %v3221, 1
    %v4095 = vsel %vm753, %v4093, %v4094
    %v4096 = vrot.slane %v3224, 1
    %v4097 = vsel %vm753, %v4094, %v4096
    %v4098 = vrot.slane %v3231, 1
    %v4099 = vrot.slane %v3236, 1
    %v4100 = vsel %vm753, %v4098, %v4099
    %v4101 = vrot.slane %v3239, 1
    %v4102 = vsel %vm753, %v4099, %v4101
    %v4103 = vrot.slane %v3246, 1
    %v4104 = vrot.slane %v3251, 1
    %v4105 = vsel %vm753, %v4103, %v4104
    %v4106 = vrot.slane %v3254, 1
    %v4107 = vsel %vm753, %v4104, %v4106
    %v4108 = vrot.slane %v3261, 1
    %v4109 = vrot.slane %v3266, 1
    %v4110 = vsel %vm753, %v4108, %v4109
    %v4111 = vrot.slane %v3269, 1
    %v4112 = vsel %vm753, %v4109, %v4111
    %v4113 = vrot.slane %v3276, 1
    %v4114 = vrot.slane %v3281, 1
    %v4115 = vsel %vm753, %v4113, %v4114
    %v4116 = vrot.slane %v3284, 1
    %v4117 = vsel %vm753, %v4114, %v4116
    %v4118 = vrot.slane %v3291, 1
    %v4119 = vrot.slane %v3296, 1
    %v4120 = vsel %vm753, %v4118, %v4119
    %v4121 = vrot.slane %v3299, 1
    %v4122 = vsel %vm753, %v4119, %v4121
    %v4123 = vrot.slane %v3306, 1
    %v4124 = vrot.slane %v3311, 1
    %v4125 = vsel %vm753, %v4123, %v4124
    %v4126 = vrot.slane %v3314, 1
    %v4127 = vsel %vm753, %v4124, %v4126
    %4128 = vrot.lane.b32.xlu0 %v4090, 64
    %v4129 = vpop.permute.xlu0 %4128
    %4130 = vrot.lane.b32.xlu0 %v4092, 64
    %v4131 = vpop.permute.xlu0 %4130
    %4132 = vrot.lane.b32.xlu0 %v4095, 64
    %v4133 = vpop.permute.xlu0 %4132
    %4134 = vrot.lane.b32.xlu0 %v4097, 64
    %v4135 = vpop.permute.xlu0 %4134
    %4136 = vrot.lane.b32.xlu0 %v4100, 64
    %v4137 = vpop.permute.xlu0 %4136
    %4138 = vrot.lane.b32.xlu0 %v4102, 64
    %v4139 = vpop.permute.xlu0 %4138
    %4140 = vrot.lane.b32.xlu0 %v4105, 64
    %v4141 = vpop.permute.xlu0 %4140
    %4142 = vrot.lane.b32.xlu0 %v4107, 64
    %v4143 = vpop.permute.xlu0 %4142
    %4144 = vrot.lane.b32.xlu0 %v4110, 64
    %v4145 = vpop.permute.xlu0 %4144
    %4146 = vrot.lane.b32.xlu0 %v4112, 64
    %v4147 = vpop.permute.xlu0 %4146
    %4148 = vrot.lane.b32.xlu0 %v4115, 64
    %v4149 = vpop.permute.xlu0 %4148
    %4150 = vrot.lane.b32.xlu0 %v4117, 64
    %v4151 = vpop.permute.xlu0 %4150
    %4152 = vrot.lane.b32.xlu0 %v4120, 64
    %v4153 = vpop.permute.xlu0 %4152
    %4154 = vrot.lane.b32.xlu0 %v4122, 64
    %v4155 = vpop.permute.xlu0 %4154
    %4156 = vrot.lane.b32.xlu0 %v4125, 64
    %v4157 = vpop.permute.xlu0 %4156
    %4158 = vrot.lane.b32.xlu0 %v4127, 64
    %v4159 = vpop.permute.xlu0 %4158
    %v4176 = vadd.f32 %v4048, %v4129
    %v4177 = vadd.f32 %v4049, %v4131
    %v4178 = vadd.f32 %v4050, %v4133
    %v4179 = vadd.f32 %v4051, %v4135
    %v4180 = vadd.f32 %v4052, %v4137
    %v4181 = vadd.f32 %v4053, %v4139
    %v4182 = vadd.f32 %v4054, %v4141
    %v4183 = vadd.f32 %v4055, %v4143
    %v4184 = vadd.f32 %v4056, %v4145
    %v4185 = vadd.f32 %v4057, %v4147
    %v4186 = vadd.f32 %v4058, %v4149
    %v4187 = vadd.f32 %v4059, %v4151
    %v4188 = vadd.f32 %v4060, %v4153
    %v4189 = vadd.f32 %v4061, %v4155
    %v4190 = vadd.f32 %v4062, %v4157
    %v4191 = vadd.f32 %v4063, %v4159
    %vm4192 = vcmp.le.s32.totalorder %v206, 6
    %vm4193 = vcmp.le.s32.totalorder %v207, 6
    %v4194 = vsel %vm4192, 1, 0
    %v4195 = vsel %vm4193, 1, 0
    %vm4196 = vcmp.eq.s32.totalorder %v4194, 1
    %vm4197 = vcmp.eq.s32.totalorder %v4195, 1
    %v4198 = vsel %vm4196, %v4176, -inf
    %v4199 = vsel %vm4197, %v4177, -inf
    %v4200 = vsel %vm4196, %v4178, -inf
    %v4201 = vsel %vm4197, %v4179, -inf
    %v4202 = vsel %vm4196, %v4180, -inf
    %v4203 = vsel %vm4197, %v4181, -inf
    %v4204 = vsel %vm4196, %v4182, -inf
    %v4205 = vsel %vm4197, %v4183, -inf
    %v4206 = vsel %vm4196, %v4184, -inf
    %v4207 = vsel %vm4197, %v4185, -inf
    %v4208 = vsel %vm4196, %v4186, -inf
    %v4209 = vsel %vm4197, %v4187, -inf
    %v4210 = vsel %vm4196, %v4188, -inf
    %v4211 = vsel %vm4197, %v4189, -inf
    %v4212 = vsel %vm4196, %v4190, -inf
    %v4213 = vsel %vm4197, %v4191, -inf
    %v4214 = vsel %vm439, %v4198, -inf
    %v4215 = vsel %vm439, %v4199, -inf
    %v4216 = vmax.f32 %v4214, %v4215
    %v4217 = vrot.slane %v4216, 4
    %v4218 = vmax.f32 %v4216, %v4217
    %v4219 = vrot.slane %v4218, 2
    %v4220 = vmax.f32 %v4218, %v4219
    %v4221 = vrot.slane %v4220, 1
    %v4222 = vmax.f32 %v4220, %v4221
    %v4223 = vsel %vm439, %v4200, -inf
    %v4224 = vsel %vm439, %v4201, -inf
    %v4225 = vmax.f32 %v4223, %v4224
    %v4226 = vrot.slane %v4225, 4
    %v4227 = vmax.f32 %v4225, %v4226
    %v4228 = vrot.slane %v4227, 2
    %v4229 = vmax.f32 %v4227, %v4228
    %v4230 = vrot.slane %v4229, 1
    %v4231 = vmax.f32 %v4229, %v4230
    %v4232 = vsel %vm439, %v4202, -inf
    %v4233 = vsel %vm439, %v4203, -inf
    %v4234 = vmax.f32 %v4232, %v4233
    %v4235 = vrot.slane %v4234, 4
    %v4236 = vmax.f32 %v4234, %v4235
    %v4237 = vrot.slane %v4236, 2
    %v4238 = vmax.f32 %v4236, %v4237
    %v4239 = vrot.slane %v4238, 1
    %v4240 = vmax.f32 %v4238, %v4239
    %v4241 = vsel %vm439, %v4204, -inf
    %v4242 = vsel %vm439, %v4205, -inf
    %v4243 = vmax.f32 %v4241, %v4242
    %v4244 = vrot.slane %v4243, 4
    %v4245 = vmax.f32 %v4243, %v4244
    %v4246 = vrot.slane %v4245, 2
    %v4247 = vmax.f32 %v4245, %v4246
    %v4248 = vrot.slane %v4247, 1
    %v4249 = vmax.f32 %v4247, %v4248
    %v4250 = vsel %vm439, %v4206, -inf
    %v4251 = vsel %vm439, %v4207, -inf
    %v4252 = vmax.f32 %v4250, %v4251
    %v4253 = vrot.slane %v4252, 4
    %v4254 = vmax.f32 %v4252, %v4253
    %v4255 = vrot.slane %v4254, 2
    %v4256 = vmax.f32 %v4254, %v4255
    %v4257 = vrot.slane %v4256, 1
    %v4258 = vmax.f32 %v4256, %v4257
    %v4259 = vsel %vm439, %v4208, -inf
    %v4260 = vsel %vm439, %v4209, -inf
    %v4261 = vmax.f32 %v4259, %v4260
    %v4262 = vrot.slane %v4261, 4
    %v4263 = vmax.f32 %v4261, %v4262
    %v4264 = vrot.slane %v4263, 2
    %v4265 = vmax.f32 %v4263, %v4264
    %v4266 = vrot.slane %v4265, 1
    %v4267 = vmax.f32 %v4265, %v4266
    %v4268 = vsel %vm439, %v4210, -inf
    %v4269 = vsel %vm439, %v4211, -inf
    %v4270 = vmax.f32 %v4268, %v4269
    %v4271 = vrot.slane %v4270, 4
    %v4272 = vmax.f32 %v4270, %v4271
    %v4273 = vrot.slane %v4272, 2
    %v4274 = vmax.f32 %v4272, %v4273
    %v4275 = vrot.slane %v4274, 1
    %v4276 = vmax.f32 %v4274, %v4275
    %v4277 = vsel %vm439, %v4212, -inf
    %v4278 = vsel %vm439, %v4213, -inf
    %v4279 = vmax.f32 %v4277, %v4278
    %v4280 = vrot.slane %v4279, 4
    %v4281 = vmax.f32 %v4279, %v4280
    %v4282 = vrot.slane %v4281, 2
    %v4283 = vmax.f32 %v4281, %v4282
    %v4284 = vrot.slane %v4283, 1
    %v4285 = vmax.f32 %v4283, %v4284
    %vm4294 = vcmask 1041409
    %v4295 = vsel %vm4294, %v457, %v448
    %vm4296 = vcmask 1042434
    %v4297 = vsel %vm4296, %v466, %v4295
    %vm4298 = vcmask 1043459
    %v4299 = vsel %vm4298, %v475, %v4297
    %vm4300 = vcmask 1044484
    %v4301 = vsel %vm4300, %v484, %v4299
    %vm4302 = vcmask 1045509
    %v4303 = vsel %vm4302, %v493, %v4301
    %vm4304 = vcmask 1046534
    %v4305 = vsel %vm4304, %v502, %v4303
    %vm4306 = vcmask 1047559
    %v4307 = vsel %vm4306, %v511, %v4305
    %v4317 = vsel %vm4294, %v897, %v888
    %v4318 = vsel %vm4296, %v906, %v4317
    %v4319 = vsel %vm4298, %v915, %v4318
    %v4320 = vsel %vm4300, %v924, %v4319
    %v4321 = vsel %vm4302, %v933, %v4320
    %v4322 = vsel %vm4304, %v942, %v4321
    %v4323 = vsel %vm4306, %v951, %v4322
    %4324 = vrot.lane.b32.xlu0 %v4323, 64
    %v4325 = vpop.permute.xlu0 %4324
    %v4335 = vsel %vm4294, %v1489, %v1480
    %v4336 = vsel %vm4296, %v1498, %v4335
    %v4337 = vsel %vm4298, %v1507, %v4336
    %v4338 = vsel %vm4300, %v1516, %v4337
    %v4339 = vsel %vm4302, %v1525, %v4338
    %v4340 = vsel %vm4304, %v1534, %v4339
    %v4341 = vsel %vm4306, %v1543, %v4340
    %v4351 = vsel %vm4294, %v2499, %v2490
    %v4352 = vsel %vm4296, %v2508, %v4351
    %v4353 = vsel %vm4298, %v2517, %v4352
    %v4354 = vsel %vm4300, %v2526, %v4353
    %v4355 = vsel %vm4302, %v2535, %v4354
    %v4356 = vsel %vm4304, %v2544, %v4355
    %v4357 = vsel %vm4306, %v2553, %v4356
    %4358 = vrot.lane.b32.xlu0 %v4357, 64
    %v4359 = vpop.permute.xlu0 %4358
    %v4369 = vsel %vm4294, %v4231, %v4222
    %v4370 = vsel %vm4296, %v4240, %v4369
    %v4371 = vsel %vm4298, %v4249, %v4370
    %v4372 = vsel %vm4300, %v4258, %v4371
    %v4373 = vsel %vm4302, %v4267, %v4372
    %v4374 = vsel %vm4304, %v4276, %v4373
    %v4375 = vsel %vm4306, %v4285, %v4374
    %v4377 = vsel %vm439, %v4307, %v4325
    %v4378 = vsel %vm439, %v4341, %v4359
    %v4379 = vld [vmem:[#allocation2] sm:$0xff]
    %v4380 = vld [vmem:[#allocation2 + $0x8] sm:$0xff]
    %v4381 = vld [vmem:[#allocation2 + $0x10] sm:$0xff]
    %v4382 = vmax.f32 %v4379, %v4377
    %v4383 = vmax.f32 %v4380, %v4378
    %v4384 = vmax.f32 %v4381, %v4375
    %4385 = vst [vmem:[#allocation2] sm:$0xff] %v4382
    %4386 = vst [vmem:[#allocation2 + $0x8] sm:$0xff] %v4383
    %4387 = vst.msk [vmem:[#allocation2 + $0x10] sm:$0xff] %vm439, %v4384
    // Predicated region
    $region54: #{tpu_custom_call.1} parent=1 // pred_check
      %p4388 = pneg %p65
    $region55: #{tpu_custom_call.1} parent=1 // pred_check_branch
      %4390 = sbr.rel (%p4388) target = $region57
    $region56: #{tpu_custom_call.1} parent=1 // pred_region
      %v4391 = vld [vmem:[#allocation2] sm:$0xff]
      %v4392 = vld [vmem:[#allocation2 + $0x8] sm:$0xff]
      %v4393 = vld [vmem:[#allocation2 + $0x10] sm:$0xff]
      %v4394 = vld [vmem:[%s3] sm:$0x7]
      %v4396 = vlaneseq
      %v4397 = vshrl.u32 %v4396, 7
      %v4398 = vsub.s32 0, %v4397
      %v4399 = vrot.slane %v4394, %v4398
      %v4400 = vlaneseq
      %v4401 = vshrl.u32 %v4400, 7
      %v4402 = vsub.s32 1, %v4401
      %v4403 = vrot.slane %v4394, %v4402
      %v4404 = vlaneseq
      %v4405 = vshrl.u32 %v4404, 7
      %v4406 = vsub.s32 2, %v4405
      %v4407 = vrot.slane %v4394, %v4406
      %v4411 = vadd.f32 %v4391, %v4399
      %v4412 = vadd.f32 %v4392, %v4403
      %v4413 = vadd.f32 %v4393, %v4407
      %v4414 = vld [vmem:[#allocation6] sm:$0xff]
      %v4415 = vld [vmem:[#allocation6 + $0x8] sm:$0xff]
      %v4416 = vld [vmem:[#allocation6 + $0x10] sm:$0xff]
      %v4417 = vld [vmem:[#allocation6 + $0x18] sm:$0xff]
      %v4418 = vld [vmem:[#allocation6 + $0x20] sm:$0xff]
      %v4419 = vld [vmem:[#allocation6 + $0x28] sm:$0xff]
      %v4420 = vld [vmem:[#allocation6 + $0x30] sm:$0xff]
      %v4421 = vld [vmem:[#allocation6 + $0x38] sm:$0xff]
      %v4422 = vld [vmem:[#allocation6 + $0x40] sm:$0xff]
      %v4423 = vld [vmem:[#allocation6 + $0x48] sm:$0xff]
      %v4424 = vld [vmem:[#allocation6 + $0x50] sm:$0xff]
      %v4425 = vld [vmem:[#allocation6 + $0x58] sm:$0xff]
      %v4426 = vld [vmem:[#allocation6 + $0x60] sm:$0xff]
      %v4427 = vld [vmem:[#allocation6 + $0x68] sm:$0xff]
      %v4428 = vld [vmem:[#allocation6 + $0x70] sm:$0xff]
      %v4429 = vld [vmem:[#allocation6 + $0x78] sm:$0xff]
      %v4430 = vld [vmem:[#allocation6 + $0x80] sm:$0xff]
      %v4431 = vld [vmem:[#allocation6 + $0x88] sm:$0xff]
      %v4432 = vld [vmem:[#allocation6 + $0x90] sm:$0xff]
      %v4433 = vld [vmem:[#allocation6 + $0x98] sm:$0xff]
      %v4434 = vld [vmem:[#allocation6 + $0xa0] sm:$0xff]
      %v4435 = vld [vmem:[#allocation6 + $0xa8] sm:$0xff]
      %v4436 = vld [vmem:[#allocation6 + $0xb0] sm:$0xff]
      %v4437 = vld [vmem:[#allocation6 + $0xb8] sm:$0xff]
      %v4438 = vld [vmem:[#allocation6 + $0xc0] sm:$0xff]
      %v4439 = vld [vmem:[#allocation6 + $0xc8] sm:$0xff]
      %v4440 = vld [vmem:[#allocation6 + $0xd0] sm:$0xff]
      %v4441 = vld [vmem:[#allocation6 + $0xd8] sm:$0xff]
      %v4442 = vld [vmem:[#allocation6 + $0xe0] sm:$0xff]
      %v4443 = vld [vmem:[#allocation6 + $0xe8] sm:$0xff]
      %v4444 = vld [vmem:[#allocation6 + $0xf0] sm:$0xff]
      %v4445 = vld [vmem:[#allocation6 + $0xf8] sm:$0xff]
      %v4446 = vld [vmem:[#allocation6 + $0x100] sm:$0xff]
      %v4447 = vld [vmem:[#allocation6 + $0x108] sm:$0xff]
      %v4448 = vld [vmem:[#allocation6 + $0x110] sm:$0xff]
      %v4449 = vld [vmem:[#allocation6 + $0x118] sm:$0xff]
      %v4450 = vld [vmem:[#allocation6 + $0x120] sm:$0xff]
      %v4451 = vld [vmem:[#allocation6 + $0x128] sm:$0xff]
      %v4452 = vld [vmem:[#allocation6 + $0x130] sm:$0xff]
      %v4453 = vld [vmem:[#allocation6 + $0x138] sm:$0xff]
      %v4454 = vld [vmem:[%s5] sm:$0x1]
      %v4456 = vlaneseq
      %v4457 = vshrl.u32 %v4456, 7
      %v4458 = vsub.s32 0, %v4457
      %v4459 = vrot.slane %v4454, %v4458
      %v4462 = vsel %vm439, %v4413, 0
      %4464 = vmatprep.subr.mxu0 0.0
      %4465 = vmatpush1.msra.mxu0 %v4414
      %4466 = vmatprep.subr.mxu0 0.0
      %4467 = vmatpush1.msra.mxu0 %v4415
      %4468 = vmatprep.subr.mxu0 0.0
      %4469 = vmatpush1.msra.mxu0 %v4416
      %4470 = vmatprep.subr.mxu0 0.0
      %4471 = vmatpush1.msra.mxu0 %v4417
      %4472 = vmatprep.subr.mxu0 0.0
      %4473 = vmatpush1.msra.mxu0 %v4418
      %4474 = vmatprep.subr.mxu0 0.0
      %4475 = vmatpush1.msra.mxu0 %v4419
      %4476 = vmatprep.subr.mxu0 0.0
      %4477 = vmatpush1.msra.mxu0 %v4420
      %4478 = vmatprep.subr.mxu0 0.0
      %4479 = vmatpush1.msra.mxu0 %v4421
      %4480 = vmatprep.subr.mxu0 0.0
      %4481 = vmatpush1.msra.mxu0 %v4422
      %4482 = vmatprep.subr.mxu0 0.0
      %4483 = vmatpush1.msra.mxu0 %v4423
      %4484 = vmatprep.subr.mxu0 0.0
      %4485 = vmatpush1.msra.mxu0 %v4424
      %4486 = vmatprep.subr.mxu0 0.0
      %4487 = vmatpush1.msra.mxu0 %v4425
      %4488 = vmatprep.subr.mxu0 0.0
      %4489 = vmatpush1.msra.mxu0 %v4426
      %4490 = vmatprep.subr.mxu0 0.0
      %4491 = vmatpush1.msra.mxu0 %v4427
      %4492 = vmatprep.subr.mxu0 0.0
      %4493 = vmatpush1.msra.mxu0 %v4428
      %4494 = vmatprep.subr.mxu0 0.0
      %4495 = vmatpush1.msra.mxu0 %v4429
      %4496 = vmatprep.subr.mxu0 0.0
      %4497 = vmatpush1.msra.mxu0 %v4430
      %4498 = vmatprep.subr.mxu0 0.0
      %4499 = vmatpush1.msra.mxu0 %v4431
      %4500 = vmatprep.subr.mxu0 0.0
      %4501 = vmatpush1.msra.mxu0 %v4432
      %4502 = vmatprep.subr.mxu0 0.0
      %4503 = vmatpush1.msra.mxu0 %v4433
      %4504 = vmatprep.subr.mxu0 0.0
      %4505 = vmatpush1.msra.mxu0 %v4434
      %4506 = vmatprep.subr.mxu0 0.0
      %4507 = vmatpush1.msra.mxu0 %v4435
      %4508 = vmatprep.subr.mxu0 0.0
      %4509 = vmatpush1.msra.mxu0 %v4436
      %4510 = vmatprep.subr.mxu0 0.0
      %4511 = vmatpush1.msra.mxu0 %v4437
      %4512 = vmatprep.subr.mxu0 0.0
      %4513 = vmatpush1.msra.mxu0 %v4438
      %4514 = vmatprep.subr.mxu0 0.0
      %4515 = vmatpush1.msra.mxu0 %v4439
      %4516 = vmatprep.subr.mxu0 0.0
      %4517 = vmatpush1.msra.mxu0 %v4440
      %4518 = vmatprep.subr.mxu0 0.0
      %4519 = vmatpush1.msra.mxu0 %v4441
      %4520 = vmatprep.subr.mxu0 0.0
      %4521 = vmatpush1.msra.mxu0 %v4442
      %4522 = vmatprep.subr.mxu0 0.0
      %4523 = vmatpush1.msra.mxu0 %v4443
      %4524 = vmatprep.subr.mxu0 0.0
      %4525 = vmatpush1.msra.mxu0 %v4444
      %4526 = vmatprep.subr.mxu0 0.0
      %4527 = vmatpush1.msra.mxu0 %v4445
      %4528 = vmatprep.mubr.f32.mxu0 %v4412
      %4529 = vmatmul.mubr.f32.gmra.mrb[0].mxu0 %v4411
      %v4530 = vpop.f32.mrb[0].mxu0
      %v4531 = vadd.f32 %v4459, %v4530
      %v4532 = vpop.f32.mrb[0].mxu0
      %4533 = vdwg.mxu0
      %4534 = vmatprep.subr.mxu0 0.0
      %4535 = vmatpush1.msra.mxu0 %v4446
      %4536 = vmatprep.subr.mxu0 0.0
      %4537 = vmatpush1.msra.mxu0 %v4447
      %4538 = vmatprep.subr.mxu0 0.0
      %4539 = vmatpush1.msra.mxu0 %v4448
      %4540 = vmatprep.subr.mxu0 0.0
      %4541 = vmatpush1.msra.mxu0 %v4449
      %4542 = vmatprep.subr.mxu0 0.0
      %4543 = vmatpush1.msra.mxu0 %v4450
      %4544 = vmatprep.subr.mxu0 0.0
      %4545 = vmatpush1.msra.mxu0 %v4451
      %4546 = vmatprep.subr.mxu0 0.0
      %4547 = vmatpush1.msra.mxu0 %v4452
      %4548 = vmatprep.subr.mxu0 0.0
      %4549 = vmatpush1.msra.mxu0 %v4453
      %4550 = vmatprep.subr.mxu0 0.0
      %4551 = vmatpush1.msra.mxu0 0.0
      %4552 = vmatprep.subr.mxu0 0.0
      %4553 = vmatpush1.msra.mxu0 0.0
      %4554 = vmatprep.subr.mxu0 0.0
      %4555 = vmatpush1.msra.mxu0 0.0
      %4556 = vmatprep.subr.mxu0 0.0
      %4557 = vmatpush1.msra.mxu0 0.0
      %4558 = vmatprep.subr.mxu0 0.0
      %4559 = vmatpush1.msra.mxu0 0.0
      %4560 = vmatprep.subr.mxu0 0.0
      %4561 = vmatpush1.msra.mxu0 0.0
      %4562 = vmatprep.subr.mxu0 0.0
      %4563 = vmatpush1.msra.mxu0 0.0
      %4564 = vmatprep.subr.mxu0 0.0
      %4565 = vmatpush1.msra.mxu0 0.0
      %4566 = vmatprep.subr.mxu0 0.0
      %4567 = vmatpush1.msra.mxu0 0.0
      %4568 = vmatprep.subr.mxu0 0.0
      %4569 = vmatpush1.msra.mxu0 0.0
      %4570 = vmatprep.subr.mxu0 0.0
      %4571 = vmatpush1.msra.mxu0 0.0
      %4572 = vmatprep.subr.mxu0 0.0
      %4573 = vmatpush1.msra.mxu0 0.0
      %4574 = vmatprep.subr.mxu0 0.0
      %4575 = vmatpush1.msra.mxu0 0.0
      %4576 = vmatprep.subr.mxu0 0.0
      %4577 = vmatpush1.msra.mxu0 0.0
      %4578 = vmatprep.subr.mxu0 0.0
      %4579 = vmatpush1.msra.mxu0 0.0
      %4580 = vmatprep.subr.mxu0 0.0
      %4581 = vmatpush1.msra.mxu0 0.0
      %4582 = vmatprep.subr.mxu0 0.0
      %4583 = vmatpush1.msra.mxu0 0.0
      %4584 = vmatprep.subr.mxu0 0.0
      %4585 = vmatpush1.msra.mxu0 0.0
      %4586 = vmatprep.subr.mxu0 0.0
      %4587 = vmatpush1.msra.mxu0 0.0
      %4588 = vmatprep.subr.mxu0 0.0
      %4589 = vmatpush1.msra.mxu0 0.0
      %4590 = vmatprep.subr.mxu0 0.0
      %4591 = vmatpush1.msra.mxu0 0.0
      %4592 = vmatprep.subr.mxu0 0.0
      %4593 = vmatpush1.msra.mxu0 0.0
      %4594 = vmatprep.subr.mxu0 0.0
      %4595 = vmatpush1.msra.mxu0 0.0
      %4596 = vmatprep.subr.mxu0 0.0
      %4597 = vmatpush1.msra.mxu0 0.0
      %4598 = vmatprep.mubr.f32.mxu0 0.0
      %4599 = vmatmul.mubr.f32.gmra.mrb[0].mxu0 %v4462
      %v4600 = vpop.f32.mrb[0].mxu0
      %v4601 = vadd.f32 %v4531, %v4600
      %v4602 = vpop.f32.mrb[0].mxu0
      %4603 = vdwg.mxu0
      %v4604 = vmax.f32 %v4601, 0.0
      %v4605 = vld [vmem:[%s6] sm:$0xff]
      %v4606 = vld [vmem:[%s6 + $0x8] sm:$0xff]
      %v4607 = vld [vmem:[%s6 + $0x10] sm:$0xff]
      %v4608 = vld [vmem:[%s6 + $0x18] sm:$0xff]
      %v4609 = vld [vmem:[%s6 + $0x20] sm:$0xff]
      %v4610 = vld [vmem:[%s6 + $0x28] sm:$0xff]
      %v4611 = vld [vmem:[%s6 + $0x30] sm:$0xff]
      %v4612 = vld [vmem:[%s6 + $0x38] sm:$0xff]
      %v4613 = vld [vmem:[%s6 + $0x40] sm:$0xff]
      %v4614 = vld [vmem:[%s6 + $0x48] sm:$0xff]
      %v4615 = vld [vmem:[%s6 + $0x50] sm:$0xff]
      %v4616 = vld [vmem:[%s6 + $0x58] sm:$0xff]
      %v4617 = vld [vmem:[%s6 + $0x60] sm:$0xff]
      %v4618 = vld [vmem:[%s6 + $0x68] sm:$0xff]
      %v4619 = vld [vmem:[%s6 + $0x70] sm:$0xff]
      %v4620 = vld [vmem:[%s6 + $0x78] sm:$0xff]
      %v4621 = vld [vmem:[%s7] sm:$0x1]
      %v4623 = vlaneseq
      %v4624 = vshrl.u32 %v4623, 7
      %v4625 = vsub.s32 0, %v4624
      %v4626 = vrot.slane %v4621, %v4625
      %4628 = vmatprep.subr.mxu0 0.0
      %4629 = vmatpush1.msra.mxu0 %v4605
      %4630 = vmatprep.subr.mxu0 0.0
      %4631 = vmatpush1.msra.mxu0 %v4606
      %4632 = vmatprep.subr.mxu0 0.0
      %4633 = vmatpush1.msra.mxu0 %v4607
      %4634 = vmatprep.subr.mxu0 0.0
      %4635 = vmatpush1.msra.mxu0 %v4608
      %4636 = vmatprep.subr.mxu0 0.0
      %4637 = vmatpush1.msra.mxu0 %v4609
      %4638 = vmatprep.subr.mxu0 0.0
      %4639 = vmatpush1.msra.mxu0 %v4610
      %4640 = vmatprep.subr.mxu0 0.0
      %4641 = vmatpush1.msra.mxu0 %v4611
      %4642 = vmatprep.subr.mxu0 0.0
      %4643 = vmatpush1.msra.mxu0 %v4612
      %4644 = vmatprep.subr.mxu0 0.0
      %4645 = vmatpush1.msra.mxu0 %v4613
      %4646 = vmatprep.subr.mxu0 0.0
      %4647 = vmatpush1.msra.mxu0 %v4614
      %4648 = vmatprep.subr.mxu0 0.0
      %4649 = vmatpush1.msra.mxu0 %v4615
      %4650 = vmatprep.subr.mxu0 0.0
      %4651 = vmatpush1.msra.mxu0 %v4616
      %4652 = vmatprep.subr.mxu0 0.0
      %4653 = vmatpush1.msra.mxu0 %v4617
      %4654 = vmatprep.subr.mxu0 0.0
      %4655 = vmatpush1.msra.mxu0 %v4618
      %4656 = vmatprep.subr.mxu0 0.0
      %4657 = vmatpush1.msra.mxu0 %v4619
      %4658 = vmatprep.subr.mxu0 0.0
      %4659 = vmatpush1.msra.mxu0 %v4620
      %4660 = vmatprep.subr.mxu0 0.0
      %4661 = vmatpush1.msra.mxu0 0.0
      %4662 = vmatprep.subr.mxu0 0.0
      %4663 = vmatpush1.msra.mxu0 0.0
      %4664 = vmatprep.subr.mxu0 0.0
      %4665 = vmatpush1.msra.mxu0 0.0
      %4666 = vmatprep.subr.mxu0 0.0
      %4667 = vmatpush1.msra.mxu0 0.0
      %4668 = vmatprep.subr.mxu0 0.0
      %4669 = vmatpush1.msra.mxu0 0.0
      %4670 = vmatprep.subr.mxu0 0.0
      %4671 = vmatpush1.msra.mxu0 0.0
      %4672 = vmatprep.subr.mxu0 0.0
      %4673 = vmatpush1.msra.mxu0 0.0
      %4674 = vmatprep.subr.mxu0 0.0
      %4675 = vmatpush1.msra.mxu0 0.0
      %4676 = vmatprep.subr.mxu0 0.0
      %4677 = vmatpush1.msra.mxu0 0.0
      %4678 = vmatprep.subr.mxu0 0.0
      %4679 = vmatpush1.msra.mxu0 0.0
      %4680 = vmatprep.subr.mxu0 0.0
      %4681 = vmatpush1.msra.mxu0 0.0
      %4682 = vmatprep.subr.mxu0 0.0
      %4683 = vmatpush1.msra.mxu0 0.0
      %4684 = vmatprep.subr.mxu0 0.0
      %4685 = vmatpush1.msra.mxu0 0.0
      %4686 = vmatprep.subr.mxu0 0.0
      %4687 = vmatpush1.msra.mxu0 0.0
      %4688 = vmatprep.subr.mxu0 0.0
      %4689 = vmatpush1.msra.mxu0 0.0
      %4690 = vmatprep.subr.mxu0 0.0
      %4691 = vmatpush1.msra.mxu0 0.0
      %4692 = vmatprep.mubr.f32.mxu0 0.0
      %4693 = vmatmul.mubr.f32.gmra.mrb[0].mxu0 %v4604
      %v4694 = vpop.f32.mrb[0].mxu0
      %v4695 = vadd.f32 %v4626, %v4694
      %v4696 = vpop.f32.mrb[0].mxu0
      %4697 = vdwg.mxu0
      %v4698 = vmax.f32 %v4695, 0.0
      %v4699 = vld [vmem:[%s8] sm:$0xff]
      %v4700 = vld [vmem:[%s8 + $0x8] sm:$0xff]
      %v4701 = vld [vmem:[%s8 + $0x10] sm:$0xff]
      %v4702 = vld [vmem:[%s8 + $0x18] sm:$0xff]
      %v4703 = vld [vmem:[%s8 + $0x20] sm:$0xff]
      %v4704 = vld [vmem:[%s8 + $0x28] sm:$0xff]
      %v4705 = vld [vmem:[%s8 + $0x30] sm:$0xff]
      %v4706 = vld [vmem:[%s8 + $0x38] sm:$0xff]
      %v4707 = vld [vmem:[%s9] sm:$0x1]
      %v4709 = vlaneseq
      %v4710 = vshrl.u32 %v4709, 7
      %v4711 = vsub.s32 0, %v4710
      %v4712 = vrot.slane %v4707, %v4711
      %v4715 = vsel %vm439, %v4698, 0
      %4717 = vmatprep.subr.mxu0 0.0
      %4718 = vmatpush1.msra.mxu0 %v4699
      %4719 = vmatprep.subr.mxu0 0.0
      %4720 = vmatpush1.msra.mxu0 %v4700
      %4721 = vmatprep.subr.mxu0 0.0
      %4722 = vmatpush1.msra.mxu0 %v4701
      %4723 = vmatprep.subr.mxu0 0.0
      %4724 = vmatpush1.msra.mxu0 %v4702
      %4725 = vmatprep.subr.mxu0 0.0
      %4726 = vmatpush1.msra.mxu0 %v4703
      %4727 = vmatprep.subr.mxu0 0.0
      %4728 = vmatpush1.msra.mxu0 %v4704
      %4729 = vmatprep.subr.mxu0 0.0
      %4730 = vmatpush1.msra.mxu0 %v4705
      %4731 = vmatprep.subr.mxu0 0.0
      %4732 = vmatpush1.msra.mxu0 %v4706
      %4733 = vmatprep.subr.mxu0 0.0
      %4734 = vmatpush1.msra.mxu0 0.0
      %4735 = vmatprep.subr.mxu0 0.0
      %4736 = vmatpush1.msra.mxu0 0.0
      %4737 = vmatprep.subr.mxu0 0.0
      %4738 = vmatpush1.msra.mxu0 0.0
      %4739 = vmatprep.subr.mxu0 0.0
      %4740 = vmatpush1.msra.mxu0 0.0
      %4741 = vmatprep.subr.mxu0 0.0
      %4742 = vmatpush1.msra.mxu0 0.0
      %4743 = vmatprep.subr.mxu0 0.0
      %4744 = vmatpush1.msra.mxu0 0.0
      %4745 = vmatprep.subr.mxu0 0.0
      %4746 = vmatpush1.msra.mxu0 0.0
      %4747 = vmatprep.subr.mxu0 0.0
      %4748 = vmatpush1.msra.mxu0 0.0
      %4749 = vmatprep.subr.mxu0 0.0
      %4750 = vmatpush1.msra.mxu0 0.0
      %4751 = vmatprep.subr.mxu0 0.0
      %4752 = vmatpush1.msra.mxu0 0.0
      %4753 = vmatprep.subr.mxu0 0.0
      %4754 = vmatpush1.msra.mxu0 0.0
      %4755 = vmatprep.subr.mxu0 0.0
      %4756 = vmatpush1.msra.mxu0 0.0
      %4757 = vmatprep.subr.mxu0 0.0
      %4758 = vmatpush1.msra.mxu0 0.0
      %4759 = vmatprep.subr.mxu0 0.0
      %4760 = vmatpush1.msra.mxu0 0.0
      %4761 = vmatprep.subr.mxu0 0.0
      %4762 = vmatpush1.msra.mxu0 0.0
      %4763 = vmatprep.subr.mxu0 0.0
      %4764 = vmatpush1.msra.mxu0 0.0
      %4765 = vmatprep.subr.mxu0 0.0
      %4766 = vmatpush1.msra.mxu0 0.0
      %4767 = vmatprep.subr.mxu0 0.0
      %4768 = vmatpush1.msra.mxu0 0.0
      %4769 = vmatprep.subr.mxu0 0.0
      %4770 = vmatpush1.msra.mxu0 0.0
      %4771 = vmatprep.subr.mxu0 0.0
      %4772 = vmatpush1.msra.mxu0 0.0
      %4773 = vmatprep.subr.mxu0 0.0
      %4774 = vmatpush1.msra.mxu0 0.0
      %4775 = vmatprep.subr.mxu0 0.0
      %4776 = vmatpush1.msra.mxu0 0.0
      %4777 = vmatprep.subr.mxu0 0.0
      %4778 = vmatpush1.msra.mxu0 0.0
      %4779 = vmatprep.subr.mxu0 0.0
      %4780 = vmatpush1.msra.mxu0 0.0
      %4781 = vmatprep.mubr.f32.mxu0 0.0
      %4782 = vmatmul.mubr.f32.gmra.mrb[0].mxu0 %v4715
      %v4783 = vpop.f32.mrb[0].mxu0
      %v4784 = vadd.f32 %v4712, %v4783
      %v4785 = vpop.f32.mrb[0].mxu0
      %4786 = vdwg.mxu0
      %v4787 = vlaneseq
      %v4788 = vand.u32 %v4787, 127
      %v4789 = vsub.f32 0.0, %v4784
      %v4790 = vmul.f32 %v4789, 1.442695
      %v4791 = vpow.pop %v4790
      %v4792 = vadd.f32 %v4791, 1.0
      %v4793 = vrcp.pop %v4792
      %v4794 = vmul.f32 1.0, %v4793
      %vm4795 = vcmp.eq.s32.totalorder %v4788, 0
      %v4796 = vsel %vm4795, %v4794, %v4784
      %4797 = vst [vmem:[#allocation8] sm:$0xff] %v4796
    $region57: #{tpu_custom_call.1} parent=1 // pred_fallthru
      _
    // Predicated region
    $region58: #{tpu_custom_call.1} parent=1 // pred_check
      _
    $region59: #{tpu_custom_call.1} parent=1 // pred_check_branch
      %4799 = sbr.rel (0) target = $region61
    $region60: #{tpu_custom_call.1} parent=1 // pred_region
      %s4801 = ssub.s32 128, 128
      %4802 = vsyncadd [#allocation5], %s4801
      %s4804 = sshll.u32 [#allocation8], 4
      %s4805 = int_to_ptr.vmem [resolvable:$true] %s4804
      %4807 = dma.vmem_to_hbm [thread:$0]  %s4805, 128, %s10, [#allocation5]
    $region61: #{tpu_custom_call.1} parent=1 // pred_fallthru
      _
    // Predicated region
    $region62: #{tpu_custom_call.1} parent=1 // pred_check
      _
    $region63: #{tpu_custom_call.1} parent=1 // pred_check_branch
      %4809 = sbr.rel (0) target = $region65
    $region64: #{tpu_custom_call.1} parent=1 // pred_region
      %4810 = dma.done [#allocation5], 128
    $region65: #{tpu_custom_call.1} parent=1 // pred_fallthru
      _
    %4811 = vsyncpa [#allocation4], 1
    %4812 = vsyncpa [#allocation7], 1
    %4813 = vsyncpa [#allocation5], 1

</llo_original>
